<compile_context>
chip_gen: v6e
topology: v6e:2x2x1
jax: 0.10.0
libtpu: 0.0.40
codegen_flags: <defaults>
</compile_context>

<pallas_src>
import math
import functools

import jax
import jax.numpy as jnp
from jax.experimental import pallas as pl
from jax.experimental.pallas import tpu as pltpu


# ---------------------------------------------------------------------------
# Fused decoder kernel (whole layer stack, single invocation, batch folded in M)
# ---------------------------------------------------------------------------

def _decoder_kernel(x_ref, src_ref, tbias_ref, sbias_ref, hmask_t_ref, hmask_s_ref,
                    w_qkv_ref, b_qkv_ref, w_so_ref, b_so_ref,
                    w_cq_ref, b_cq_ref, w_ckv_ref, b_ckv_ref, w_co_ref, b_co_ref,
                    w1_ref, b1_ref, w2_ref, b2_ref,
                    ln_g_ref, ln_b_ref,
                    o_ref, *, n_layers, n_heads):
    f32, bf16 = jnp.float32, jnp.bfloat16
    D = x_ref.shape[-1]

    x = x_ref[...]                 # [Mt, D] f32   (batch folded into rows)
    src = src_ref[...]             # [Ms, D] f32
    tbias = tbias_ref[...]         # [H*Mt, Mt]    head-stacked, block-diag additive bias
    sbias = sbias_ref[...]         # [H*Mt, Ms]
    hm_t = hmask_t_ref[...]        # [H*Mt, D]     0/1 per-head feature-column selector
    hm_s = hmask_s_ref[...]        # [H*Ms, D]

    def mm(a, b):                  # [m,k] @ [k,n] -> f32 (bf16 MXU operands)
        return jnp.dot(a.astype(bf16), b.astype(bf16), preferred_element_type=f32)

    def mm_nt(a, b):               # [m,k] @ [n,k]^T -> [m,n] (no in-kernel transpose)
        return jax.lax.dot_general(a.astype(bf16), b.astype(bf16),
                                   (((1,), (1,)), ((), ())),
                                   preferred_element_type=f32)

    def stack_heads(a, hmask):
        # [R, D] -> [H*R, D]; row (h, r) = a[r] masked to head h's dk columns.
        # Sublane-aligned concat (row counts are multiples of 8) + one VPU mul.
        rep = jnp.concatenate([a] * n_heads, axis=0)
        return rep * hmask

    def layer_norm(y, gamma, beta):
        mean = jnp.mean(y, axis=-1, keepdims=True)
        var = jnp.mean(jnp.square(y - mean), axis=-1, keepdims=True)
        return (y - mean) * jax.lax.rsqrt(var + 1e-5) * gamma + beta

    def attention(q, k, v, hmask_kv, w_o, b_o, bias_st):
        # Heads stacked along the sublane axis: one full-width score matmul and
        # one V@W_o matmul for all heads (identical math to the per-head slices).
        Mq, nK = q.shape[0], k.shape[0]
        q_st = stack_heads(q, hm_t)                        # [H*Mq, D]
        s = mm_nt(q_st, k) + bias_st                       # [H*Mq, nK]
        s = s - jnp.max(s, axis=-1, keepdims=True)
        p = jnp.exp(s)
        p = p * pl.reciprocal(jnp.sum(p, axis=-1, keepdims=True), approx=True)
        # V_h @ W_o[h*dk:(h+1)*dk, :] for every head, as ONE [H*nK, D] x [D, D] matmul.
        vw = mm(stack_heads(v, hmask_kv), w_o)             # [H*nK, D]
        p_b = p.astype(bf16)
        vw_b = vw.astype(bf16)
        parts = [jnp.dot(p_b[h * Mq:(h + 1) * Mq, :], vw_b[h * nK:(h + 1) * nK, :],
                         preferred_element_type=f32)
                 for h in range(n_heads)]
        o = parts[0]
        for t in parts[1:]:
            o = o + t
        return o + b_o

    # Per-layer weights are read at point of use (correct for trained stacks with
    # distinct per-layer weights; for deep stacks switch this short static unroll
    # to lax.fori_loop with a dynamic layer index).
    for l in range(n_layers):
        # ---- self attention (fused QKV; 1/sqrt(dk) pre-folded into Q cols) ----
        qkv = mm(x, w_qkv_ref[l]) + b_qkv_ref[l]           # [Mt, 3D]
        q, k, v = qkv[:, :D], qkv[:, D:2 * D], qkv[:, 2 * D:]
        sa = attention(q, k, v, hm_t, w_so_ref[l], b_so_ref[l], tbias)
        x = layer_norm(sa + x, ln_g_ref[l], ln_b_ref[l])
        # ---- cross attention (fused KV on src; scale folded into W_q) ----
        kv_c = mm(src, w_ckv_ref[l]) + b_ckv_ref[l]        # [Ms, 2D]
        k_c, v_c = kv_c[:, :D], kv_c[:, D:]
        qc = mm(x, w_cq_ref[l]) + b_cq_ref[l]
        ca = attention(qc, k_c, v_c, hm_s, w_co_ref[l], b_co_ref[l], sbias)
        x = layer_norm(ca + x, ln_g_ref[l], ln_b_ref[l])
        # ---- feed forward (d_ff intermediate never leaves VMEM) ----
        h1 = jnp.maximum(mm(x, w1_ref[l]) + b1_ref[l], 0.0)
        ff = mm(h1, w2_ref[l]) + b2_ref[l]
        x = layer_norm(ff + x, ln_g_ref[l], ln_b_ref[l])

    o_ref[...] = x.astype(o_ref.dtype)


# ---------------------------------------------------------------------------
# Wrapper: fold batch, build block-diag / head-stacked biases, pack per-layer
# weights (scale folded), single pallas_call with no grid.
# ---------------------------------------------------------------------------

def decoder_forward(x, src, tgt_mask, src_mask, layer_params, *, n_heads):
    B, S_tgt, D = x.shape
    S_src = src.shape[1]
    L = len(layer_params)
    H = n_heads
    dk = D // H
    Mt, Ms = B * S_tgt, B * S_src
    f32, bf16 = jnp.float32, jnp.bfloat16
    NEG = jnp.float32(-1e30)

    # ---- fold batch into the M (row) dimension ----
    x2 = x.reshape(Mt, D).astype(f32)
    src2 = src.reshape(Ms, D).astype(f32)

    # Block-diagonal additive biases so folded batches never attend across batch.
    bq = jnp.repeat(jnp.arange(B), S_tgt)
    bs = jnp.repeat(jnp.arange(B), S_src)
    tb = jnp.where(tgt_mask > 0, 0.0, NEG).astype(f32)              # [S_t, S_t]
    sb = jnp.where(src_mask > 0, 0.0, NEG).astype(f32)              # [S_t, S_s]
    tbias = jnp.where(bq[:, None] == bq[None, :], jnp.tile(tb, (B, B)), NEG)
    sbias = jnp.where(bq[:, None] == bs[None, :], jnp.tile(sb, (B, B)), NEG)
    # Head-stacked copies (the kernel stacks heads along rows).
    tbias_st = jnp.tile(tbias, (H, 1)).astype(f32)                  # [H*Mt, Mt]
    sbias_st = jnp.tile(sbias, (H, 1)).astype(f32)                  # [H*Mt, Ms]

    # 0/1 selectors of each head's dk feature columns, per stacked row block.
    col_head = jnp.arange(D) // dk
    def head_mask(rows):
        row_head = jnp.repeat(jnp.arange(H), rows)
        return (row_head[:, None] == col_head[None, :]).astype(f32)
    hmask_t = head_mask(Mt)                                         # [H*Mt, D]
    hmask_s = head_mask(Ms)                                         # [H*Ms, D]

    # ---- pack per-layer weights; fold 1/sqrt(dk) into Q projections ----
    scale = 1.0 / math.sqrt(dk)
    def pack(p):
        sa, ca = p["self_attn"], p["src_attn"]
        return dict(
            w_qkv=jnp.concatenate([sa["wq"] * scale, sa["wk"], sa["wv"]],
                                  axis=1).astype(bf16),
            b_qkv=jnp.concatenate([sa["bq"] * scale, sa["bk"], sa["bv"]])[None, :].astype(f32),
            w_so=sa["wo"].astype(bf16), b_so=sa["bo"][None, :].astype(f32),
            w_cq=(ca["wq"] * scale).astype(bf16),
            b_cq=(ca["bq"] * scale)[None, :].astype(f32),
            w_ckv=jnp.concatenate([ca["wk"], ca["wv"]], axis=1).astype(bf16),
            b_ckv=jnp.concatenate([ca["bk"], ca["bv"]])[None, :].astype(f32),
            w_co=ca["wo"].astype(bf16), b_co=ca["bo"][None, :].astype(f32),
            w1=p["w1"].astype(bf16), b1=p["b1"][None, :].astype(f32),
            w2=p["w2"].astype(bf16), b2=p["b2"][None, :].astype(f32),
            ln_g=p["ln_g"][None, :].astype(f32),
            ln_b=p["ln_b"][None, :].astype(f32),
        )
    packed = [pack(p) for p in layer_params]
    stacked = {k: jnp.stack([q[k] for q in packed], axis=0) for k in packed[0]}

    kernel = functools.partial(_decoder_kernel, n_layers=L, n_heads=H)

    out = pl.pallas_call(
        kernel,
        out_shape=jax.ShapeDtypeStruct((Mt, D), f32),
        compiler_params=pltpu.CompilerParams(vmem_limit_bytes=32 * 1024 * 1024),
    )(x2, src2, tbias_st, sbias_st, hmask_t, hmask_s,
      stacked["w_qkv"], stacked["b_qkv"], stacked["w_so"], stacked["b_so"],
      stacked["w_cq"], stacked["b_cq"], stacked["w_ckv"], stacked["b_ckv"],
      stacked["w_co"], stacked["b_co"],
      stacked["w1"], stacked["b1"], stacked["w2"], stacked["b2"],
      stacked["ln_g"], stacked["ln_b"])
    return out.reshape(B, S_tgt, D)


# ---------------------------------------------------------------------------
# Deterministic parameter init (PyTorch nn.Linear-style uniform)
# ---------------------------------------------------------------------------

def init_linear(key, din, dout):
    k1, k2 = jax.random.split(key)
    bound = 1.0 / math.sqrt(din)
    w = jax.random.uniform(k1, (din, dout), jnp.float32, -bound, bound)
    b = jax.random.uniform(k2, (dout,), jnp.float32, -bound, bound)
    return w, b


def init_mha_params(key, d_model):
    ks = jax.random.split(key, 4)
    wq, bq = init_linear(ks[0], d_model, d_model)
    wk, bk = init_linear(ks[1], d_model, d_model)
    wv, bv = init_linear(ks[2], d_model, d_model)
    wo, bo = init_linear(ks[3], d_model, d_model)
    return dict(wq=wq, bq=bq, wk=wk, bk=bk, wv=wv, bv=bv, wo=wo, bo=bo)


def init_layer_params(key, d_model, d_ff):
    ks = jax.random.split(key, 4)
    p = dict(
        self_attn=init_mha_params(ks[0], d_model),
        src_attn=init_mha_params(ks[1], d_model),
        ln_g=jnp.ones((d_model,), jnp.float32),
        ln_b=jnp.zeros((d_model,), jnp.float32),
    )
    p["w1"], p["b1"] = init_linear(ks[2], d_model, d_ff)
    p["w2"], p["b2"] = init_linear(ks[3], d_ff, d_model)
    return p


# ---------------------------------------------------------------------------
# Main
# ---------------------------------------------------------------------------

if __name__ == "__main__":
    B, S_tgt, S_src = 2, 8, 8
    d_model, n_heads, d_ff, n_layers = 32, 4, 64, 2

    key = jax.random.PRNGKey(0)
    k_param, k_x, k_src = jax.random.split(key, 3)

    # clone_module_list deep-copies one layer -> every layer has identical params.
    base = init_layer_params(k_param, d_model, d_ff)
    layer_params = [base for _ in range(n_layers)]

    x = jax.random.normal(k_x, (B, S_tgt, d_model), jnp.float32)
    src = jax.random.normal(k_src, (B, S_src, d_model), jnp.float32)

    # tgt mask: causal (1 = attend); src mask: all ones
    tgt_mask = jnp.tril(jnp.ones((S_tgt, S_tgt), jnp.float32))
    src_mask = jnp.ones((S_tgt, S_src), jnp.float32)

    fwd = jax.jit(functools.partial(decoder_forward, n_heads=n_heads))
    out = fwd(x, src, tgt_mask, src_mask, layer_params)
    out = jax.block_until_ready(out)

    assert out.shape == (B, S_tgt, d_model)
    assert bool(jnp.all(jnp.isfinite(out)))
    print("KERNEL_OK")
</pallas_src>

<mosaic_0001>
module attributes {stable_mosaic.version = 11 : i64} {
  func.func @_decoder_kernel(%arg0: memref<16x32xf32, #tpu.memory_space<vmem>>, %arg1: memref<16x32xf32, #tpu.memory_space<vmem>>, %arg2: memref<64x16xf32, #tpu.memory_space<vmem>>, %arg3: memref<64x16xf32, #tpu.memory_space<vmem>>, %arg4: memref<64x32xf32, #tpu.memory_space<vmem>>, %arg5: memref<64x32xf32, #tpu.memory_space<vmem>>, %arg6: memref<2x32x96xbf16, #tpu.memory_space<vmem>>, %arg7: memref<2x1x96xf32, #tpu.memory_space<vmem>>, %arg8: memref<2x32x32xbf16, #tpu.memory_space<vmem>>, %arg9: memref<2x1x32xf32, #tpu.memory_space<vmem>>, %arg10: memref<2x32x32xbf16, #tpu.memory_space<vmem>>, %arg11: memref<2x1x32xf32, #tpu.memory_space<vmem>>, %arg12: memref<2x32x64xbf16, #tpu.memory_space<vmem>>, %arg13: memref<2x1x64xf32, #tpu.memory_space<vmem>>, %arg14: memref<2x32x32xbf16, #tpu.memory_space<vmem>>, %arg15: memref<2x1x32xf32, #tpu.memory_space<vmem>>, %arg16: memref<2x32x64xbf16, #tpu.memory_space<vmem>>, %arg17: memref<2x1x64xf32, #tpu.memory_space<vmem>>, %arg18: memref<2x64x32xbf16, #tpu.memory_space<vmem>>, %arg19: memref<2x1x32xf32, #tpu.memory_space<vmem>>, %arg20: memref<2x1x32xf32, #tpu.memory_space<vmem>>, %arg21: memref<2x1x32xf32, #tpu.memory_space<vmem>>, %arg22: memref<16x32xf32, #tpu.memory_space<vmem>>) attributes {dimension_semantics = [], scalar_prefetch = 0 : i64, scratch_operands = 0 : i64, tpu.core_type = #tpu.core_type<tc>} {
    %c0 = arith.constant 0 : index
    %c0_0 = arith.constant 0 : index
    %0 = vector.load %arg0[%c0, %c0_0] : memref<16x32xf32, #tpu.memory_space<vmem>>, vector<16x32xf32>
    %c0_1 = arith.constant 0 : index
    %c0_2 = arith.constant 0 : index
    %1 = vector.load %arg1[%c0_1, %c0_2] : memref<16x32xf32, #tpu.memory_space<vmem>>, vector<16x32xf32>
    %c0_3 = arith.constant 0 : index
    %c0_4 = arith.constant 0 : index
    %2 = vector.load %arg2[%c0_3, %c0_4] : memref<64x16xf32, #tpu.memory_space<vmem>>, vector<64x16xf32>
    %c0_5 = arith.constant 0 : index
    %c0_6 = arith.constant 0 : index
    %3 = vector.load %arg3[%c0_5, %c0_6] : memref<64x16xf32, #tpu.memory_space<vmem>>, vector<64x16xf32>
    %c0_7 = arith.constant 0 : index
    %c0_8 = arith.constant 0 : index
    %4 = vector.load %arg4[%c0_7, %c0_8] : memref<64x32xf32, #tpu.memory_space<vmem>>, vector<64x32xf32>
    %c0_9 = arith.constant 0 : index
    %c0_10 = arith.constant 0 : index
    %5 = vector.load %arg5[%c0_9, %c0_10] : memref<64x32xf32, #tpu.memory_space<vmem>>, vector<64x32xf32>
    %c0_11 = arith.constant 0 : index
    %c0_12 = arith.constant 0 : index
    %c0_13 = arith.constant 0 : index
    %6 = vector.load %arg6[%c0_11, %c0_12, %c0_13] : memref<2x32x96xbf16, #tpu.memory_space<vmem>>, vector<1x32x96xbf16>
    %7 = vector.shape_cast %6 : vector<1x32x96xbf16> to vector<32x96xbf16>
    %8 = arith.truncf %0 : vector<16x32xf32> to vector<16x32xbf16>
    %cst = arith.constant dense<0.000000e+00> : vector<16x96xf32>
    %9 = tpu.matmul %8, %7, %cst {dimension_numbers = #tpu.dot_dimension_numbers<[1], [0], [0], [1], [0, 0, 1, 1], [], []>} : vector<16x32xbf16>, vector<32x96xbf16>, vector<16x96xf32> -> vector<16x96xf32>
    %c0_14 = arith.constant 0 : index
    %c0_15 = arith.constant 0 : index
    %c0_16 = arith.constant 0 : index
    %10 = vector.load %arg7[%c0_14, %c0_15, %c0_16] : memref<2x1x96xf32, #tpu.memory_space<vmem>>, vector<1x1x96xf32>
    %11 = vector.shape_cast %10 : vector<1x1x96xf32> to vector<1x96xf32>
    %12 = vector.broadcast %11 : vector<1x96xf32> to vector<16x96xf32>
    %13 = arith.addf %9, %12 : vector<16x96xf32>
    %14 = vector.extract_strided_slice %13 {offsets = [0, 0], sizes = [16, 32], strides = [1, 1]} : vector<16x96xf32> to vector<16x32xf32>
    %15 = vector.extract_strided_slice %13 {offsets = [0, 32], sizes = [16, 32], strides = [1, 1]} : vector<16x96xf32> to vector<16x32xf32>
    %16 = vector.extract_strided_slice %13 {offsets = [0, 64], sizes = [16, 32], strides = [1, 1]} : vector<16x96xf32> to vector<16x32xf32>
    %c0_17 = arith.constant 0 : index
    %c0_18 = arith.constant 0 : index
    %c0_19 = arith.constant 0 : index
    %17 = vector.load %arg8[%c0_17, %c0_18, %c0_19] : memref<2x32x32xbf16, #tpu.memory_space<vmem>>, vector<1x32x32xbf16>
    %18 = vector.shape_cast %17 : vector<1x32x32xbf16> to vector<32x32xbf16>
    %c0_20 = arith.constant 0 : index
    %c0_21 = arith.constant 0 : index
    %c0_22 = arith.constant 0 : index
    %19 = vector.load %arg9[%c0_20, %c0_21, %c0_22] : memref<2x1x32xf32, #tpu.memory_space<vmem>>, vector<1x1x32xf32>
    %20 = vector.shape_cast %19 : vector<1x1x32xf32> to vector<1x32xf32>
    %21 = tpu.concatenate %14, %14, %14, %14 in 0 : vector<16x32xf32>, vector<16x32xf32>, vector<16x32xf32>, vector<16x32xf32> -> vector<64x32xf32>
    %22 = arith.mulf %21, %4 : vector<64x32xf32>
    %23 = arith.truncf %22 : vector<64x32xf32> to vector<64x32xbf16>
    %24 = arith.truncf %15 : vector<16x32xf32> to vector<16x32xbf16>
    %cst_23 = arith.constant dense<0.000000e+00> : vector<64x16xf32>
    %25 = tpu.matmul %23, %24, %cst_23 {dimension_numbers = #tpu.dot_dimension_numbers<[1], [1], [0], [0], [0, 0, 1, 0], [], []>} : vector<64x32xbf16>, vector<16x32xbf16>, vector<64x16xf32> -> vector<64x16xf32>
    %26 = arith.addf %25, %2 : vector<64x16xf32>
    %cst_24 = arith.constant dense<0xFF800000> : vector<64xf32>
    %27 = vector.multi_reduction <maximumf>, %26, %cst_24 [1] : vector<64x16xf32> to vector<64xf32>
    %28 = vector.shape_cast %27 : vector<64xf32> to vector<64x1xf32>
    %29 = vector.broadcast %28 : vector<64x1xf32> to vector<64x16xf32>
    %30 = arith.subf %26, %29 : vector<64x16xf32>
    %31 = math.exp %30 : vector<64x16xf32>
    %cst_25 = arith.constant dense<0.000000e+00> : vector<64xf32>
    %32 = vector.multi_reduction <add>, %31, %cst_25 [1] : vector<64x16xf32> to vector<64xf32>
    %33 = vector.shape_cast %32 : vector<64xf32> to vector<64x1xf32>
    %34 = tpu.reciprocal %33 {approx = true} : vector<64x1xf32> -> vector<64x1xf32>
    %35 = vector.broadcast %34 : vector<64x1xf32> to vector<64x16xf32>
    %36 = arith.mulf %31, %35 : vector<64x16xf32>
    %37 = tpu.concatenate %16, %16, %16, %16 in 0 : vector<16x32xf32>, vector<16x32xf32>, vector<16x32xf32>, vector<16x32xf32> -> vector<64x32xf32>
    %38 = arith.mulf %37, %4 : vector<64x32xf32>
    %39 = arith.truncf %38 : vector<64x32xf32> to vector<64x32xbf16>
    %cst_26 = arith.constant dense<0.000000e+00> : vector<64x32xf32>
    %40 = tpu.matmul %39, %18, %cst_26 {dimension_numbers = #tpu.dot_dimension_numbers<[1], [0], [0], [1], [0, 0, 1, 1], [], []>} : vector<64x32xbf16>, vector<32x32xbf16>, vector<64x32xf32> -> vector<64x32xf32>
    %41 = arith.truncf %36 : vector<64x16xf32> to vector<64x16xbf16>
    %42 = arith.truncf %40 : vector<64x32xf32> to vector<64x32xbf16>
    %43 = vector.extract_strided_slice %41 {offsets = [0, 0], sizes = [16, 16], strides = [1, 1]} : vector<64x16xbf16> to vector<16x16xbf16>
    %44 = vector.extract_strided_slice %42 {offsets = [0, 0], sizes = [16, 32], strides = [1, 1]} : vector<64x32xbf16> to vector<16x32xbf16>
    %cst_27 = arith.constant dense<0.000000e+00> : vector<16x32xf32>
    %45 = tpu.matmul %43, %44, %cst_27 {dimension_numbers = #tpu.dot_dimension_numbers<[1], [0], [0], [1], [0, 0, 1, 1], [], []>} : vector<16x16xbf16>, vector<16x32xbf16>, vector<16x32xf32> -> vector<16x32xf32>
    %46 = vector.extract_strided_slice %41 {offsets = [16, 0], sizes = [16, 16], strides = [1, 1]} : vector<64x16xbf16> to vector<16x16xbf16>
    %47 = vector.extract_strided_slice %42 {offsets = [16, 0], sizes = [16, 32], strides = [1, 1]} : vector<64x32xbf16> to vector<16x32xbf16>
    %cst_28 = arith.constant dense<0.000000e+00> : vector<16x32xf32>
    %48 = tpu.matmul %46, %47, %cst_28 {dimension_numbers = #tpu.dot_dimension_numbers<[1], [0], [0], [1], [0, 0, 1, 1], [], []>} : vector<16x16xbf16>, vector<16x32xbf16>, vector<16x32xf32> -> vector<16x32xf32>
    %49 = vector.extract_strided_slice %41 {offsets = [32, 0], sizes = [16, 16], strides = [1, 1]} : vector<64x16xbf16> to vector<16x16xbf16>
    %50 = vector.extract_strided_slice %42 {offsets = [32, 0], sizes = [16, 32], strides = [1, 1]} : vector<64x32xbf16> to vector<16x32xbf16>
    %cst_29 = arith.constant dense<0.000000e+00> : vector<16x32xf32>
    %51 = tpu.matmul %49, %50, %cst_29 {dimension_numbers = #tpu.dot_dimension_numbers<[1], [0], [0], [1], [0, 0, 1, 1], [], []>} : vector<16x16xbf16>, vector<16x32xbf16>, vector<16x32xf32> -> vector<16x32xf32>
    %52 = vector.extract_strided_slice %41 {offsets = [48, 0], sizes = [16, 16], strides = [1, 1]} : vector<64x16xbf16> to vector<16x16xbf16>
    %53 = vector.extract_strided_slice %42 {offsets = [48, 0], sizes = [16, 32], strides = [1, 1]} : vector<64x32xbf16> to vector<16x32xbf16>
    %cst_30 = arith.constant dense<0.000000e+00> : vector<16x32xf32>
    %54 = tpu.matmul %52, %53, %cst_30 {dimension_numbers = #tpu.dot_dimension_numbers<[1], [0], [0], [1], [0, 0, 1, 1], [], []>} : vector<16x16xbf16>, vector<16x32xbf16>, vector<16x32xf32> -> vector<16x32xf32>
    %55 = arith.addf %45, %48 : vector<16x32xf32>
    %56 = arith.addf %55, %51 : vector<16x32xf32>
    %57 = arith.addf %56, %54 : vector<16x32xf32>
    %58 = vector.broadcast %20 : vector<1x32xf32> to vector<16x32xf32>
    %59 = arith.addf %57, %58 : vector<16x32xf32>
    %60 = arith.addf %59, %0 : vector<16x32xf32>
    %c0_31 = arith.constant 0 : index
    %c0_32 = arith.constant 0 : index
    %c0_33 = arith.constant 0 : index
    %61 = vector.load %arg20[%c0_31, %c0_32, %c0_33] : memref<2x1x32xf32, #tpu.memory_space<vmem>>, vector<1x1x32xf32>
    %62 = vector.shape_cast %61 : vector<1x1x32xf32> to vector<1x32xf32>
    %c0_34 = arith.constant 0 : index
    %c0_35 = arith.constant 0 : index
    %c0_36 = arith.constant 0 : index
    %63 = vector.load %arg21[%c0_34, %c0_35, %c0_36] : memref<2x1x32xf32, #tpu.memory_space<vmem>>, vector<1x1x32xf32>
    %64 = vector.shape_cast %63 : vector<1x1x32xf32> to vector<1x32xf32>
    %cst_37 = arith.constant dense<0.000000e+00> : vector<16xf32>
    %65 = vector.multi_reduction <add>, %60, %cst_37 [1] : vector<16x32xf32> to vector<16xf32>
    %66 = vector.shape_cast %65 : vector<16xf32> to vector<16x1xf32>
    %cst_38 = arith.constant 3.200000e+01 : f32
    %67 = vector.broadcast %cst_38 : f32 to vector<16x1xf32>
    %68 = arith.divf %66, %67 : vector<16x1xf32>
    %69 = vector.broadcast %68 : vector<16x1xf32> to vector<16x32xf32>
    %70 = arith.subf %60, %69 : vector<16x32xf32>
    %71 = arith.mulf %70, %70 : vector<16x32xf32>
    %cst_39 = arith.constant dense<0.000000e+00> : vector<16xf32>
    %72 = vector.multi_reduction <add>, %71, %cst_39 [1] : vector<16x32xf32> to vector<16xf32>
    %73 = vector.shape_cast %72 : vector<16xf32> to vector<16x1xf32>
    %cst_40 = arith.constant 3.200000e+01 : f32
    %74 = vector.broadcast %cst_40 : f32 to vector<16x1xf32>
    %75 = arith.divf %73, %74 : vector<16x1xf32>
    %76 = vector.broadcast %68 : vector<16x1xf32> to vector<16x32xf32>
    %77 = arith.subf %60, %76 : vector<16x32xf32>
    %cst_41 = arith.constant 9.99999974E-6 : f32
    %78 = vector.broadcast %cst_41 : f32 to vector<16x1xf32>
    %79 = arith.addf %75, %78 : vector<16x1xf32>
    %80 = math.rsqrt %79 : vector<16x1xf32>
    %81 = vector.broadcast %80 : vector<16x1xf32> to vector<16x32xf32>
    %82 = arith.mulf %77, %81 : vector<16x32xf32>
    %83 = vector.broadcast %62 : vector<1x32xf32> to vector<16x32xf32>
    %84 = arith.mulf %82, %83 : vector<16x32xf32>
    %85 = vector.broadcast %64 : vector<1x32xf32> to vector<16x32xf32>
    %86 = arith.addf %84, %85 : vector<16x32xf32>
    %c0_42 = arith.constant 0 : index
    %c0_43 = arith.constant 0 : index
    %c0_44 = arith.constant 0 : index
    %87 = vector.load %arg12[%c0_42, %c0_43, %c0_44] : memref<2x32x64xbf16, #tpu.memory_space<vmem>>, vector<1x32x64xbf16>
    %88 = vector.shape_cast %87 : vector<1x32x64xbf16> to vector<32x64xbf16>
    %89 = arith.truncf %1 : vector<16x32xf32> to vector<16x32xbf16>
    %cst_45 = arith.constant dense<0.000000e+00> : vector<16x64xf32>
    %90 = tpu.matmul %89, %88, %cst_45 {dimension_numbers = #tpu.dot_dimension_numbers<[1], [0], [0], [1], [0, 0, 1, 1], [], []>} : vector<16x32xbf16>, vector<32x64xbf16>, vector<16x64xf32> -> vector<16x64xf32>
    %c0_46 = arith.constant 0 : index
    %c0_47 = arith.constant 0 : index
    %c0_48 = arith.constant 0 : index
    %91 = vector.load %arg13[%c0_46, %c0_47, %c0_48] : memref<2x1x64xf32, #tpu.memory_space<vmem>>, vector<1x1x64xf32>
    %92 = vector.shape_cast %91 : vector<1x1x64xf32> to vector<1x64xf32>
    %93 = vector.broadcast %92 : vector<1x64xf32> to vector<16x64xf32>
    %94 = arith.addf %90, %93 : vector<16x64xf32>
    %95 = vector.extract_strided_slice %94 {offsets = [0, 0], sizes = [16, 32], strides = [1, 1]} : vector<16x64xf32> to vector<16x32xf32>
    %96 = vector.extract_strided_slice %94 {offsets = [0, 32], sizes = [16, 32], strides = [1, 1]} : vector<16x64xf32> to vector<16x32xf32>
    %c0_49 = arith.constant 0 : index
    %c0_50 = arith.constant 0 : index
    %c0_51 = arith.constant 0 : index
    %97 = vector.load %arg10[%c0_49, %c0_50, %c0_51] : memref<2x32x32xbf16, #tpu.memory_space<vmem>>, vector<1x32x32xbf16>
    %98 = vector.shape_cast %97 : vector<1x32x32xbf16> to vector<32x32xbf16>
    %99 = arith.truncf %86 : vector<16x32xf32> to vector<16x32xbf16>
    %cst_52 = arith.constant dense<0.000000e+00> : vector<16x32xf32>
    %100 = tpu.matmul %99, %98, %cst_52 {dimension_numbers = #tpu.dot_dimension_numbers<[1], [0], [0], [1], [0, 0, 1, 1], [], []>} : vector<16x32xbf16>, vector<32x32xbf16>, vector<16x32xf32> -> vector<16x32xf32>
    %c0_53 = arith.constant 0 : index
    %c0_54 = arith.constant 0 : index
    %c0_55 = arith.constant 0 : index
    %101 = vector.load %arg11[%c0_53, %c0_54, %c0_55] : memref<2x1x32xf32, #tpu.memory_space<vmem>>, vector<1x1x32xf32>
    %102 = vector.shape_cast %101 : vector<1x1x32xf32> to vector<1x32xf32>
    %103 = vector.broadcast %102 : vector<1x32xf32> to vector<16x32xf32>
    %104 = arith.addf %100, %103 : vector<16x32xf32>
    %c0_56 = arith.constant 0 : index
    %c0_57 = arith.constant 0 : index
    %c0_58 = arith.constant 0 : index
    %105 = vector.load %arg14[%c0_56, %c0_57, %c0_58] : memref<2x32x32xbf16, #tpu.memory_space<vmem>>, vector<1x32x32xbf16>
    %106 = vector.shape_cast %105 : vector<1x32x32xbf16> to vector<32x32xbf16>
    %c0_59 = arith.constant 0 : index
    %c0_60 = arith.constant 0 : index
    %c0_61 = arith.constant 0 : index
    %107 = vector.load %arg15[%c0_59, %c0_60, %c0_61] : memref<2x1x32xf32, #tpu.memory_space<vmem>>, vector<1x1x32xf32>
    %108 = vector.shape_cast %107 : vector<1x1x32xf32> to vector<1x32xf32>
    %109 = tpu.concatenate %104, %104, %104, %104 in 0 : vector<16x32xf32>, vector<16x32xf32>, vector<16x32xf32>, vector<16x32xf32> -> vector<64x32xf32>
    %110 = arith.mulf %109, %4 : vector<64x32xf32>
    %111 = arith.truncf %110 : vector<64x32xf32> to vector<64x32xbf16>
    %112 = arith.truncf %95 : vector<16x32xf32> to vector<16x32xbf16>
    %cst_62 = arith.constant dense<0.000000e+00> : vector<64x16xf32>
    %113 = tpu.matmul %111, %112, %cst_62 {dimension_numbers = #tpu.dot_dimension_numbers<[1], [1], [0], [0], [0, 0, 1, 0], [], []>} : vector<64x32xbf16>, vector<16x32xbf16>, vector<64x16xf32> -> vector<64x16xf32>
    %114 = arith.addf %113, %3 : vector<64x16xf32>
    %cst_63 = arith.constant dense<0xFF800000> : vector<64xf32>
    %115 = vector.multi_reduction <maximumf>, %114, %cst_63 [1] : vector<64x16xf32> to vector<64xf32>
    %116 = vector.shape_cast %115 : vector<64xf32> to vector<64x1xf32>
    %117 = vector.broadcast %116 : vector<64x1xf32> to vector<64x16xf32>
    %118 = arith.subf %114, %117 : vector<64x16xf32>
    %119 = math.exp %118 : vector<64x16xf32>
    %cst_64 = arith.constant dense<0.000000e+00> : vector<64xf32>
    %120 = vector.multi_reduction <add>, %119, %cst_64 [1] : vector<64x16xf32> to vector<64xf32>
    %121 = vector.shape_cast %120 : vector<64xf32> to vector<64x1xf32>
    %122 = tpu.reciprocal %121 {approx = true} : vector<64x1xf32> -> vector<64x1xf32>
    %123 = vector.broadcast %122 : vector<64x1xf32> to vector<64x16xf32>
    %124 = arith.mulf %119, %123 : vector<64x16xf32>
    %125 = tpu.concatenate %96, %96, %96, %96 in 0 : vector<16x32xf32>, vector<16x32xf32>, vector<16x32xf32>, vector<16x32xf32> -> vector<64x32xf32>
    %126 = arith.mulf %125, %5 : vector<64x32xf32>
    %127 = arith.truncf %126 : vector<64x32xf32> to vector<64x32xbf16>
    %cst_65 = arith.constant dense<0.000000e+00> : vector<64x32xf32>
    %128 = tpu.matmul %127, %106, %cst_65 {dimension_numbers = #tpu.dot_dimension_numbers<[1], [0], [0], [1], [0, 0, 1, 1], [], []>} : vector<64x32xbf16>, vector<32x32xbf16>, vector<64x32xf32> -> vector<64x32xf32>
    %129 = arith.truncf %124 : vector<64x16xf32> to vector<64x16xbf16>
    %130 = arith.truncf %128 : vector<64x32xf32> to vector<64x32xbf16>
    %131 = vector.extract_strided_slice %129 {offsets = [0, 0], sizes = [16, 16], strides = [1, 1]} : vector<64x16xbf16> to vector<16x16xbf16>
    %132 = vector.extract_strided_slice %130 {offsets = [0, 0], sizes = [16, 32], strides = [1, 1]} : vector<64x32xbf16> to vector<16x32xbf16>
    %cst_66 = arith.constant dense<0.000000e+00> : vector<16x32xf32>
    %133 = tpu.matmul %131, %132, %cst_66 {dimension_numbers = #tpu.dot_dimension_numbers<[1], [0], [0], [1], [0, 0, 1, 1], [], []>} : vector<16x16xbf16>, vector<16x32xbf16>, vector<16x32xf32> -> vector<16x32xf32>
    %134 = vector.extract_strided_slice %129 {offsets = [16, 0], sizes = [16, 16], strides = [1, 1]} : vector<64x16xbf16> to vector<16x16xbf16>
    %135 = vector.extract_strided_slice %130 {offsets = [16, 0], sizes = [16, 32], strides = [1, 1]} : vector<64x32xbf16> to vector<16x32xbf16>
    %cst_67 = arith.constant dense<0.000000e+00> : vector<16x32xf32>
    %136 = tpu.matmul %134, %135, %cst_67 {dimension_numbers = #tpu.dot_dimension_numbers<[1], [0], [0], [1], [0, 0, 1, 1], [], []>} : vector<16x16xbf16>, vector<16x32xbf16>, vector<16x32xf32> -> vector<16x32xf32>
    %137 = vector.extract_strided_slice %129 {offsets = [32, 0], sizes = [16, 16], strides = [1, 1]} : vector<64x16xbf16> to vector<16x16xbf16>
    %138 = vector.extract_strided_slice %130 {offsets = [32, 0], sizes = [16, 32], strides = [1, 1]} : vector<64x32xbf16> to vector<16x32xbf16>
    %cst_68 = arith.constant dense<0.000000e+00> : vector<16x32xf32>
    %139 = tpu.matmul %137, %138, %cst_68 {dimension_numbers = #tpu.dot_dimension_numbers<[1], [0], [0], [1], [0, 0, 1, 1], [], []>} : vector<16x16xbf16>, vector<16x32xbf16>, vector<16x32xf32> -> vector<16x32xf32>
    %140 = vector.extract_strided_slice %129 {offsets = [48, 0], sizes = [16, 16], strides = [1, 1]} : vector<64x16xbf16> to vector<16x16xbf16>
    %141 = vector.extract_strided_slice %130 {offsets = [48, 0], sizes = [16, 32], strides = [1, 1]} : vector<64x32xbf16> to vector<16x32xbf16>
    %cst_69 = arith.constant dense<0.000000e+00> : vector<16x32xf32>
    %142 = tpu.matmul %140, %141, %cst_69 {dimension_numbers = #tpu.dot_dimension_numbers<[1], [0], [0], [1], [0, 0, 1, 1], [], []>} : vector<16x16xbf16>, vector<16x32xbf16>, vector<16x32xf32> -> vector<16x32xf32>
    %143 = arith.addf %133, %136 : vector<16x32xf32>
    %144 = arith.addf %143, %139 : vector<16x32xf32>
    %145 = arith.addf %144, %142 : vector<16x32xf32>
    %146 = vector.broadcast %108 : vector<1x32xf32> to vector<16x32xf32>
    %147 = arith.addf %145, %146 : vector<16x32xf32>
    %148 = arith.addf %147, %86 : vector<16x32xf32>
    %c0_70 = arith.constant 0 : index
    %c0_71 = arith.constant 0 : index
    %c0_72 = arith.constant 0 : index
    %149 = vector.load %arg20[%c0_70, %c0_71, %c0_72] : memref<2x1x32xf32, #tpu.memory_space<vmem>>, vector<1x1x32xf32>
    %150 = vector.shape_cast %149 : vector<1x1x32xf32> to vector<1x32xf32>
    %c0_73 = arith.constant 0 : index
    %c0_74 = arith.constant 0 : index
    %c0_75 = arith.constant 0 : index
    %151 = vector.load %arg21[%c0_73, %c0_74, %c0_75] : memref<2x1x32xf32, #tpu.memory_space<vmem>>, vector<1x1x32xf32>
    %152 = vector.shape_cast %151 : vector<1x1x32xf32> to vector<1x32xf32>
    %cst_76 = arith.constant dense<0.000000e+00> : vector<16xf32>
    %153 = vector.multi_reduction <add>, %148, %cst_76 [1] : vector<16x32xf32> to vector<16xf32>
    %154 = vector.shape_cast %153 : vector<16xf32> to vector<16x1xf32>
    %cst_77 = arith.constant 3.200000e+01 : f32
    %155 = vector.broadcast %cst_77 : f32 to vector<16x1xf32>
    %156 = arith.divf %154, %155 : vector<16x1xf32>
    %157 = vector.broadcast %156 : vector<16x1xf32> to vector<16x32xf32>
    %158 = arith.subf %148, %157 : vector<16x32xf32>
    %159 = arith.mulf %158, %158 : vector<16x32xf32>
    %cst_78 = arith.constant dense<0.000000e+00> : vector<16xf32>
    %160 = vector.multi_reduction <add>, %159, %cst_78 [1] : vector<16x32xf32> to vector<16xf32>
    %161 = vector.shape_cast %160 : vector<16xf32> to vector<16x1xf32>
    %cst_79 = arith.constant 3.200000e+01 : f32
    %162 = vector.broadcast %cst_79 : f32 to vector<16x1xf32>
    %163 = arith.divf %161, %162 : vector<16x1xf32>
    %164 = vector.broadcast %156 : vector<16x1xf32> to vector<16x32xf32>
    %165 = arith.subf %148, %164 : vector<16x32xf32>
    %cst_80 = arith.constant 9.99999974E-6 : f32
    %166 = vector.broadcast %cst_80 : f32 to vector<16x1xf32>
    %167 = arith.addf %163, %166 : vector<16x1xf32>
    %168 = math.rsqrt %167 : vector<16x1xf32>
    %169 = vector.broadcast %168 : vector<16x1xf32> to vector<16x32xf32>
    %170 = arith.mulf %165, %169 : vector<16x32xf32>
    %171 = vector.broadcast %150 : vector<1x32xf32> to vector<16x32xf32>
    %172 = arith.mulf %170, %171 : vector<16x32xf32>
    %173 = vector.broadcast %152 : vector<1x32xf32> to vector<16x32xf32>
    %174 = arith.addf %172, %173 : vector<16x32xf32>
    %c0_81 = arith.constant 0 : index
    %c0_82 = arith.constant 0 : index
    %c0_83 = arith.constant 0 : index
    %175 = vector.load %arg16[%c0_81, %c0_82, %c0_83] : memref<2x32x64xbf16, #tpu.memory_space<vmem>>, vector<1x32x64xbf16>
    %176 = vector.shape_cast %175 : vector<1x32x64xbf16> to vector<32x64xbf16>
    %177 = arith.truncf %174 : vector<16x32xf32> to vector<16x32xbf16>
    %cst_84 = arith.constant dense<0.000000e+00> : vector<16x64xf32>
    %178 = tpu.matmul %177, %176, %cst_84 {dimension_numbers = #tpu.dot_dimension_numbers<[1], [0], [0], [1], [0, 0, 1, 1], [], []>} : vector<16x32xbf16>, vector<32x64xbf16>, vector<16x64xf32> -> vector<16x64xf32>
    %c0_85 = arith.constant 0 : index
    %c0_86 = arith.constant 0 : index
    %c0_87 = arith.constant 0 : index
    %179 = vector.load %arg17[%c0_85, %c0_86, %c0_87] : memref<2x1x64xf32, #tpu.memory_space<vmem>>, vector<1x1x64xf32>
    %180 = vector.shape_cast %179 : vector<1x1x64xf32> to vector<1x64xf32>
    %181 = vector.broadcast %180 : vector<1x64xf32> to vector<16x64xf32>
    %182 = arith.addf %178, %181 : vector<16x64xf32>
    %cst_88 = arith.constant 0.000000e+00 : f32
    %183 = vector.broadcast %cst_88 : f32 to vector<16x64xf32>
    %184 = arith.maximumf %182, %183 : vector<16x64xf32>
    %c0_89 = arith.constant 0 : index
    %c0_90 = arith.constant 0 : index
    %c0_91 = arith.constant 0 : index
    %185 = vector.load %arg18[%c0_89, %c0_90, %c0_91] : memref<2x64x32xbf16, #tpu.memory_space<vmem>>, vector<1x64x32xbf16>
    %186 = vector.shape_cast %185 : vector<1x64x32xbf16> to vector<64x32xbf16>
    %187 = arith.truncf %184 : vector<16x64xf32> to vector<16x64xbf16>
    %cst_92 = arith.constant dense<0.000000e+00> : vector<16x32xf32>
    %188 = tpu.matmul %187, %186, %cst_92 {dimension_numbers = #tpu.dot_dimension_numbers<[1], [0], [0], [1], [0, 0, 1, 1], [], []>} : vector<16x64xbf16>, vector<64x32xbf16>, vector<16x32xf32> -> vector<16x32xf32>
    %c0_93 = arith.constant 0 : index
    %c0_94 = arith.constant 0 : index
    %c0_95 = arith.constant 0 : index
    %189 = vector.load %arg19[%c0_93, %c0_94, %c0_95] : memref<2x1x32xf32, #tpu.memory_space<vmem>>, vector<1x1x32xf32>
    %190 = vector.shape_cast %189 : vector<1x1x32xf32> to vector<1x32xf32>
    %191 = vector.broadcast %190 : vector<1x32xf32> to vector<16x32xf32>
    %192 = arith.addf %188, %191 : vector<16x32xf32>
    %193 = arith.addf %192, %174 : vector<16x32xf32>
    %c0_96 = arith.constant 0 : index
    %c0_97 = arith.constant 0 : index
    %c0_98 = arith.constant 0 : index
    %194 = vector.load %arg20[%c0_96, %c0_97, %c0_98] : memref<2x1x32xf32, #tpu.memory_space<vmem>>, vector<1x1x32xf32>
    %195 = vector.shape_cast %194 : vector<1x1x32xf32> to vector<1x32xf32>
    %c0_99 = arith.constant 0 : index
    %c0_100 = arith.constant 0 : index
    %c0_101 = arith.constant 0 : index
    %196 = vector.load %arg21[%c0_99, %c0_100, %c0_101] : memref<2x1x32xf32, #tpu.memory_space<vmem>>, vector<1x1x32xf32>
    %197 = vector.shape_cast %196 : vector<1x1x32xf32> to vector<1x32xf32>
    %cst_102 = arith.constant dense<0.000000e+00> : vector<16xf32>
    %198 = vector.multi_reduction <add>, %193, %cst_102 [1] : vector<16x32xf32> to vector<16xf32>
    %199 = vector.shape_cast %198 : vector<16xf32> to vector<16x1xf32>
    %cst_103 = arith.constant 3.200000e+01 : f32
    %200 = vector.broadcast %cst_103 : f32 to vector<16x1xf32>
    %201 = arith.divf %199, %200 : vector<16x1xf32>
    %202 = vector.broadcast %201 : vector<16x1xf32> to vector<16x32xf32>
    %203 = arith.subf %193, %202 : vector<16x32xf32>
    %204 = arith.mulf %203, %203 : vector<16x32xf32>
    %cst_104 = arith.constant dense<0.000000e+00> : vector<16xf32>
    %205 = vector.multi_reduction <add>, %204, %cst_104 [1] : vector<16x32xf32> to vector<16xf32>
    %206 = vector.shape_cast %205 : vector<16xf32> to vector<16x1xf32>
    %cst_105 = arith.constant 3.200000e+01 : f32
    %207 = vector.broadcast %cst_105 : f32 to vector<16x1xf32>
    %208 = arith.divf %206, %207 : vector<16x1xf32>
    %209 = vector.broadcast %201 : vector<16x1xf32> to vector<16x32xf32>
    %210 = arith.subf %193, %209 : vector<16x32xf32>
    %cst_106 = arith.constant 9.99999974E-6 : f32
    %211 = vector.broadcast %cst_106 : f32 to vector<16x1xf32>
    %212 = arith.addf %208, %211 : vector<16x1xf32>
    %213 = math.rsqrt %212 : vector<16x1xf32>
    %214 = vector.broadcast %213 : vector<16x1xf32> to vector<16x32xf32>
    %215 = arith.mulf %210, %214 : vector<16x32xf32>
    %216 = vector.broadcast %195 : vector<1x32xf32> to vector<16x32xf32>
    %217 = arith.mulf %215, %216 : vector<16x32xf32>
    %218 = vector.broadcast %197 : vector<1x32xf32> to vector<16x32xf32>
    %219 = arith.addf %217, %218 : vector<16x32xf32>
    %c1 = arith.constant 1 : index
    %c0_107 = arith.constant 0 : index
    %c0_108 = arith.constant 0 : index
    %220 = vector.load %arg6[%c1, %c0_107, %c0_108] : memref<2x32x96xbf16, #tpu.memory_space<vmem>>, vector<1x32x96xbf16>
    %221 = vector.shape_cast %220 : vector<1x32x96xbf16> to vector<32x96xbf16>
    %222 = arith.truncf %219 : vector<16x32xf32> to vector<16x32xbf16>
    %cst_109 = arith.constant dense<0.000000e+00> : vector<16x96xf32>
    %223 = tpu.matmul %222, %221, %cst_109 {dimension_numbers = #tpu.dot_dimension_numbers<[1], [0], [0], [1], [0, 0, 1, 1], [], []>} : vector<16x32xbf16>, vector<32x96xbf16>, vector<16x96xf32> -> vector<16x96xf32>
    %c1_110 = arith.constant 1 : index
    %c0_111 = arith.constant 0 : index
    %c0_112 = arith.constant 0 : index
    %224 = vector.load %arg7[%c1_110, %c0_111, %c0_112] : memref<2x1x96xf32, #tpu.memory_space<vmem>>, vector<1x1x96xf32>
    %225 = vector.shape_cast %224 : vector<1x1x96xf32> to vector<1x96xf32>
    %226 = vector.broadcast %225 : vector<1x96xf32> to vector<16x96xf32>
    %227 = arith.addf %223, %226 : vector<16x96xf32>
    %228 = vector.extract_strided_slice %227 {offsets = [0, 0], sizes = [16, 32], strides = [1, 1]} : vector<16x96xf32> to vector<16x32xf32>
    %229 = vector.extract_strided_slice %227 {offsets = [0, 32], sizes = [16, 32], strides = [1, 1]} : vector<16x96xf32> to vector<16x32xf32>
    %230 = vector.extract_strided_slice %227 {offsets = [0, 64], sizes = [16, 32], strides = [1, 1]} : vector<16x96xf32> to vector<16x32xf32>
    %c1_113 = arith.constant 1 : index
    %c0_114 = arith.constant 0 : index
    %c0_115 = arith.constant 0 : index
    %231 = vector.load %arg8[%c1_113, %c0_114, %c0_115] : memref<2x32x32xbf16, #tpu.memory_space<vmem>>, vector<1x32x32xbf16>
    %232 = vector.shape_cast %231 : vector<1x32x32xbf16> to vector<32x32xbf16>
    %c1_116 = arith.constant 1 : index
    %c0_117 = arith.constant 0 : index
    %c0_118 = arith.constant 0 : index
    %233 = vector.load %arg9[%c1_116, %c0_117, %c0_118] : memref<2x1x32xf32, #tpu.memory_space<vmem>>, vector<1x1x32xf32>
    %234 = vector.shape_cast %233 : vector<1x1x32xf32> to vector<1x32xf32>
    %235 = tpu.concatenate %228, %228, %228, %228 in 0 : vector<16x32xf32>, vector<16x32xf32>, vector<16x32xf32>, vector<16x32xf32> -> vector<64x32xf32>
    %236 = arith.mulf %235, %4 : vector<64x32xf32>
    %237 = arith.truncf %236 : vector<64x32xf32> to vector<64x32xbf16>
    %238 = arith.truncf %229 : vector<16x32xf32> to vector<16x32xbf16>
    %cst_119 = arith.constant dense<0.000000e+00> : vector<64x16xf32>
    %239 = tpu.matmul %237, %238, %cst_119 {dimension_numbers = #tpu.dot_dimension_numbers<[1], [1], [0], [0], [0, 0, 1, 0], [], []>} : vector<64x32xbf16>, vector<16x32xbf16>, vector<64x16xf32> -> vector<64x16xf32>
    %240 = arith.addf %239, %2 : vector<64x16xf32>
    %cst_120 = arith.constant dense<0xFF800000> : vector<64xf32>
    %241 = vector.multi_reduction <maximumf>, %240, %cst_120 [1] : vector<64x16xf32> to vector<64xf32>
    %242 = vector.shape_cast %241 : vector<64xf32> to vector<64x1xf32>
    %243 = vector.broadcast %242 : vector<64x1xf32> to vector<64x16xf32>
    %244 = arith.subf %240, %243 : vector<64x16xf32>
    %245 = math.exp %244 : vector<64x16xf32>
    %cst_121 = arith.constant dense<0.000000e+00> : vector<64xf32>
    %246 = vector.multi_reduction <add>, %245, %cst_121 [1] : vector<64x16xf32> to vector<64xf32>
    %247 = vector.shape_cast %246 : vector<64xf32> to vector<64x1xf32>
    %248 = tpu.reciprocal %247 {approx = true} : vector<64x1xf32> -> vector<64x1xf32>
    %249 = vector.broadcast %248 : vector<64x1xf32> to vector<64x16xf32>
    %250 = arith.mulf %245, %249 : vector<64x16xf32>
    %251 = tpu.concatenate %230, %230, %230, %230 in 0 : vector<16x32xf32>, vector<16x32xf32>, vector<16x32xf32>, vector<16x32xf32> -> vector<64x32xf32>
    %252 = arith.mulf %251, %4 : vector<64x32xf32>
    %253 = arith.truncf %252 : vector<64x32xf32> to vector<64x32xbf16>
    %cst_122 = arith.constant dense<0.000000e+00> : vector<64x32xf32>
    %254 = tpu.matmul %253, %232, %cst_122 {dimension_numbers = #tpu.dot_dimension_numbers<[1], [0], [0], [1], [0, 0, 1, 1], [], []>} : vector<64x32xbf16>, vector<32x32xbf16>, vector<64x32xf32> -> vector<64x32xf32>
    %255 = arith.truncf %250 : vector<64x16xf32> to vector<64x16xbf16>
    %256 = arith.truncf %254 : vector<64x32xf32> to vector<64x32xbf16>
    %257 = vector.extract_strided_slice %255 {offsets = [0, 0], sizes = [16, 16], strides = [1, 1]} : vector<64x16xbf16> to vector<16x16xbf16>
    %258 = vector.extract_strided_slice %256 {offsets = [0, 0], sizes = [16, 32], strides = [1, 1]} : vector<64x32xbf16> to vector<16x32xbf16>
    %cst_123 = arith.constant dense<0.000000e+00> : vector<16x32xf32>
    %259 = tpu.matmul %257, %258, %cst_123 {dimension_numbers = #tpu.dot_dimension_numbers<[1], [0], [0], [1], [0, 0, 1, 1], [], []>} : vector<16x16xbf16>, vector<16x32xbf16>, vector<16x32xf32> -> vector<16x32xf32>
    %260 = vector.extract_strided_slice %255 {offsets = [16, 0], sizes = [16, 16], strides = [1, 1]} : vector<64x16xbf16> to vector<16x16xbf16>
    %261 = vector.extract_strided_slice %256 {offsets = [16, 0], sizes = [16, 32], strides = [1, 1]} : vector<64x32xbf16> to vector<16x32xbf16>
    %cst_124 = arith.constant dense<0.000000e+00> : vector<16x32xf32>
    %262 = tpu.matmul %260, %261, %cst_124 {dimension_numbers = #tpu.dot_dimension_numbers<[1], [0], [0], [1], [0, 0, 1, 1], [], []>} : vector<16x16xbf16>, vector<16x32xbf16>, vector<16x32xf32> -> vector<16x32xf32>
    %263 = vector.extract_strided_slice %255 {offsets = [32, 0], sizes = [16, 16], strides = [1, 1]} : vector<64x16xbf16> to vector<16x16xbf16>
    %264 = vector.extract_strided_slice %256 {offsets = [32, 0], sizes = [16, 32], strides = [1, 1]} : vector<64x32xbf16> to vector<16x32xbf16>
    %cst_125 = arith.constant dense<0.000000e+00> : vector<16x32xf32>
    %265 = tpu.matmul %263, %264, %cst_125 {dimension_numbers = #tpu.dot_dimension_numbers<[1], [0], [0], [1], [0, 0, 1, 1], [], []>} : vector<16x16xbf16>, vector<16x32xbf16>, vector<16x32xf32> -> vector<16x32xf32>
    %266 = vector.extract_strided_slice %255 {offsets = [48, 0], sizes = [16, 16], strides = [1, 1]} : vector<64x16xbf16> to vector<16x16xbf16>
    %267 = vector.extract_strided_slice %256 {offsets = [48, 0], sizes = [16, 32], strides = [1, 1]} : vector<64x32xbf16> to vector<16x32xbf16>
    %cst_126 = arith.constant dense<0.000000e+00> : vector<16x32xf32>
    %268 = tpu.matmul %266, %267, %cst_126 {dimension_numbers = #tpu.dot_dimension_numbers<[1], [0], [0], [1], [0, 0, 1, 1], [], []>} : vector<16x16xbf16>, vector<16x32xbf16>, vector<16x32xf32> -> vector<16x32xf32>
    %269 = arith.addf %259, %262 : vector<16x32xf32>
    %270 = arith.addf %269, %265 : vector<16x32xf32>
    %271 = arith.addf %270, %268 : vector<16x32xf32>
    %272 = vector.broadcast %234 : vector<1x32xf32> to vector<16x32xf32>
    %273 = arith.addf %271, %272 : vector<16x32xf32>
    %274 = arith.addf %273, %219 : vector<16x32xf32>
    %c1_127 = arith.constant 1 : index
    %c0_128 = arith.constant 0 : index
    %c0_129 = arith.constant 0 : index
    %275 = vector.load %arg20[%c1_127, %c0_128, %c0_129] : memref<2x1x32xf32, #tpu.memory_space<vmem>>, vector<1x1x32xf32>
    %276 = vector.shape_cast %275 : vector<1x1x32xf32> to vector<1x32xf32>
    %c1_130 = arith.constant 1 : index
    %c0_131 = arith.constant 0 : index
    %c0_132 = arith.constant 0 : index
    %277 = vector.load %arg21[%c1_130, %c0_131, %c0_132] : memref<2x1x32xf32, #tpu.memory_space<vmem>>, vector<1x1x32xf32>
    %278 = vector.shape_cast %277 : vector<1x1x32xf32> to vector<1x32xf32>
    %cst_133 = arith.constant dense<0.000000e+00> : vector<16xf32>
    %279 = vector.multi_reduction <add>, %274, %cst_133 [1] : vector<16x32xf32> to vector<16xf32>
    %280 = vector.shape_cast %279 : vector<16xf32> to vector<16x1xf32>
    %cst_134 = arith.constant 3.200000e+01 : f32
    %281 = vector.broadcast %cst_134 : f32 to vector<16x1xf32>
    %282 = arith.divf %280, %281 : vector<16x1xf32>
    %283 = vector.broadcast %282 : vector<16x1xf32> to vector<16x32xf32>
    %284 = arith.subf %274, %283 : vector<16x32xf32>
    %285 = arith.mulf %284, %284 : vector<16x32xf32>
    %cst_135 = arith.constant dense<0.000000e+00> : vector<16xf32>
    %286 = vector.multi_reduction <add>, %285, %cst_135 [1] : vector<16x32xf32> to vector<16xf32>
    %287 = vector.shape_cast %286 : vector<16xf32> to vector<16x1xf32>
    %cst_136 = arith.constant 3.200000e+01 : f32
    %288 = vector.broadcast %cst_136 : f32 to vector<16x1xf32>
    %289 = arith.divf %287, %288 : vector<16x1xf32>
    %290 = vector.broadcast %282 : vector<16x1xf32> to vector<16x32xf32>
    %291 = arith.subf %274, %290 : vector<16x32xf32>
    %cst_137 = arith.constant 9.99999974E-6 : f32
    %292 = vector.broadcast %cst_137 : f32 to vector<16x1xf32>
    %293 = arith.addf %289, %292 : vector<16x1xf32>
    %294 = math.rsqrt %293 : vector<16x1xf32>
    %295 = vector.broadcast %294 : vector<16x1xf32> to vector<16x32xf32>
    %296 = arith.mulf %291, %295 : vector<16x32xf32>
    %297 = vector.broadcast %276 : vector<1x32xf32> to vector<16x32xf32>
    %298 = arith.mulf %296, %297 : vector<16x32xf32>
    %299 = vector.broadcast %278 : vector<1x32xf32> to vector<16x32xf32>
    %300 = arith.addf %298, %299 : vector<16x32xf32>
    %c1_138 = arith.constant 1 : index
    %c0_139 = arith.constant 0 : index
    %c0_140 = arith.constant 0 : index
    %301 = vector.load %arg12[%c1_138, %c0_139, %c0_140] : memref<2x32x64xbf16, #tpu.memory_space<vmem>>, vector<1x32x64xbf16>
    %302 = vector.shape_cast %301 : vector<1x32x64xbf16> to vector<32x64xbf16>
    %303 = arith.truncf %1 : vector<16x32xf32> to vector<16x32xbf16>
    %cst_141 = arith.constant dense<0.000000e+00> : vector<16x64xf32>
    %304 = tpu.matmul %303, %302, %cst_141 {dimension_numbers = #tpu.dot_dimension_numbers<[1], [0], [0], [1], [0, 0, 1, 1], [], []>} : vector<16x32xbf16>, vector<32x64xbf16>, vector<16x64xf32> -> vector<16x64xf32>
    %c1_142 = arith.constant 1 : index
    %c0_143 = arith.constant 0 : index
    %c0_144 = arith.constant 0 : index
    %305 = vector.load %arg13[%c1_142, %c0_143, %c0_144] : memref<2x1x64xf32, #tpu.memory_space<vmem>>, vector<1x1x64xf32>
    %306 = vector.shape_cast %305 : vector<1x1x64xf32> to vector<1x64xf32>
    %307 = vector.broadcast %306 : vector<1x64xf32> to vector<16x64xf32>
    %308 = arith.addf %304, %307 : vector<16x64xf32>
    %309 = vector.extract_strided_slice %308 {offsets = [0, 0], sizes = [16, 32], strides = [1, 1]} : vector<16x64xf32> to vector<16x32xf32>
    %310 = vector.extract_strided_slice %308 {offsets = [0, 32], sizes = [16, 32], strides = [1, 1]} : vector<16x64xf32> to vector<16x32xf32>
    %c1_145 = arith.constant 1 : index
    %c0_146 = arith.constant 0 : index
    %c0_147 = arith.constant 0 : index
    %311 = vector.load %arg10[%c1_145, %c0_146, %c0_147] : memref<2x32x32xbf16, #tpu.memory_space<vmem>>, vector<1x32x32xbf16>
    %312 = vector.shape_cast %311 : vector<1x32x32xbf16> to vector<32x32xbf16>
    %313 = arith.truncf %300 : vector<16x32xf32> to vector<16x32xbf16>
    %cst_148 = arith.constant dense<0.000000e+00> : vector<16x32xf32>
    %314 = tpu.matmul %313, %312, %cst_148 {dimension_numbers = #tpu.dot_dimension_numbers<[1], [0], [0], [1], [0, 0, 1, 1], [], []>} : vector<16x32xbf16>, vector<32x32xbf16>, vector<16x32xf32> -> vector<16x32xf32>
    %c1_149 = arith.constant 1 : index
    %c0_150 = arith.constant 0 : index
    %c0_151 = arith.constant 0 : index
    %315 = vector.load %arg11[%c1_149, %c0_150, %c0_151] : memref<2x1x32xf32, #tpu.memory_space<vmem>>, vector<1x1x32xf32>
    %316 = vector.shape_cast %315 : vector<1x1x32xf32> to vector<1x32xf32>
    %317 = vector.broadcast %316 : vector<1x32xf32> to vector<16x32xf32>
    %318 = arith.addf %314, %317 : vector<16x32xf32>
    %c1_152 = arith.constant 1 : index
    %c0_153 = arith.constant 0 : index
    %c0_154 = arith.constant 0 : index
    %319 = vector.load %arg14[%c1_152, %c0_153, %c0_154] : memref<2x32x32xbf16, #tpu.memory_space<vmem>>, vector<1x32x32xbf16>
    %320 = vector.shape_cast %319 : vector<1x32x32xbf16> to vector<32x32xbf16>
    %c1_155 = arith.constant 1 : index
    %c0_156 = arith.constant 0 : index
    %c0_157 = arith.constant 0 : index
    %321 = vector.load %arg15[%c1_155, %c0_156, %c0_157] : memref<2x1x32xf32, #tpu.memory_space<vmem>>, vector<1x1x32xf32>
    %322 = vector.shape_cast %321 : vector<1x1x32xf32> to vector<1x32xf32>
    %323 = tpu.concatenate %318, %318, %318, %318 in 0 : vector<16x32xf32>, vector<16x32xf32>, vector<16x32xf32>, vector<16x32xf32> -> vector<64x32xf32>
    %324 = arith.mulf %323, %4 : vector<64x32xf32>
    %325 = arith.truncf %324 : vector<64x32xf32> to vector<64x32xbf16>
    %326 = arith.truncf %309 : vector<16x32xf32> to vector<16x32xbf16>
    %cst_158 = arith.constant dense<0.000000e+00> : vector<64x16xf32>
    %327 = tpu.matmul %325, %326, %cst_158 {dimension_numbers = #tpu.dot_dimension_numbers<[1], [1], [0], [0], [0, 0, 1, 0], [], []>} : vector<64x32xbf16>, vector<16x32xbf16>, vector<64x16xf32> -> vector<64x16xf32>
    %328 = arith.addf %327, %3 : vector<64x16xf32>
    %cst_159 = arith.constant dense<0xFF800000> : vector<64xf32>
    %329 = vector.multi_reduction <maximumf>, %328, %cst_159 [1] : vector<64x16xf32> to vector<64xf32>
    %330 = vector.shape_cast %329 : vector<64xf32> to vector<64x1xf32>
    %331 = vector.broadcast %330 : vector<64x1xf32> to vector<64x16xf32>
    %332 = arith.subf %328, %331 : vector<64x16xf32>
    %333 = math.exp %332 : vector<64x16xf32>
    %cst_160 = arith.constant dense<0.000000e+00> : vector<64xf32>
    %334 = vector.multi_reduction <add>, %333, %cst_160 [1] : vector<64x16xf32> to vector<64xf32>
    %335 = vector.shape_cast %334 : vector<64xf32> to vector<64x1xf32>
    %336 = tpu.reciprocal %335 {approx = true} : vector<64x1xf32> -> vector<64x1xf32>
    %337 = vector.broadcast %336 : vector<64x1xf32> to vector<64x16xf32>
    %338 = arith.mulf %333, %337 : vector<64x16xf32>
    %339 = tpu.concatenate %310, %310, %310, %310 in 0 : vector<16x32xf32>, vector<16x32xf32>, vector<16x32xf32>, vector<16x32xf32> -> vector<64x32xf32>
    %340 = arith.mulf %339, %5 : vector<64x32xf32>
    %341 = arith.truncf %340 : vector<64x32xf32> to vector<64x32xbf16>
    %cst_161 = arith.constant dense<0.000000e+00> : vector<64x32xf32>
    %342 = tpu.matmul %341, %320, %cst_161 {dimension_numbers = #tpu.dot_dimension_numbers<[1], [0], [0], [1], [0, 0, 1, 1], [], []>} : vector<64x32xbf16>, vector<32x32xbf16>, vector<64x32xf32> -> vector<64x32xf32>
    %343 = arith.truncf %338 : vector<64x16xf32> to vector<64x16xbf16>
    %344 = arith.truncf %342 : vector<64x32xf32> to vector<64x32xbf16>
    %345 = vector.extract_strided_slice %343 {offsets = [0, 0], sizes = [16, 16], strides = [1, 1]} : vector<64x16xbf16> to vector<16x16xbf16>
    %346 = vector.extract_strided_slice %344 {offsets = [0, 0], sizes = [16, 32], strides = [1, 1]} : vector<64x32xbf16> to vector<16x32xbf16>
    %cst_162 = arith.constant dense<0.000000e+00> : vector<16x32xf32>
    %347 = tpu.matmul %345, %346, %cst_162 {dimension_numbers = #tpu.dot_dimension_numbers<[1], [0], [0], [1], [0, 0, 1, 1], [], []>} : vector<16x16xbf16>, vector<16x32xbf16>, vector<16x32xf32> -> vector<16x32xf32>
    %348 = vector.extract_strided_slice %343 {offsets = [16, 0], sizes = [16, 16], strides = [1, 1]} : vector<64x16xbf16> to vector<16x16xbf16>
    %349 = vector.extract_strided_slice %344 {offsets = [16, 0], sizes = [16, 32], strides = [1, 1]} : vector<64x32xbf16> to vector<16x32xbf16>
    %cst_163 = arith.constant dense<0.000000e+00> : vector<16x32xf32>
    %350 = tpu.matmul %348, %349, %cst_163 {dimension_numbers = #tpu.dot_dimension_numbers<[1], [0], [0], [1], [0, 0, 1, 1], [], []>} : vector<16x16xbf16>, vector<16x32xbf16>, vector<16x32xf32> -> vector<16x32xf32>
    %351 = vector.extract_strided_slice %343 {offsets = [32, 0], sizes = [16, 16], strides = [1, 1]} : vector<64x16xbf16> to vector<16x16xbf16>
    %352 = vector.extract_strided_slice %344 {offsets = [32, 0], sizes = [16, 32], strides = [1, 1]} : vector<64x32xbf16> to vector<16x32xbf16>
    %cst_164 = arith.constant dense<0.000000e+00> : vector<16x32xf32>
    %353 = tpu.matmul %351, %352, %cst_164 {dimension_numbers = #tpu.dot_dimension_numbers<[1], [0], [0], [1], [0, 0, 1, 1], [], []>} : vector<16x16xbf16>, vector<16x32xbf16>, vector<16x32xf32> -> vector<16x32xf32>
    %354 = vector.extract_strided_slice %343 {offsets = [48, 0], sizes = [16, 16], strides = [1, 1]} : vector<64x16xbf16> to vector<16x16xbf16>
    %355 = vector.extract_strided_slice %344 {offsets = [48, 0], sizes = [16, 32], strides = [1, 1]} : vector<64x32xbf16> to vector<16x32xbf16>
    %cst_165 = arith.constant dense<0.000000e+00> : vector<16x32xf32>
    %356 = tpu.matmul %354, %355, %cst_165 {dimension_numbers = #tpu.dot_dimension_numbers<[1], [0], [0], [1], [0, 0, 1, 1], [], []>} : vector<16x16xbf16>, vector<16x32xbf16>, vector<16x32xf32> -> vector<16x32xf32>
    %357 = arith.addf %347, %350 : vector<16x32xf32>
    %358 = arith.addf %357, %353 : vector<16x32xf32>
    %359 = arith.addf %358, %356 : vector<16x32xf32>
    %360 = vector.broadcast %322 : vector<1x32xf32> to vector<16x32xf32>
    %361 = arith.addf %359, %360 : vector<16x32xf32>
    %362 = arith.addf %361, %300 : vector<16x32xf32>
    %c1_166 = arith.constant 1 : index
    %c0_167 = arith.constant 0 : index
    %c0_168 = arith.constant 0 : index
    %363 = vector.load %arg20[%c1_166, %c0_167, %c0_168] : memref<2x1x32xf32, #tpu.memory_space<vmem>>, vector<1x1x32xf32>
    %364 = vector.shape_cast %363 : vector<1x1x32xf32> to vector<1x32xf32>
    %c1_169 = arith.constant 1 : index
    %c0_170 = arith.constant 0 : index
    %c0_171 = arith.constant 0 : index
    %365 = vector.load %arg21[%c1_169, %c0_170, %c0_171] : memref<2x1x32xf32, #tpu.memory_space<vmem>>, vector<1x1x32xf32>
    %366 = vector.shape_cast %365 : vector<1x1x32xf32> to vector<1x32xf32>
    %cst_172 = arith.constant dense<0.000000e+00> : vector<16xf32>
    %367 = vector.multi_reduction <add>, %362, %cst_172 [1] : vector<16x32xf32> to vector<16xf32>
    %368 = vector.shape_cast %367 : vector<16xf32> to vector<16x1xf32>
    %cst_173 = arith.constant 3.200000e+01 : f32
    %369 = vector.broadcast %cst_173 : f32 to vector<16x1xf32>
    %370 = arith.divf %368, %369 : vector<16x1xf32>
    %371 = vector.broadcast %370 : vector<16x1xf32> to vector<16x32xf32>
    %372 = arith.subf %362, %371 : vector<16x32xf32>
    %373 = arith.mulf %372, %372 : vector<16x32xf32>
    %cst_174 = arith.constant dense<0.000000e+00> : vector<16xf32>
    %374 = vector.multi_reduction <add>, %373, %cst_174 [1] : vector<16x32xf32> to vector<16xf32>
    %375 = vector.shape_cast %374 : vector<16xf32> to vector<16x1xf32>
    %cst_175 = arith.constant 3.200000e+01 : f32
    %376 = vector.broadcast %cst_175 : f32 to vector<16x1xf32>
    %377 = arith.divf %375, %376 : vector<16x1xf32>
    %378 = vector.broadcast %370 : vector<16x1xf32> to vector<16x32xf32>
    %379 = arith.subf %362, %378 : vector<16x32xf32>
    %cst_176 = arith.constant 9.99999974E-6 : f32
    %380 = vector.broadcast %cst_176 : f32 to vector<16x1xf32>
    %381 = arith.addf %377, %380 : vector<16x1xf32>
    %382 = math.rsqrt %381 : vector<16x1xf32>
    %383 = vector.broadcast %382 : vector<16x1xf32> to vector<16x32xf32>
    %384 = arith.mulf %379, %383 : vector<16x32xf32>
    %385 = vector.broadcast %364 : vector<1x32xf32> to vector<16x32xf32>
    %386 = arith.mulf %384, %385 : vector<16x32xf32>
    %387 = vector.broadcast %366 : vector<1x32xf32> to vector<16x32xf32>
    %388 = arith.addf %386, %387 : vector<16x32xf32>
    %c1_177 = arith.constant 1 : index
    %c0_178 = arith.constant 0 : index
    %c0_179 = arith.constant 0 : index
    %389 = vector.load %arg16[%c1_177, %c0_178, %c0_179] : memref<2x32x64xbf16, #tpu.memory_space<vmem>>, vector<1x32x64xbf16>
    %390 = vector.shape_cast %389 : vector<1x32x64xbf16> to vector<32x64xbf16>
    %391 = arith.truncf %388 : vector<16x32xf32> to vector<16x32xbf16>
    %cst_180 = arith.constant dense<0.000000e+00> : vector<16x64xf32>
    %392 = tpu.matmul %391, %390, %cst_180 {dimension_numbers = #tpu.dot_dimension_numbers<[1], [0], [0], [1], [0, 0, 1, 1], [], []>} : vector<16x32xbf16>, vector<32x64xbf16>, vector<16x64xf32> -> vector<16x64xf32>
    %c1_181 = arith.constant 1 : index
    %c0_182 = arith.constant 0 : index
    %c0_183 = arith.constant 0 : index
    %393 = vector.load %arg17[%c1_181, %c0_182, %c0_183] : memref<2x1x64xf32, #tpu.memory_space<vmem>>, vector<1x1x64xf32>
    %394 = vector.shape_cast %393 : vector<1x1x64xf32> to vector<1x64xf32>
    %395 = vector.broadcast %394 : vector<1x64xf32> to vector<16x64xf32>
    %396 = arith.addf %392, %395 : vector<16x64xf32>
    %cst_184 = arith.constant 0.000000e+00 : f32
    %397 = vector.broadcast %cst_184 : f32 to vector<16x64xf32>
    %398 = arith.maximumf %396, %397 : vector<16x64xf32>
    %c1_185 = arith.constant 1 : index
    %c0_186 = arith.constant 0 : index
    %c0_187 = arith.constant 0 : index
    %399 = vector.load %arg18[%c1_185, %c0_186, %c0_187] : memref<2x64x32xbf16, #tpu.memory_space<vmem>>, vector<1x64x32xbf16>
    %400 = vector.shape_cast %399 : vector<1x64x32xbf16> to vector<64x32xbf16>
    %401 = arith.truncf %398 : vector<16x64xf32> to vector<16x64xbf16>
    %cst_188 = arith.constant dense<0.000000e+00> : vector<16x32xf32>
    %402 = tpu.matmul %401, %400, %cst_188 {dimension_numbers = #tpu.dot_dimension_numbers<[1], [0], [0], [1], [0, 0, 1, 1], [], []>} : vector<16x64xbf16>, vector<64x32xbf16>, vector<16x32xf32> -> vector<16x32xf32>
    %c1_189 = arith.constant 1 : index
    %c0_190 = arith.constant 0 : index
    %c0_191 = arith.constant 0 : index
    %403 = vector.load %arg19[%c1_189, %c0_190, %c0_191] : memref<2x1x32xf32, #tpu.memory_space<vmem>>, vector<1x1x32xf32>
    %404 = vector.shape_cast %403 : vector<1x1x32xf32> to vector<1x32xf32>
    %405 = vector.broadcast %404 : vector<1x32xf32> to vector<16x32xf32>
    %406 = arith.addf %402, %405 : vector<16x32xf32>
    %407 = arith.addf %406, %388 : vector<16x32xf32>
    %c1_192 = arith.constant 1 : index
    %c0_193 = arith.constant 0 : index
    %c0_194 = arith.constant 0 : index
    %408 = vector.load %arg20[%c1_192, %c0_193, %c0_194] : memref<2x1x32xf32, #tpu.memory_space<vmem>>, vector<1x1x32xf32>
    %409 = vector.shape_cast %408 : vector<1x1x32xf32> to vector<1x32xf32>
    %c1_195 = arith.constant 1 : index
    %c0_196 = arith.constant 0 : index
    %c0_197 = arith.constant 0 : index
    %410 = vector.load %arg21[%c1_195, %c0_196, %c0_197] : memref<2x1x32xf32, #tpu.memory_space<vmem>>, vector<1x1x32xf32>
    %411 = vector.shape_cast %410 : vector<1x1x32xf32> to vector<1x32xf32>
    %cst_198 = arith.constant dense<0.000000e+00> : vector<16xf32>
    %412 = vector.multi_reduction <add>, %407, %cst_198 [1] : vector<16x32xf32> to vector<16xf32>
    %413 = vector.shape_cast %412 : vector<16xf32> to vector<16x1xf32>
    %cst_199 = arith.constant 3.200000e+01 : f32
    %414 = vector.broadcast %cst_199 : f32 to vector<16x1xf32>
    %415 = arith.divf %413, %414 : vector<16x1xf32>
    %416 = vector.broadcast %415 : vector<16x1xf32> to vector<16x32xf32>
    %417 = arith.subf %407, %416 : vector<16x32xf32>
    %418 = arith.mulf %417, %417 : vector<16x32xf32>
    %cst_200 = arith.constant dense<0.000000e+00> : vector<16xf32>
    %419 = vector.multi_reduction <add>, %418, %cst_200 [1] : vector<16x32xf32> to vector<16xf32>
    %420 = vector.shape_cast %419 : vector<16xf32> to vector<16x1xf32>
    %cst_201 = arith.constant 3.200000e+01 : f32
    %421 = vector.broadcast %cst_201 : f32 to vector<16x1xf32>
    %422 = arith.divf %420, %421 : vector<16x1xf32>
    %423 = vector.broadcast %415 : vector<16x1xf32> to vector<16x32xf32>
    %424 = arith.subf %407, %423 : vector<16x32xf32>
    %cst_202 = arith.constant 9.99999974E-6 : f32
    %425 = vector.broadcast %cst_202 : f32 to vector<16x1xf32>
    %426 = arith.addf %422, %425 : vector<16x1xf32>
    %427 = math.rsqrt %426 : vector<16x1xf32>
    %428 = vector.broadcast %427 : vector<16x1xf32> to vector<16x32xf32>
    %429 = arith.mulf %424, %428 : vector<16x32xf32>
    %430 = vector.broadcast %409 : vector<1x32xf32> to vector<16x32xf32>
    %431 = arith.mulf %429, %430 : vector<16x32xf32>
    %432 = vector.broadcast %411 : vector<1x32xf32> to vector<16x32xf32>
    %433 = arith.addf %431, %432 : vector<16x32xf32>
    %c0_203 = arith.constant 0 : index
    %c0_204 = arith.constant 0 : index
    %434 = vector.load %arg22[%c0_203, %c0_204] : memref<16x32xf32, #tpu.memory_space<vmem>>, vector<16x32xf32>
    tpu.vector_store %arg22[%c0_203, %c0_204], %433 {strides = array<i32>} : memref<16x32xf32, #tpu.memory_space<vmem>>, vector<16x32xf32>,
    return
  }
}

</mosaic_0001>

<llo_original>
// kernel: eq.43
$region0: #{eq.43}
  %s0 = inlined_call_operand.vmem [shape: s32[4,16], index: 0, kind: input, shape index: {}]
  %s1 = inlined_call_operand.vmem [shape: s32[64], index: 1, kind: output, shape index: {}]
  $region1: #{eq.43} parent=0
    #allocation0 [shape = 'u8[4096]{0}', space=vmem, size = 0x1000, scoped, tag = 'scoped mem for output reshape']
    #allocation1 [shape = 'u8[4096]{0}', space=vmem, size = 0x1000, scoped, tag = 'scoped mem for input reshape']
    %s3 = sshll.u32 1, 4
    %s4 = ssub.s32 %s3, 1
    %v5 = vld [vmem:[%s0] sm:%s4]
    %6 = vst [vmem:[#allocation1] sm:%s4] %v5
    %v7 = vld [vmem:[#allocation1] sm:$0x1]
    %vm8 = vcmask 130048
    %9 = vst.msk [vmem:[#allocation0] sm:$0x1] %vm8, %v7
    %s10 = scalar_lea.vmem [#allocation1], 3
    %v11 = vld [vmem:[%s10] sm:$0x1]
    %12 = vrot.lane.b32.xlu0 %v11, 48
    %v13 = vpop.permute.xlu0 %12
    %vm14 = vcmask 523648
    %15 = vst.msk [vmem:[#allocation0] sm:$0x1] %vm14, %v13
    %s16 = scalar_lea.vmem [#allocation1], 2
    %v17 = vld [vmem:[%s16] sm:$0x1]
    %18 = vrot.lane.b32.xlu0 %v17, 32
    %v19 = vpop.permute.xlu0 %18
    %vm20 = vcmask 392448
    %21 = vst.msk [vmem:[#allocation0] sm:$0x1] %vm20, %v19
    %s22 = scalar_lea.vmem [#allocation1], 1
    %v23 = vld [vmem:[%s22] sm:$0x1]
    %24 = vrot.lane.b32.xlu0 %v23, 16
    %v25 = vpop.permute.xlu0 %24
    %vm26 = vcmask 261248
    %27 = vst.msk [vmem:[#allocation0] sm:$0x1] %vm26, %v25
    %s29 = sshll.u32 1, 1
    %s30 = ssub.s32 %s29, 1
    %v32 = vld [vmem:[#allocation0] sm:%s30]
    %s33 = sshll.u32 1, 1
    %s34 = ssub.s32 %s33, 1
    %35 = vst [vmem:[%s1] sm:%s34] %v32

// kernel: tile.28
$region0: #{tile.28}
  #allocation0 [shape = 's32[1]{0}', space=sflag, size = 0x4, scoped, tag = 'scoped memory for tile.28']
  %s0 = inlined_call_operand.vmem [shape: f32[8,8], index: 0, kind: input, shape index: {}]
  %s1 = inlined_call_operand.vmem [shape: f32[2,8,2,8], index: 1, kind: output, shape index: {}]
  // Predicated region
  $region2: #{tile.28} parent=0 // pred_check
    _
  $region3: #{tile.28} parent=0 // pred_check_branch
    %3 = sbr.rel (0) target = $region5
  $region4: #{tile.28} parent=0 // pred_region
    _
  $region5: #{tile.28} parent=0 // pred_fallthru
    _
  %v4 = vld [vmem:[%s0] ss:$0 sm:$0xff]
  %5 = vst [vmem:[%s1] sm:$0x3] %v4
  %s6 = scalar_lea.vmem %s1, 16
  %7 = vst [vmem:[%s6] sm:$0x3] %v4
  %s8 = scalar_lea.vmem %s0, 1
  %v9 = vld [vmem:[%s8] ss:$0 sm:$0xff]
  %s10 = scalar_lea.vmem %s1, 2
  %11 = vst [vmem:[%s10] sm:$0x3] %v9
  %s12 = scalar_lea.vmem %s1, 18
  %13 = vst [vmem:[%s12] sm:$0x3] %v9
  %s14 = scalar_lea.vmem %s0, 2
  %v15 = vld [vmem:[%s14] ss:$0 sm:$0xff]
  %s16 = scalar_lea.vmem %s1, 4
  %17 = vst [vmem:[%s16] sm:$0x3] %v15
  %s18 = scalar_lea.vmem %s1, 20
  %19 = vst [vmem:[%s18] sm:$0x3] %v15
  %s20 = scalar_lea.vmem %s0, 3
  %v21 = vld [vmem:[%s20] ss:$0 sm:$0xff]
  %s22 = scalar_lea.vmem %s1, 6
  %23 = vst [vmem:[%s22] sm:$0x3] %v21
  %s24 = scalar_lea.vmem %s1, 22
  %25 = vst [vmem:[%s24] sm:$0x3] %v21
  %s26 = scalar_lea.vmem %s0, 4
  %v27 = vld [vmem:[%s26] ss:$0 sm:$0xff]
  %s28 = scalar_lea.vmem %s1, 8
  %29 = vst [vmem:[%s28] sm:$0x3] %v27
  %s30 = scalar_lea.vmem %s1, 24
  %31 = vst [vmem:[%s30] sm:$0x3] %v27
  %s32 = scalar_lea.vmem %s0, 5
  %v33 = vld [vmem:[%s32] ss:$0 sm:$0xff]
  %s34 = scalar_lea.vmem %s1, 10
  %35 = vst [vmem:[%s34] sm:$0x3] %v33
  %s36 = scalar_lea.vmem %s1, 26
  %37 = vst [vmem:[%s36] sm:$0x3] %v33
  %s38 = scalar_lea.vmem %s0, 6
  %v39 = vld [vmem:[%s38] ss:$0 sm:$0xff]
  %s40 = scalar_lea.vmem %s1, 12
  %41 = vst [vmem:[%s40] sm:$0x3] %v39
  %s42 = scalar_lea.vmem %s1, 28
  %43 = vst [vmem:[%s42] sm:$0x3] %v39
  %s44 = scalar_lea.vmem %s0, 7
  %v45 = vld [vmem:[%s44] ss:$0 sm:$0xff]
  %s46 = scalar_lea.vmem %s1, 14
  %47 = vst [vmem:[%s46] sm:$0x3] %v45
  %s48 = scalar_lea.vmem %s1, 30
  %49 = vst [vmem:[%s48] sm:$0x3] %v45

// kernel: decoder_forward.1
$region0: #{decoder_forward.1}
  #allocation0 [shape = 'u32[]', space=smem, size = 0x4, offset = 0x4, fixed_abs, tag = 'smem constant byte address 0x4 - core index']
  #allocation1 [shape = 'u32[144,128]{1,0:T(1,128)}', space=vmem, size = 0x12000, scoped, tag = 'internal scratch']
  %s0 = inlined_call_operand.vmem [shape: f32[16,32], index: 0, kind: input, shape index: {}]
  %s1 = inlined_call_operand.vmem [shape: f32[16,32], index: 1, kind: input, shape index: {}]
  %s2 = inlined_call_operand.vmem [shape: f32[64,16], index: 2, kind: input, shape index: {}]
  %s3 = inlined_call_operand.vmem [shape: f32[64,16], index: 3, kind: input, shape index: {}]
  %s4 = inlined_call_operand.vmem [shape: f32[64,32], index: 4, kind: input, shape index: {}, may-alias: {4,5}]
  %s5 = inlined_call_operand.vmem [shape: f32[64,32], index: 5, kind: input, shape index: {}, may-alias: {4,5}]
  %s6 = inlined_call_operand.vmem [shape: bf16[2,32,96], index: 6, kind: input, shape index: {}]
  %s7 = inlined_call_operand.vmem [shape: f32[2,1,96], index: 7, kind: input, shape index: {}]
  %s8 = inlined_call_operand.vmem [shape: bf16[2,32,32], index: 8, kind: input, shape index: {}]
  %s9 = inlined_call_operand.vmem [shape: f32[2,1,32], index: 9, kind: input, shape index: {}]
  %s10 = inlined_call_operand.vmem [shape: bf16[2,32,32], index: 10, kind: input, shape index: {}]
  %s11 = inlined_call_operand.vmem [shape: f32[2,1,32], index: 11, kind: input, shape index: {}]
  %s12 = inlined_call_operand.vmem [shape: bf16[2,32,64], index: 12, kind: input, shape index: {}]
  %s13 = inlined_call_operand.vmem [shape: f32[2,1,64], index: 13, kind: input, shape index: {}]
  %s14 = inlined_call_operand.vmem [shape: bf16[2,32,32], index: 14, kind: input, shape index: {}]
  %s15 = inlined_call_operand.vmem [shape: f32[2,1,32], index: 15, kind: input, shape index: {}]
  %s16 = inlined_call_operand.vmem [shape: bf16[2,32,64], index: 16, kind: input, shape index: {}]
  %s17 = inlined_call_operand.vmem [shape: f32[2,1,64], index: 17, kind: input, shape index: {}]
  %s18 = inlined_call_operand.vmem [shape: bf16[2,64,32], index: 18, kind: input, shape index: {}]
  %s19 = inlined_call_operand.vmem [shape: f32[2,1,32], index: 19, kind: input, shape index: {}]
  %s20 = inlined_call_operand.vmem [shape: f32[2,1,32], index: 20, kind: input, shape index: {}]
  %s21 = inlined_call_operand.vmem [shape: f32[2,1,32], index: 21, kind: input, shape index: {}]
  %s22 = inlined_call_operand.hbm [shape: f32[16,32], index: 22, kind: output, shape index: {}]
  %s23 = sld [smem:[#allocation0]]
  $region98: #{decoder_forward.1} parent=0
    _
  %s25 = ssub.s32 1, %s23
  %s26 = scalar_select 0, %s25, %s23
  $region1: #{decoder_forward.1} parent=0
    #allocation2 [shape = 'u8[8192]{0}', space=vmem, size = 0x2000, scoped, tag = 'output window, operand 0, single buffered']
    #allocation3 [shape = 's32[1]{0}', space=sflag, size = 0x4, scoped, tag = 'scoped memory for decoder_forward.1']
    %27 = vsyncpa [#allocation3], 0
    // Predicated region
    $region2: #{decoder_forward.1} parent=1 // pred_check
      _
    $region3: #{decoder_forward.1} parent=1 // pred_check_branch
      %29 = sbr.rel (0) target = $region5
    $region4: #{decoder_forward.1} parent=1 // pred_region
      _
    $region5: #{decoder_forward.1} parent=1 // pred_fallthru
      _
    // Predicated region
    $region6: #{decoder_forward.1} parent=1 // pred_check
      _
    $region7: #{decoder_forward.1} parent=1 // pred_check_branch
      %31 = sbr.rel (0) target = $region9
    $region8: #{decoder_forward.1} parent=1 // pred_region
      _
    $region9: #{decoder_forward.1} parent=1 // pred_fallthru
      _
    // Predicated region
    $region10: #{decoder_forward.1} parent=1 // pred_check
      _
    $region11: #{decoder_forward.1} parent=1 // pred_check_branch
      %33 = sbr.rel (0) target = $region13
    $region12: #{decoder_forward.1} parent=1 // pred_region
      _
    $region13: #{decoder_forward.1} parent=1 // pred_fallthru
      _
    // Predicated region
    $region14: #{decoder_forward.1} parent=1 // pred_check
      _
    $region15: #{decoder_forward.1} parent=1 // pred_check_branch
      %35 = sbr.rel (0) target = $region17
    $region16: #{decoder_forward.1} parent=1 // pred_region
      _
    $region17: #{decoder_forward.1} parent=1 // pred_fallthru
      _
    // Predicated region
    $region18: #{decoder_forward.1} parent=1 // pred_check
      _
    $region19: #{decoder_forward.1} parent=1 // pred_check_branch
      %37 = sbr.rel (0) target = $region21
    $region20: #{decoder_forward.1} parent=1 // pred_region
      _
    $region21: #{decoder_forward.1} parent=1 // pred_fallthru
      _
    // Predicated region
    $region22: #{decoder_forward.1} parent=1 // pred_check
      _
    $region23: #{decoder_forward.1} parent=1 // pred_check_branch
      %39 = sbr.rel (0) target = $region25
    $region24: #{decoder_forward.1} parent=1 // pred_region
      _
    $region25: #{decoder_forward.1} parent=1 // pred_fallthru
      _
    // Predicated region
    $region26: #{decoder_forward.1} parent=1 // pred_check
      _
    $region27: #{decoder_forward.1} parent=1 // pred_check_branch
      %41 = sbr.rel (0) target = $region29
    $region28: #{decoder_forward.1} parent=1 // pred_region
      _
    $region29: #{decoder_forward.1} parent=1 // pred_fallthru
      _
    // Predicated region
    $region30: #{decoder_forward.1} parent=1 // pred_check
      _
    $region31: #{decoder_forward.1} parent=1 // pred_check_branch
      %43 = sbr.rel (0) target = $region33
    $region32: #{decoder_forward.1} parent=1 // pred_region
      _
    $region33: #{decoder_forward.1} parent=1 // pred_fallthru
      _
    // Predicated region
    $region34: #{decoder_forward.1} parent=1 // pred_check
      _
    $region35: #{decoder_forward.1} parent=1 // pred_check_branch
      %45 = sbr.rel (0) target = $region37
    $region36: #{decoder_forward.1} parent=1 // pred_region
      _
    $region37: #{decoder_forward.1} parent=1 // pred_fallthru
      _
    // Predicated region
    $region38: #{decoder_forward.1} parent=1 // pred_check
      _
    $region39: #{decoder_forward.1} parent=1 // pred_check_branch
      %47 = sbr.rel (0) target = $region41
    $region40: #{decoder_forward.1} parent=1 // pred_region
      _
    $region41: #{decoder_forward.1} parent=1 // pred_fallthru
      _
    // Predicated region
    $region42: #{decoder_forward.1} parent=1 // pred_check
      _
    $region43: #{decoder_forward.1} parent=1 // pred_check_branch
      %49 = sbr.rel (0) target = $region45
    $region44: #{decoder_forward.1} parent=1 // pred_region
      _
    $region45: #{decoder_forward.1} parent=1 // pred_fallthru
      _
    // Predicated region
    $region46: #{decoder_forward.1} parent=1 // pred_check
      _
    $region47: #{decoder_forward.1} parent=1 // pred_check_branch
      %51 = sbr.rel (0) target = $region49
    $region48: #{decoder_forward.1} parent=1 // pred_region
      _
    $region49: #{decoder_forward.1} parent=1 // pred_fallthru
      _
    // Predicated region
    $region50: #{decoder_forward.1} parent=1 // pred_check
      _
    $region51: #{decoder_forward.1} parent=1 // pred_check_branch
      %53 = sbr.rel (0) target = $region53
    $region52: #{decoder_forward.1} parent=1 // pred_region
      _
    $region53: #{decoder_forward.1} parent=1 // pred_fallthru
      _
    // Predicated region
    $region54: #{decoder_forward.1} parent=1 // pred_check
      _
    $region55: #{decoder_forward.1} parent=1 // pred_check_branch
      %55 = sbr.rel (0) target = $region57
    $region56: #{decoder_forward.1} parent=1 // pred_region
      _
    $region57: #{decoder_forward.1} parent=1 // pred_fallthru
      _
    // Predicated region
    $region58: #{decoder_forward.1} parent=1 // pred_check
      _
    $region59: #{decoder_forward.1} parent=1 // pred_check_branch
      %57 = sbr.rel (0) target = $region61
    $region60: #{decoder_forward.1} parent=1 // pred_region
      _
    $region61: #{decoder_forward.1} parent=1 // pred_fallthru
      _
    // Predicated region
    $region62: #{decoder_forward.1} parent=1 // pred_check
      _
    $region63: #{decoder_forward.1} parent=1 // pred_check_branch
      %59 = sbr.rel (0) target = $region65
    $region64: #{decoder_forward.1} parent=1 // pred_region
      _
    $region65: #{decoder_forward.1} parent=1 // pred_fallthru
      _
    // Predicated region
    $region66: #{decoder_forward.1} parent=1 // pred_check
      _
    $region67: #{decoder_forward.1} parent=1 // pred_check_branch
      %61 = sbr.rel (0) target = $region69
    $region68: #{decoder_forward.1} parent=1 // pred_region
      _
    $region69: #{decoder_forward.1} parent=1 // pred_fallthru
      _
    // Predicated region
    $region70: #{decoder_forward.1} parent=1 // pred_check
      _
    $region71: #{decoder_forward.1} parent=1 // pred_check_branch
      %63 = sbr.rel (0) target = $region73
    $region72: #{decoder_forward.1} parent=1 // pred_region
      _
    $region73: #{decoder_forward.1} parent=1 // pred_fallthru
      _
    // Predicated region
    $region74: #{decoder_forward.1} parent=1 // pred_check
      _
    $region75: #{decoder_forward.1} parent=1 // pred_check_branch
      %65 = sbr.rel (0) target = $region77
    $region76: #{decoder_forward.1} parent=1 // pred_region
      _
    $region77: #{decoder_forward.1} parent=1 // pred_fallthru
      _
    // Predicated region
    $region78: #{decoder_forward.1} parent=1 // pred_check
      _
    $region79: #{decoder_forward.1} parent=1 // pred_check_branch
      %67 = sbr.rel (0) target = $region81
    $region80: #{decoder_forward.1} parent=1 // pred_region
      _
    $region81: #{decoder_forward.1} parent=1 // pred_fallthru
      _
    // Predicated region
    $region82: #{decoder_forward.1} parent=1 // pred_check
      _
    $region83: #{decoder_forward.1} parent=1 // pred_check_branch
      %69 = sbr.rel (0) target = $region85
    $region84: #{decoder_forward.1} parent=1 // pred_region
      _
    $region85: #{decoder_forward.1} parent=1 // pred_fallthru
      _
    // Predicated region
    $region86: #{decoder_forward.1} parent=1 // pred_check
      _
    $region87: #{decoder_forward.1} parent=1 // pred_check_branch
      %71 = sbr.rel (0) target = $region89
    $region88: #{decoder_forward.1} parent=1 // pred_region
      _
    $region89: #{decoder_forward.1} parent=1 // pred_fallthru
      _
    %v73 = vld [vmem:[%s0] sm:$0xff]
    %v74 = vld [vmem:[%s0 + $0x8] sm:$0xff]
    %v75 = vld [vmem:[%s1] sm:$0xff]
    %v76 = vld [vmem:[%s1 + $0x8] sm:$0xff]
    %v77 = vld [vmem:[%s2] sm:$0xff]
    %v78 = vld [vmem:[%s2 + $0x8] sm:$0xff]
    %v79 = vld [vmem:[%s2 + $0x10] sm:$0xff]
    %v80 = vld [vmem:[%s2 + $0x18] sm:$0xff]
    %v81 = vld [vmem:[%s2 + $0x20] sm:$0xff]
    %v82 = vld [vmem:[%s2 + $0x28] sm:$0xff]
    %v83 = vld [vmem:[%s2 + $0x30] sm:$0xff]
    %v84 = vld [vmem:[%s2 + $0x38] sm:$0xff]
    %v85 = vld [vmem:[%s3] sm:$0xff]
    %v86 = vld [vmem:[%s3 + $0x8] sm:$0xff]
    %v87 = vld [vmem:[%s3 + $0x10] sm:$0xff]
    %v88 = vld [vmem:[%s3 + $0x18] sm:$0xff]
    %v89 = vld [vmem:[%s3 + $0x20] sm:$0xff]
    %v90 = vld [vmem:[%s3 + $0x28] sm:$0xff]
    %v91 = vld [vmem:[%s3 + $0x30] sm:$0xff]
    %v92 = vld [vmem:[%s3 + $0x38] sm:$0xff]
    %v93 = vld [vmem:[%s4] sm:$0xff]
    %v94 = vld [vmem:[%s4 + $0x8] sm:$0xff]
    %v95 = vld [vmem:[%s4 + $0x10] sm:$0xff]
    %v96 = vld [vmem:[%s4 + $0x18] sm:$0xff]
    %v97 = vld [vmem:[%s4 + $0x20] sm:$0xff]
    %v98 = vld [vmem:[%s4 + $0x28] sm:$0xff]
    %v99 = vld [vmem:[%s4 + $0x30] sm:$0xff]
    %v100 = vld [vmem:[%s4 + $0x38] sm:$0xff]
    %v101 = vld [vmem:[%s5] sm:$0xff]
    %v102 = vld [vmem:[%s5 + $0x8] sm:$0xff]
    %v103 = vld [vmem:[%s5 + $0x10] sm:$0xff]
    %v104 = vld [vmem:[%s5 + $0x18] sm:$0xff]
    %v105 = vld [vmem:[%s5 + $0x20] sm:$0xff]
    %v106 = vld [vmem:[%s5 + $0x28] sm:$0xff]
    %v107 = vld [vmem:[%s5 + $0x30] sm:$0xff]
    %v108 = vld [vmem:[%s5 + $0x38] sm:$0xff]
    %v109 = vld [vmem:[%s6] sm:$0xf]
    %v110 = vld [vmem:[%s6 + $0x4] sm:$0xf]
    %v111 = vld [vmem:[%s6 + $0x8] sm:$0xf]
    %v112 = vld [vmem:[%s6 + $0xc] sm:$0xf]
    %v113 = vpack.c.bf16 %v74, %v73
    %v114 = vld [vmem:[%s7] sm:$0x1]
    %v116 = vlaneseq
    %v117 = vshrl.u32 %v116, 7
    %v118 = vsub.s32 0, %v117
    %v119 = vrot.slane %v114, %v118
    %v125 = vunpack.c.l.b16 %v109
    %v126 = vunpack.c.l.b16 %v110
    %v127 = vunpack.c.l.b16 %v111
    %v128 = vunpack.c.l.b16 %v112
    %v129 = vpack.c.b16 %v126, %v125
    %v130 = vpack.c.b16 %v128, %v127
    %vm133 = vcmask 261120
    %v135 = vsel %vm133, %v113, 0
    %137 = vmatprep.subr.bf16.mxu0 0
    %138 = vmatpush1.bf16.msra.mxu0 0
    %139 = vmatprep.subr.bf16.mxu0 0
    %140 = vmatpush1.bf16.msra.mxu0 0
    %141 = vmatprep.subr.bf16.mxu0 0
    %142 = vmatpush1.bf16.msra.mxu0 0
    %143 = vmatprep.subr.bf16.mxu0 0
    %144 = vmatpush1.bf16.msra.mxu0 0
    %145 = vmatprep.subr.bf16.mxu0 0
    %146 = vmatpush1.bf16.msra.mxu0 0
    %147 = vmatprep.subr.bf16.mxu0 0
    %148 = vmatpush1.bf16.msra.mxu0 0
    %149 = vmatprep.subr.bf16.mxu0 0
    %150 = vmatpush1.bf16.msra.mxu0 %v130
    %151 = vmatprep.subr.bf16.mxu0 0
    %152 = vmatpush1.bf16.msra.mxu0 %v129
    %153 = vmatprep.subr.bf16.mxu0 0
    %154 = vmatpush2.bf16.msra.mxu0 0
    %155 = vmatprep.subr.bf16.mxu0 0
    %156 = vmatpush2.bf16.msra.mxu0 0
    %157 = vmatprep.subr.bf16.mxu0 0
    %158 = vmatpush2.bf16.msra.mxu0 0
    %159 = vmatprep.subr.bf16.mxu0 0
    %160 = vmatpush2.bf16.msra.mxu0 0
    %161 = vmatprep.subr.bf16.mxu0 0
    %162 = vmatpush2.bf16.msra.mxu0 0
    %163 = vmatprep.subr.bf16.mxu0 0
    %164 = vmatpush2.bf16.msra.mxu0 0
    %165 = vmatprep.subr.bf16.mxu0 0
    %166 = vmatpush2.bf16.msra.mxu0 0
    %167 = vmatprep.subr.bf16.mxu0 0
    %168 = vmatpush2.bf16.msra.mxu0 0
    %169 = vmatprep.mubr.bf16.mxu0 0
    %170 = vmatmul.mubr.bf16.gmra.mxu0 %v135
    %v171 = vpop.f32.mrf.mxu0
    %v172 = vadd.f32 %v119, %v171
    %v173 = vpop.f32.mrf.mxu0
    %v174 = vpop.f32.mrf.mxu0
    %v175 = vadd.f32 %v119, %v174
    %v176 = vpop.f32.mrf.mxu0
    %177 = vdwg.mxu0
    %v178 = vld [vmem:[%s8] sm:$0xf]
    %v179 = vld [vmem:[%s8 + $0x4] sm:$0xf]
    %v180 = vld [vmem:[%s8 + $0x8] sm:$0xf]
    %v181 = vld [vmem:[%s8 + $0xc] sm:$0xf]
    %v182 = vld [vmem:[%s9] sm:$0x1]
    %v183 = vmul.f32 %v172, %v93
    %v184 = vmul.f32 %v175, %v94
    %v185 = vmul.f32 %v172, %v95
    %v186 = vmul.f32 %v175, %v96
    %v187 = vmul.f32 %v172, %v97
    %v188 = vmul.f32 %v175, %v98
    %v189 = vmul.f32 %v172, %v99
    %v190 = vmul.f32 %v175, %v100
    %v191 = vpack.c.bf16 %v184, %v183
    %v192 = vpack.c.bf16 %v186, %v185
    %v193 = vpack.c.bf16 %v188, %v187
    %v194 = vpack.c.bf16 %v190, %v189
    %v195 = vpack.c.bf16 %v175, %v172
    %197 = vrot.lane.b32.xlu0 %v195, 96
    %v198 = vpop.permute.xlu0 %197
    %v200 = vsel %vm133, %v191, 0
    %v203 = vsel %vm133, %v192, 0
    %v206 = vsel %vm133, %v193, 0
    %v209 = vsel %vm133, %v194, 0
    %v212 = vsel %vm133, %v198, 0
    %214 = vmatprep.subr.bf16.mxu0 0
    %215 = vmatpush1.bf16.xpose.msra.mxu0 0
    %216 = vmatprep.subr.bf16.mxu0 0
    %217 = vmatpush1.bf16.xpose.msra.mxu0 0
    %218 = vmatprep.subr.bf16.mxu0 0
    %219 = vmatpush1.bf16.xpose.msra.mxu0 0
    %220 = vmatprep.subr.bf16.mxu0 0
    %221 = vmatpush1.bf16.xpose.msra.mxu0 0
    %222 = vmatprep.subr.bf16.mxu0 0
    %223 = vmatpush1.bf16.xpose.msra.mxu0 0
    %224 = vmatprep.subr.bf16.mxu0 0
    %225 = vmatpush1.bf16.xpose.msra.mxu0 0
    %226 = vmatprep.subr.bf16.mxu0 0
    %227 = vmatpush1.bf16.xpose.msra.mxu0 0
    %228 = vmatprep.subr.bf16.mxu0 0
    %229 = vmatpush1.bf16.xpose.msra.mxu0 %v212
    %230 = vmatprep.subr.bf16.mxu0 0
    %231 = vmatpush2.bf16.xpose.msra.mxu0 0
    %232 = vmatprep.subr.bf16.mxu0 0
    %233 = vmatpush2.bf16.xpose.msra.mxu0 0
    %234 = vmatprep.subr.bf16.mxu0 0
    %235 = vmatpush2.bf16.xpose.msra.mxu0 0
    %236 = vmatprep.subr.bf16.mxu0 0
    %237 = vmatpush2.bf16.xpose.msra.mxu0 0
    %238 = vmatprep.subr.bf16.mxu0 0
    %239 = vmatpush2.bf16.xpose.msra.mxu0 0
    %240 = vmatprep.subr.bf16.mxu0 0
    %241 = vmatpush2.bf16.xpose.msra.mxu0 0
    %242 = vmatprep.subr.bf16.mxu0 0
    %243 = vmatpush2.bf16.xpose.msra.mxu0 0
    %244 = vmatprep.subr.bf16.mxu0 0
    %245 = vmatpush2.bf16.xpose.msra.mxu0 0
    %246 = vmatprep.mubr.bf16.mxu0 0
    %247 = vmatmul.mubr.bf16.gmra.mxu0 %v200
    %v248 = vpop.f32.mrf.mxu0
    %v249 = vadd.f32 %v77, %v248
    %v250 = vpop.f32.mrf.mxu0
    %v251 = vpop.f32.mrf.mxu0
    %v252 = vadd.f32 %v78, %v251
    %v253 = vpop.f32.mrf.mxu0
    %254 = vmatprep.mubr.bf16.mxu0 0
    %255 = vmatmul.mubr.bf16.gmra.mxu0 %v203
    %v256 = vpop.f32.mrf.mxu0
    %v257 = vadd.f32 %v79, %v256
    %v258 = vpop.f32.mrf.mxu0
    %v259 = vpop.f32.mrf.mxu0
    %v260 = vadd.f32 %v80, %v259
    %v261 = vpop.f32.mrf.mxu0
    %262 = vmatprep.mubr.bf16.mxu0 0
    %263 = vmatmul.mubr.bf16.gmra.mxu0 %v206
    %v264 = vpop.f32.mrf.mxu0
    %v265 = vadd.f32 %v81, %v264
    %v266 = vpop.f32.mrf.mxu0
    %v267 = vpop.f32.mrf.mxu0
    %v268 = vadd.f32 %v82, %v267
    %v269 = vpop.f32.mrf.mxu0
    %270 = vmatprep.mubr.bf16.mxu0 0
    %271 = vmatmul.mubr.bf16.gmra.mxu0 %v209
    %v272 = vpop.f32.mrf.mxu0
    %v273 = vadd.f32 %v83, %v272
    %v274 = vpop.f32.mrf.mxu0
    %v275 = vpop.f32.mrf.mxu0
    %v276 = vadd.f32 %v84, %v275
    %v277 = vpop.f32.mrf.mxu0
    %278 = vdwg.mxu0
    %vm279 = vcmask 130048
    %v280 = vsel %vm279, %v249, -inf
    %281 = vmax.xlane.f32.xlu0 %v280
    %v282 = vpop.xlane.xlu0 %281
    %v283 = vsel %vm279, %v252, -inf
    %284 = vmax.xlane.f32.xlu0 %v283
    %v285 = vpop.xlane.xlu0 %284
    %v286 = vsel %vm279, %v257, -inf
    %287 = vmax.xlane.f32.xlu0 %v286
    %v288 = vpop.xlane.xlu0 %287
    %v289 = vsel %vm279, %v260, -inf
    %290 = vmax.xlane.f32.xlu0 %v289
    %v291 = vpop.xlane.xlu0 %290
    %v292 = vsel %vm279, %v265, -inf
    %293 = vmax.xlane.f32.xlu0 %v292
    %v294 = vpop.xlane.xlu0 %293
    %v295 = vsel %vm279, %v268, -inf
    %296 = vmax.xlane.f32.xlu0 %v295
    %v297 = vpop.xlane.xlu0 %296
    %v298 = vsel %vm279, %v273, -inf
    %299 = vmax.xlane.f32.xlu0 %v298
    %v300 = vpop.xlane.xlu0 %299
    %v301 = vsel %vm279, %v276, -inf
    %302 = vmax.xlane.f32.xlu0 %v301
    %v303 = vpop.xlane.xlu0 %302
    %v304 = vsub.f32 %v249, %v282
    %v305 = vsub.f32 %v252, %v285
    %v306 = vsub.f32 %v257, %v288
    %v307 = vsub.f32 %v260, %v291
    %v308 = vsub.f32 %v265, %v294
    %v309 = vsub.f32 %v268, %v297
    %v310 = vsub.f32 %v273, %v300
    %v311 = vsub.f32 %v276, %v303
    %v312 = vmul.f32 %v304, 1.442695
    %v313 = vpow.pop %v312
    %v314 = vmul.f32 %v305, 1.442695
    %v315 = vpow.pop %v314
    %v316 = vmul.f32 %v306, 1.442695
    %v317 = vpow.pop %v316
    %v318 = vmul.f32 %v307, 1.442695
    %v319 = vpow.pop %v318
    %v320 = vmul.f32 %v308, 1.442695
    %v321 = vpow.pop %v320
    %v322 = vmul.f32 %v309, 1.442695
    %v323 = vpow.pop %v322
    %v324 = vmul.f32 %v310, 1.442695
    %v325 = vpow.pop %v324
    %v326 = vmul.f32 %v311, 1.442695
    %v327 = vpow.pop %v326
    %v328 = vsel %vm279, %v313, 0.0
    %329 = vadd.xlane.f32.xlu0 %v328
    %v330 = vpop.xlane.xlu0 %329
    %v331 = vsel %vm279, %v315, 0.0
    %332 = vadd.xlane.f32.xlu0 %v331
    %v333 = vpop.xlane.xlu0 %332
    %v334 = vsel %vm279, %v317, 0.0
    %335 = vadd.xlane.f32.xlu0 %v334
    %v336 = vpop.xlane.xlu0 %335
    %v337 = vsel %vm279, %v319, 0.0
    %338 = vadd.xlane.f32.xlu0 %v337
    %v339 = vpop.xlane.xlu0 %338
    %v340 = vsel %vm279, %v321, 0.0
    %341 = vadd.xlane.f32.xlu0 %v340
    %v342 = vpop.xlane.xlu0 %341
    %v343 = vsel %vm279, %v323, 0.0
    %344 = vadd.xlane.f32.xlu0 %v343
    %v345 = vpop.xlane.xlu0 %344
    %v346 = vsel %vm279, %v325, 0.0
    %347 = vadd.xlane.f32.xlu0 %v346
    %v348 = vpop.xlane.xlu0 %347
    %v349 = vsel %vm279, %v327, 0.0
    %350 = vadd.xlane.f32.xlu0 %v349
    %v351 = vpop.xlane.xlu0 %350
    %v352 = vrcp.pop %v330
    %v353 = vrcp.pop %v333
    %v354 = vrcp.pop %v336
    %v355 = vrcp.pop %v339
    %v356 = vrcp.pop %v342
    %v357 = vrcp.pop %v345
    %v358 = vrcp.pop %v348
    %v359 = vrcp.pop %v351
    %v360 = vmul.f32 %v313, %v352
    %v361 = vmul.f32 %v315, %v353
    %v362 = vmul.f32 %v317, %v354
    %v363 = vmul.f32 %v319, %v355
    %v364 = vmul.f32 %v321, %v356
    %v365 = vmul.f32 %v323, %v357
    %v366 = vmul.f32 %v325, %v358
    %v367 = vmul.f32 %v327, %v359
    %376 = vrot.lane.b32.xlu0 %v93, 64
    %v377 = vpop.permute.xlu0 %376
    %378 = vrot.lane.b32.xlu0 %v94, 64
    %v379 = vpop.permute.xlu0 %378
    %380 = vrot.lane.b32.xlu0 %v95, 64
    %v381 = vpop.permute.xlu0 %380
    %382 = vrot.lane.b32.xlu0 %v96, 64
    %v383 = vpop.permute.xlu0 %382
    %384 = vrot.lane.b32.xlu0 %v97, 64
    %v385 = vpop.permute.xlu0 %384
    %386 = vrot.lane.b32.xlu0 %v98, 64
    %v387 = vpop.permute.xlu0 %386
    %388 = vrot.lane.b32.xlu0 %v99, 64
    %v389 = vpop.permute.xlu0 %388
    %390 = vrot.lane.b32.xlu0 %v100, 64
    %v391 = vpop.permute.xlu0 %390
    %v400 = vmul.f32 %v172, %v377
    %v401 = vmul.f32 %v175, %v379
    %v402 = vmul.f32 %v172, %v381
    %v403 = vmul.f32 %v175, %v383
    %v404 = vmul.f32 %v172, %v385
    %v405 = vmul.f32 %v175, %v387
    %v406 = vmul.f32 %v172, %v389
    %v407 = vmul.f32 %v175, %v391
    %v408 = vpack.c.bf16 %v401, %v400
    %v409 = vpack.c.bf16 %v403, %v402
    %v410 = vpack.c.bf16 %v405, %v404
    %v411 = vpack.c.bf16 %v407, %v406
    %416 = vrot.lane.b32.xlu0 %v408, 64
    %v417 = vpop.permute.xlu0 %416
    %418 = vrot.lane.b32.xlu0 %v409, 64
    %v419 = vpop.permute.xlu0 %418
    %420 = vrot.lane.b32.xlu0 %v410, 64
    %v421 = vpop.permute.xlu0 %420
    %422 = vrot.lane.b32.xlu0 %v411, 64
    %v423 = vpop.permute.xlu0 %422
    %v428 = vunpack.c.l.b16 %v178
    %v429 = vunpack.c.l.b16 %v179
    %v430 = vunpack.c.l.b16 %v180
    %v431 = vunpack.c.l.b16 %v181
    %v432 = vpack.c.b16 %v429, %v428
    %v433 = vpack.c.b16 %v431, %v430
    %v437 = vsel %vm133, %v417, 0
    %v440 = vsel %vm133, %v419, 0
    %v443 = vsel %vm133, %v421, 0
    %v446 = vsel %vm133, %v423, 0
    %448 = vmatprep.subr.bf16.mxu0 0
    %449 = vmatpush1.bf16.msra.mxu0 0
    %450 = vmatprep.subr.bf16.mxu0 0
    %451 = vmatpush1.bf16.msra.mxu0 0
    %452 = vmatprep.subr.bf16.mxu0 0
    %453 = vmatpush1.bf16.msra.mxu0 0
    %454 = vmatprep.subr.bf16.mxu0 0
    %455 = vmatpush1.bf16.msra.mxu0 0
    %456 = vmatprep.subr.bf16.mxu0 0
    %457 = vmatpush1.bf16.msra.mxu0 0
    %458 = vmatprep.subr.bf16.mxu0 0
    %459 = vmatpush1.bf16.msra.mxu0 0
    %460 = vmatprep.subr.bf16.mxu0 0
    %461 = vmatpush1.bf16.msra.mxu0 %v433
    %462 = vmatprep.subr.bf16.mxu0 0
    %463 = vmatpush1.bf16.msra.mxu0 %v432
    %464 = vmatprep.subr.bf16.mxu0 0
    %465 = vmatpush2.bf16.msra.mxu0 0
    %466 = vmatprep.subr.bf16.mxu0 0
    %467 = vmatpush2.bf16.msra.mxu0 0
    %468 = vmatprep.subr.bf16.mxu0 0
    %469 = vmatpush2.bf16.msra.mxu0 0
    %470 = vmatprep.subr.bf16.mxu0 0
    %471 = vmatpush2.bf16.msra.mxu0 0
    %472 = vmatprep.subr.bf16.mxu0 0
    %473 = vmatpush2.bf16.msra.mxu0 0
    %474 = vmatprep.subr.bf16.mxu0 0
    %475 = vmatpush2.bf16.msra.mxu0 0
    %476 = vmatprep.subr.bf16.mxu0 0
    %477 = vmatpush2.bf16.msra.mxu0 0
    %478 = vmatprep.subr.bf16.mxu0 0
    %479 = vmatpush2.bf16.msra.mxu0 0
    %480 = vmatprep.mubr.bf16.mxu0 0
    %481 = vmatmul.mubr.bf16.gmra.mxu0 %v437
    %v482 = vpop.f32.mrf.mxu0
    %v483 = vadd.f32 0.0, %v482
    %v484 = vpop.f32.mrf.mxu0
    %v485 = vpop.f32.mrf.mxu0
    %v486 = vadd.f32 0.0, %v485
    %v487 = vpop.f32.mrf.mxu0
    %488 = vmatprep.mubr.bf16.mxu0 0
    %489 = vmatmul.mubr.bf16.gmra.mxu0 %v440
    %v490 = vpop.f32.mrf.mxu0
    %v491 = vadd.f32 0.0, %v490
    %v492 = vpop.f32.mrf.mxu0
    %v493 = vpop.f32.mrf.mxu0
    %v494 = vadd.f32 0.0, %v493
    %v495 = vpop.f32.mrf.mxu0
    %496 = vmatprep.mubr.bf16.mxu0 0
    %497 = vmatmul.mubr.bf16.gmra.mxu0 %v443
    %v498 = vpop.f32.mrf.mxu0
    %v499 = vadd.f32 0.0, %v498
    %v500 = vpop.f32.mrf.mxu0
    %v501 = vpop.f32.mrf.mxu0
    %v502 = vadd.f32 0.0, %v501
    %v503 = vpop.f32.mrf.mxu0
    %504 = vmatprep.mubr.bf16.mxu0 0
    %505 = vmatmul.mubr.bf16.gmra.mxu0 %v446
    %v506 = vpop.f32.mrf.mxu0
    %v507 = vadd.f32 0.0, %v506
    %v508 = vpop.f32.mrf.mxu0
    %v509 = vpop.f32.mrf.mxu0
    %v510 = vadd.f32 0.0, %v509
    %v511 = vpop.f32.mrf.mxu0
    %512 = vdwg.mxu0
    %v513 = vpack.c.bf16 %v361, %v360
    %v514 = vpack.c.bf16 %v363, %v362
    %v515 = vpack.c.bf16 %v365, %v364
    %v516 = vpack.c.bf16 %v367, %v366
    %v517 = vpack.c.bf16 %v486, %v483
    %v518 = vpack.c.bf16 %v494, %v491
    %v519 = vpack.c.bf16 %v502, %v499
    %v520 = vpack.c.bf16 %v510, %v507
    %v522 = vsel %vm279, %v514, 0
    %524 = vmatprep.subr.bf16.mxu0 0
    %525 = vmatpush1.bf16.msra.mxu0 0
    %526 = vmatprep.subr.bf16.mxu0 0
    %527 = vmatpush1.bf16.msra.mxu0 0
    %528 = vmatprep.subr.bf16.mxu0 0
    %529 = vmatpush1.bf16.msra.mxu0 0
    %530 = vmatprep.subr.bf16.mxu0 0
    %531 = vmatpush1.bf16.msra.mxu0 0
    %532 = vmatprep.subr.bf16.mxu0 0
    %533 = vmatpush1.bf16.msra.mxu0 0
    %534 = vmatprep.subr.bf16.mxu0 0
    %535 = vmatpush1.bf16.msra.mxu0 0
    %536 = vmatprep.subr.bf16.mxu0 0
    %537 = vmatpush1.bf16.msra.mxu0 0
    %538 = vmatprep.subr.bf16.mxu0 0
    %539 = vmatpush1.bf16.msra.mxu0 %v518
    %540 = vmatprep.subr.bf16.mxu0 0
    %541 = vmatpush2.bf16.msra.mxu0 0
    %542 = vmatprep.subr.bf16.mxu0 0
    %543 = vmatpush2.bf16.msra.mxu0 0
    %544 = vmatprep.subr.bf16.mxu0 0
    %545 = vmatpush2.bf16.msra.mxu0 0
    %546 = vmatprep.subr.bf16.mxu0 0
    %547 = vmatpush2.bf16.msra.mxu0 0
    %548 = vmatprep.subr.bf16.mxu0 0
    %549 = vmatpush2.bf16.msra.mxu0 0
    %550 = vmatprep.subr.bf16.mxu0 0
    %551 = vmatpush2.bf16.msra.mxu0 0
    %552 = vmatprep.subr.bf16.mxu0 0
    %553 = vmatpush2.bf16.msra.mxu0 0
    %554 = vmatprep.subr.bf16.mxu0 0
    %555 = vmatpush2.bf16.msra.mxu0 0
    %556 = vmatprep.mubr.bf16.mxu0 0
    %557 = vmatmul.mubr.bf16.gmra.mxu0 %v522
    %v558 = vpop.f32.mrf.mxu0
    %v559 = vadd.f32 0.0, %v558
    %v560 = vpop.f32.mrf.mxu0
    %v561 = vpop.f32.mrf.mxu0
    %v562 = vadd.f32 0.0, %v561
    %v563 = vpop.f32.mrf.mxu0
    %564 = vdwg.mxu0
    %v566 = vsel %vm279, %v515, 0
    %568 = vmatprep.subr.bf16.mxu0 0
    %569 = vmatpush1.bf16.msra.mxu0 0
    %570 = vmatprep.subr.bf16.mxu0 0
    %571 = vmatpush1.bf16.msra.mxu0 0
    %572 = vmatprep.subr.bf16.mxu0 0
    %573 = vmatpush1.bf16.msra.mxu0 0
    %574 = vmatprep.subr.bf16.mxu0 0
    %575 = vmatpush1.bf16.msra.mxu0 0
    %576 = vmatprep.subr.bf16.mxu0 0
    %577 = vmatpush1.bf16.msra.mxu0 0
    %578 = vmatprep.subr.bf16.mxu0 0
    %579 = vmatpush1.bf16.msra.mxu0 0
    %580 = vmatprep.subr.bf16.mxu0 0
    %581 = vmatpush1.bf16.msra.mxu0 0
    %582 = vmatprep.subr.bf16.mxu0 0
    %583 = vmatpush1.bf16.msra.mxu0 %v519
    %584 = vmatprep.subr.bf16.mxu0 0
    %585 = vmatpush2.bf16.msra.mxu0 0
    %586 = vmatprep.subr.bf16.mxu0 0
    %587 = vmatpush2.bf16.msra.mxu0 0
    %588 = vmatprep.subr.bf16.mxu0 0
    %589 = vmatpush2.bf16.msra.mxu0 0
    %590 = vmatprep.subr.bf16.mxu0 0
    %591 = vmatpush2.bf16.msra.mxu0 0
    %592 = vmatprep.subr.bf16.mxu0 0
    %593 = vmatpush2.bf16.msra.mxu0 0
    %594 = vmatprep.subr.bf16.mxu0 0
    %595 = vmatpush2.bf16.msra.mxu0 0
    %596 = vmatprep.subr.bf16.mxu0 0
    %597 = vmatpush2.bf16.msra.mxu0 0
    %598 = vmatprep.subr.bf16.mxu0 0
    %599 = vmatpush2.bf16.msra.mxu0 0
    %600 = vmatprep.mubr.bf16.mxu0 0
    %601 = vmatmul.mubr.bf16.gmra.mxu0 %v566
    %v602 = vpop.f32.mrf.mxu0
    %v603 = vadd.f32 0.0, %v602
    %v604 = vpop.f32.mrf.mxu0
    %v605 = vpop.f32.mrf.mxu0
    %v606 = vadd.f32 0.0, %v605
    %v607 = vpop.f32.mrf.mxu0
    %608 = vdwg.mxu0
    %v610 = vsel %vm279, %v516, 0
    %612 = vmatprep.subr.bf16.mxu0 0
    %613 = vmatpush1.bf16.msra.mxu0 0
    %614 = vmatprep.subr.bf16.mxu0 0
    %615 = vmatpush1.bf16.msra.mxu0 0
    %616 = vmatprep.subr.bf16.mxu0 0
    %617 = vmatpush1.bf16.msra.mxu0 0
    %618 = vmatprep.subr.bf16.mxu0 0
    %619 = vmatpush1.bf16.msra.mxu0 0
    %620 = vmatprep.subr.bf16.mxu0 0
    %621 = vmatpush1.bf16.msra.mxu0 0
    %622 = vmatprep.subr.bf16.mxu0 0
    %623 = vmatpush1.bf16.msra.mxu0 0
    %624 = vmatprep.subr.bf16.mxu0 0
    %625 = vmatpush1.bf16.msra.mxu0 0
    %626 = vmatprep.subr.bf16.mxu0 0
    %627 = vmatpush1.bf16.msra.mxu0 %v520
    %628 = vmatprep.subr.bf16.mxu0 0
    %629 = vmatpush2.bf16.msra.mxu0 0
    %630 = vmatprep.subr.bf16.mxu0 0
    %631 = vmatpush2.bf16.msra.mxu0 0
    %632 = vmatprep.subr.bf16.mxu0 0
    %633 = vmatpush2.bf16.msra.mxu0 0
    %634 = vmatprep.subr.bf16.mxu0 0
    %635 = vmatpush2.bf16.msra.mxu0 0
    %636 = vmatprep.subr.bf16.mxu0 0
    %637 = vmatpush2.bf16.msra.mxu0 0
    %638 = vmatprep.subr.bf16.mxu0 0
    %639 = vmatpush2.bf16.msra.mxu0 0
    %640 = vmatprep.subr.bf16.mxu0 0
    %641 = vmatpush2.bf16.msra.mxu0 0
    %642 = vmatprep.subr.bf16.mxu0 0
    %643 = vmatpush2.bf16.msra.mxu0 0
    %644 = vmatprep.mubr.bf16.mxu0 0
    %645 = vmatmul.mubr.bf16.gmra.mxu0 %v610
    %v646 = vpop.f32.mrf.mxu0
    %v647 = vadd.f32 0.0, %v646
    %v648 = vpop.f32.mrf.mxu0
    %v649 = vpop.f32.mrf.mxu0
    %v650 = vadd.f32 0.0, %v649
    %v651 = vpop.f32.mrf.mxu0
    %652 = vdwg.mxu0
    %v654 = vsel %vm279, %v513, 0
    %656 = vmatprep.subr.bf16.mxu0 0
    %657 = vmatpush1.bf16.msra.mxu0 0
    %658 = vmatprep.subr.bf16.mxu0 0
    %659 = vmatpush1.bf16.msra.mxu0 0
    %660 = vmatprep.subr.bf16.mxu0 0
    %661 = vmatpush1.bf16.msra.mxu0 0
    %662 = vmatprep.subr.bf16.mxu0 0
    %663 = vmatpush1.bf16.msra.mxu0 0
    %664 = vmatprep.subr.bf16.mxu0 0
    %665 = vmatpush1.bf16.msra.mxu0 0
    %666 = vmatprep.subr.bf16.mxu0 0
    %667 = vmatpush1.bf16.msra.mxu0 0
    %668 = vmatprep.subr.bf16.mxu0 0
    %669 = vmatpush1.bf16.msra.mxu0 0
    %670 = vmatprep.subr.bf16.mxu0 0
    %671 = vmatpush1.bf16.msra.mxu0 %v517
    %672 = vmatprep.subr.bf16.mxu0 0
    %673 = vmatpush2.bf16.msra.mxu0 0
    %674 = vmatprep.subr.bf16.mxu0 0
    %675 = vmatpush2.bf16.msra.mxu0 0
    %676 = vmatprep.subr.bf16.mxu0 0
    %677 = vmatpush2.bf16.msra.mxu0 0
    %678 = vmatprep.subr.bf16.mxu0 0
    %679 = vmatpush2.bf16.msra.mxu0 0
    %680 = vmatprep.subr.bf16.mxu0 0
    %681 = vmatpush2.bf16.msra.mxu0 0
    %682 = vmatprep.subr.bf16.mxu0 0
    %683 = vmatpush2.bf16.msra.mxu0 0
    %684 = vmatprep.subr.bf16.mxu0 0
    %685 = vmatpush2.bf16.msra.mxu0 0
    %686 = vmatprep.subr.bf16.mxu0 0
    %687 = vmatpush2.bf16.msra.mxu0 0
    %688 = vmatprep.mubr.bf16.mxu0 0
    %689 = vmatmul.mubr.bf16.gmra.mxu0 %v654
    %v690 = vpop.f32.mrf.mxu0
    %v691 = vadd.f32 %v559, %v690
    %v692 = vpop.f32.mrf.mxu0
    %v693 = vpop.f32.mrf.mxu0
    %v694 = vadd.f32 %v562, %v693
    %v695 = vpop.f32.mrf.mxu0
    %696 = vdwg.mxu0
    %v697 = vadd.f32 %v691, %v603
    %v698 = vadd.f32 %v694, %v606
    %v699 = vadd.f32 %v697, %v647
    %v700 = vadd.f32 %v698, %v650
    %v702 = vlaneseq
    %v703 = vshrl.u32 %v702, 7
    %v704 = vsub.s32 0, %v703
    %v705 = vrot.slane %v182, %v704
    %v707 = vadd.f32 %v699, %v705
    %v708 = vadd.f32 %v700, %v705
    %v709 = vadd.f32 %v707, %v73
    %v710 = vadd.f32 %v708, %v74
    %v711 = vld [vmem:[%s20] sm:$0x1]
    %v712 = vld [vmem:[%s21] sm:$0x1]
    %v713 = vsel %vm133, %v709, 0.0
    %714 = vadd.xlane.f32.xlu0 %v713
    %v715 = vpop.xlane.xlu0 %714
    %v716 = vsel %vm133, %v710, 0.0
    %717 = vadd.xlane.f32.xlu0 %v716
    %v718 = vpop.xlane.xlu0 %717
    %v719 = vrcp.pop 32.0
    %v720 = vmul.f32 %v715, %v719
    %v721 = vmul.f32 %v718, %v719
    %v722 = vsub.f32 %v709, %v720
    %v723 = vsub.f32 %v710, %v721
    %v724 = vmul.f32 %v722, %v722
    %v725 = vmul.f32 %v723, %v723
    %v726 = vsel %vm133, %v724, 0.0
    %727 = vadd.xlane.f32.xlu0 %v726
    %v728 = vpop.xlane.xlu0 %727
    %v729 = vsel %vm133, %v725, 0.0
    %730 = vadd.xlane.f32.xlu0 %v729
    %v731 = vpop.xlane.xlu0 %730
    %v732 = vmul.f32 %v728, %v719
    %v733 = vmul.f32 %v731, %v719
    %v734 = vadd.f32 %v732, 1e-05
    %v735 = vadd.f32 %v733, 1e-05
    %v736 = vrsqrt.pop %v734
    %v737 = vrsqrt.pop %v735
    %v738 = vmul.f32 %v722, %v736
    %v739 = vmul.f32 %v723, %v737
    %v741 = vlaneseq
    %v742 = vshrl.u32 %v741, 7
    %v743 = vsub.s32 0, %v742
    %v744 = vrot.slane %v711, %v743
    %v746 = vmul.f32 %v738, %v744
    %v747 = vmul.f32 %v739, %v744
    %v749 = vlaneseq
    %v750 = vshrl.u32 %v749, 7
    %v751 = vsub.s32 0, %v750
    %v752 = vrot.slane %v712, %v751
    %v754 = vadd.f32 %v746, %v752
    %v755 = vadd.f32 %v747, %v752
    %v756 = vld [vmem:[%s12] sm:$0xf]
    %v757 = vld [vmem:[%s12 + $0x4] sm:$0xf]
    %v758 = vld [vmem:[%s12 + $0x8] sm:$0xf]
    %v759 = vld [vmem:[%s12 + $0xc] sm:$0xf]
    %v760 = vpack.c.bf16 %v76, %v75
    %v761 = vld [vmem:[%s13] sm:$0x1]
    %v763 = vlaneseq
    %v764 = vshrl.u32 %v763, 7
    %v765 = vsub.s32 0, %v764
    %v766 = vrot.slane %v761, %v765
    %v772 = vunpack.c.l.b16 %v756
    %v773 = vunpack.c.l.b16 %v757
    %v774 = vunpack.c.l.b16 %v758
    %v775 = vunpack.c.l.b16 %v759
    %v776 = vpack.c.b16 %v773, %v772
    %v777 = vpack.c.b16 %v775, %v774
    %v781 = vsel %vm133, %v760, 0
    %783 = vmatprep.subr.bf16.mxu0 0
    %784 = vmatpush1.bf16.msra.mxu0 0
    %785 = vmatprep.subr.bf16.mxu0 0
    %786 = vmatpush1.bf16.msra.mxu0 0
    %787 = vmatprep.subr.bf16.mxu0 0
    %788 = vmatpush1.bf16.msra.mxu0 0
    %789 = vmatprep.subr.bf16.mxu0 0
    %790 = vmatpush1.bf16.msra.mxu0 0
    %791 = vmatprep.subr.bf16.mxu0 0
    %792 = vmatpush1.bf16.msra.mxu0 0
    %793 = vmatprep.subr.bf16.mxu0 0
    %794 = vmatpush1.bf16.msra.mxu0 0
    %795 = vmatprep.subr.bf16.mxu0 0
    %796 = vmatpush1.bf16.msra.mxu0 %v777
    %797 = vmatprep.subr.bf16.mxu0 0
    %798 = vmatpush1.bf16.msra.mxu0 %v776
    %799 = vmatprep.subr.bf16.mxu0 0
    %800 = vmatpush2.bf16.msra.mxu0 0
    %801 = vmatprep.subr.bf16.mxu0 0
    %802 = vmatpush2.bf16.msra.mxu0 0
    %803 = vmatprep.subr.bf16.mxu0 0
    %804 = vmatpush2.bf16.msra.mxu0 0
    %805 = vmatprep.subr.bf16.mxu0 0
    %806 = vmatpush2.bf16.msra.mxu0 0
    %807 = vmatprep.subr.bf16.mxu0 0
    %808 = vmatpush2.bf16.msra.mxu0 0
    %809 = vmatprep.subr.bf16.mxu0 0
    %810 = vmatpush2.bf16.msra.mxu0 0
    %811 = vmatprep.subr.bf16.mxu0 0
    %812 = vmatpush2.bf16.msra.mxu0 0
    %813 = vmatprep.subr.bf16.mxu0 0
    %814 = vmatpush2.bf16.msra.mxu0 0
    %815 = vmatprep.mubr.bf16.mxu0 0
    %816 = vmatmul.mubr.bf16.gmra.mxu0 %v781
    %v817 = vpop.f32.mrf.mxu0
    %v818 = vadd.f32 %v766, %v817
    %v819 = vpop.f32.mrf.mxu0
    %v820 = vpop.f32.mrf.mxu0
    %v821 = vadd.f32 %v766, %v820
    %v822 = vpop.f32.mrf.mxu0
    %823 = vdwg.mxu0
    %v824 = vld [vmem:[%s10] sm:$0xf]
    %v825 = vld [vmem:[%s10 + $0x4] sm:$0xf]
    %v826 = vld [vmem:[%s10 + $0x8] sm:$0xf]
    %v827 = vld [vmem:[%s10 + $0xc] sm:$0xf]
    %v828 = vpack.c.bf16 %v755, %v754
    %v829 = vld [vmem:[%s11] sm:$0x1]
    %v831 = vlaneseq
    %v832 = vshrl.u32 %v831, 7
    %v833 = vsub.s32 0, %v832
    %v834 = vrot.slane %v829, %v833
    %v840 = vunpack.c.l.b16 %v824
    %v841 = vunpack.c.l.b16 %v825
    %v842 = vunpack.c.l.b16 %v826
    %v843 = vunpack.c.l.b16 %v827
    %v844 = vpack.c.b16 %v841, %v840
    %v845 = vpack.c.b16 %v843, %v842
    %v849 = vsel %vm133, %v828, 0
    %851 = vmatprep.subr.bf16.mxu0 0
    %852 = vmatpush1.bf16.msra.mxu0 0
    %853 = vmatprep.subr.bf16.mxu0 0
    %854 = vmatpush1.bf16.msra.mxu0 0
    %855 = vmatprep.subr.bf16.mxu0 0
    %856 = vmatpush1.bf16.msra.mxu0 0
    %857 = vmatprep.subr.bf16.mxu0 0
    %858 = vmatpush1.bf16.msra.mxu0 0
    %859 = vmatprep.subr.bf16.mxu0 0
    %860 = vmatpush1.bf16.msra.mxu0 0
    %861 = vmatprep.subr.bf16.mxu0 0
    %862 = vmatpush1.bf16.msra.mxu0 0
    %863 = vmatprep.subr.bf16.mxu0 0
    %864 = vmatpush1.bf16.msra.mxu0 %v845
    %865 = vmatprep.subr.bf16.mxu0 0
    %866 = vmatpush1.bf16.msra.mxu0 %v844
    %867 = vmatprep.subr.bf16.mxu0 0
    %868 = vmatpush2.bf16.msra.mxu0 0
    %869 = vmatprep.subr.bf16.mxu0 0
    %870 = vmatpush2.bf16.msra.mxu0 0
    %871 = vmatprep.subr.bf16.mxu0 0
    %872 = vmatpush2.bf16.msra.mxu0 0
    %873 = vmatprep.subr.bf16.mxu0 0
    %874 = vmatpush2.bf16.msra.mxu0 0
    %875 = vmatprep.subr.bf16.mxu0 0
    %876 = vmatpush2.bf16.msra.mxu0 0
    %877 = vmatprep.subr.bf16.mxu0 0
    %878 = vmatpush2.bf16.msra.mxu0 0
    %879 = vmatprep.subr.bf16.mxu0 0
    %880 = vmatpush2.bf16.msra.mxu0 0
    %881 = vmatprep.subr.bf16.mxu0 0
    %882 = vmatpush2.bf16.msra.mxu0 0
    %883 = vmatprep.mubr.bf16.mxu0 0
    %884 = vmatmul.mubr.bf16.gmra.mxu0 %v849
    %v885 = vpop.f32.mrf.mxu0
    %v886 = vadd.f32 %v834, %v885
    %v887 = vpop.f32.mrf.mxu0
    %v888 = vpop.f32.mrf.mxu0
    %v889 = vadd.f32 %v834, %v888
    %v890 = vpop.f32.mrf.mxu0
    %891 = vdwg.mxu0
    %v892 = vld [vmem:[%s14] sm:$0xf]
    %v893 = vld [vmem:[%s14 + $0x4] sm:$0xf]
    %v894 = vld [vmem:[%s14 + $0x8] sm:$0xf]
    %v895 = vld [vmem:[%s14 + $0xc] sm:$0xf]
    %v896 = vld [vmem:[%s15] sm:$0x1]
    %v897 = vmul.f32 %v886, %v93
    %v898 = vmul.f32 %v889, %v94
    %v899 = vmul.f32 %v886, %v95
    %v900 = vmul.f32 %v889, %v96
    %v901 = vmul.f32 %v886, %v97
    %v902 = vmul.f32 %v889, %v98
    %v903 = vmul.f32 %v886, %v99
    %v904 = vmul.f32 %v889, %v100
    %v905 = vpack.c.bf16 %v898, %v897
    %v906 = vpack.c.bf16 %v900, %v899
    %v907 = vpack.c.bf16 %v902, %v901
    %v908 = vpack.c.bf16 %v904, %v903
    %v909 = vpack.c.bf16 %v821, %v818
    %v911 = vsel %vm133, %v905, 0
    %v914 = vsel %vm133, %v906, 0
    %v917 = vsel %vm133, %v907, 0
    %v920 = vsel %vm133, %v908, 0
    %v923 = vsel %vm133, %v909, 0
    %925 = vmatprep.subr.bf16.mxu0 0
    %926 = vmatpush1.bf16.xpose.msra.mxu0 0
    %927 = vmatprep.subr.bf16.mxu0 0
    %928 = vmatpush1.bf16.xpose.msra.mxu0 0
    %929 = vmatprep.subr.bf16.mxu0 0
    %930 = vmatpush1.bf16.xpose.msra.mxu0 0
    %931 = vmatprep.subr.bf16.mxu0 0
    %932 = vmatpush1.bf16.xpose.msra.mxu0 0
    %933 = vmatprep.subr.bf16.mxu0 0
    %934 = vmatpush1.bf16.xpose.msra.mxu0 0
    %935 = vmatprep.subr.bf16.mxu0 0
    %936 = vmatpush1.bf16.xpose.msra.mxu0 0
    %937 = vmatprep.subr.bf16.mxu0 0
    %938 = vmatpush1.bf16.xpose.msra.mxu0 0
    %939 = vmatprep.subr.bf16.mxu0 0
    %940 = vmatpush1.bf16.xpose.msra.mxu0 %v923
    %941 = vmatprep.subr.bf16.mxu0 0
    %942 = vmatpush2.bf16.xpose.msra.mxu0 0
    %943 = vmatprep.subr.bf16.mxu0 0
    %944 = vmatpush2.bf16.xpose.msra.mxu0 0
    %945 = vmatprep.subr.bf16.mxu0 0
    %946 = vmatpush2.bf16.xpose.msra.mxu0 0
    %947 = vmatprep.subr.bf16.mxu0 0
    %948 = vmatpush2.bf16.xpose.msra.mxu0 0
    %949 = vmatprep.subr.bf16.mxu0 0
    %950 = vmatpush2.bf16.xpose.msra.mxu0 0
    %951 = vmatprep.subr.bf16.mxu0 0
    %952 = vmatpush2.bf16.xpose.msra.mxu0 0
    %953 = vmatprep.subr.bf16.mxu0 0
    %954 = vmatpush2.bf16.xpose.msra.mxu0 0
    %955 = vmatprep.subr.bf16.mxu0 0
    %956 = vmatpush2.bf16.xpose.msra.mxu0 0
    %957 = vmatprep.mubr.bf16.mxu0 0
    %958 = vmatmul.mubr.bf16.gmra.mxu0 %v911
    %v959 = vpop.f32.mrf.mxu0
    %v960 = vadd.f32 %v85, %v959
    %v961 = vpop.f32.mrf.mxu0
    %v962 = vpop.f32.mrf.mxu0
    %v963 = vadd.f32 %v86, %v962
    %v964 = vpop.f32.mrf.mxu0
    %965 = vmatprep.mubr.bf16.mxu0 0
    %966 = vmatmul.mubr.bf16.gmra.mxu0 %v914
    %v967 = vpop.f32.mrf.mxu0
    %v968 = vadd.f32 %v87, %v967
    %v969 = vpop.f32.mrf.mxu0
    %v970 = vpop.f32.mrf.mxu0
    %v971 = vadd.f32 %v88, %v970
    %v972 = vpop.f32.mrf.mxu0
    %973 = vmatprep.mubr.bf16.mxu0 0
    %974 = vmatmul.mubr.bf16.gmra.mxu0 %v917
    %v975 = vpop.f32.mrf.mxu0
    %v976 = vadd.f32 %v89, %v975
    %v977 = vpop.f32.mrf.mxu0
    %v978 = vpop.f32.mrf.mxu0
    %v979 = vadd.f32 %v90, %v978
    %v980 = vpop.f32.mrf.mxu0
    %981 = vmatprep.mubr.bf16.mxu0 0
    %982 = vmatmul.mubr.bf16.gmra.mxu0 %v920
    %v983 = vpop.f32.mrf.mxu0
    %v984 = vadd.f32 %v91, %v983
    %v985 = vpop.f32.mrf.mxu0
    %v986 = vpop.f32.mrf.mxu0
    %v987 = vadd.f32 %v92, %v986
    %v988 = vpop.f32.mrf.mxu0
    %989 = vdwg.mxu0
    %v990 = vsel %vm279, %v960, -inf
    %991 = vmax.xlane.f32.xlu0 %v990
    %v992 = vpop.xlane.xlu0 %991
    %v993 = vsel %vm279, %v963, -inf
    %994 = vmax.xlane.f32.xlu0 %v993
    %v995 = vpop.xlane.xlu0 %994
    %v996 = vsel %vm279, %v968, -inf
    %997 = vmax.xlane.f32.xlu0 %v996
    %v998 = vpop.xlane.xlu0 %997
    %v999 = vsel %vm279, %v971, -inf
    %1000 = vmax.xlane.f32.xlu0 %v999
    %v1001 = vpop.xlane.xlu0 %1000
    %v1002 = vsel %vm279, %v976, -inf
    %1003 = vmax.xlane.f32.xlu0 %v1002
    %v1004 = vpop.xlane.xlu0 %1003
    %v1005 = vsel %vm279, %v979, -inf
    %1006 = vmax.xlane.f32.xlu0 %v1005
    %v1007 = vpop.xlane.xlu0 %1006
    %v1008 = vsel %vm279, %v984, -inf
    %1009 = vmax.xlane.f32.xlu0 %v1008
    %v1010 = vpop.xlane.xlu0 %1009
    %v1011 = vsel %vm279, %v987, -inf
    %1012 = vmax.xlane.f32.xlu0 %v1011
    %v1013 = vpop.xlane.xlu0 %1012
    %v1014 = vsub.f32 %v960, %v992
    %v1015 = vsub.f32 %v963, %v995
    %v1016 = vsub.f32 %v968, %v998
    %v1017 = vsub.f32 %v971, %v1001
    %v1018 = vsub.f32 %v976, %v1004
    %v1019 = vsub.f32 %v979, %v1007
    %v1020 = vsub.f32 %v984, %v1010
    %v1021 = vsub.f32 %v987, %v1013
    %v1022 = vmul.f32 %v1014, 1.442695
    %v1023 = vpow.pop %v1022
    %v1024 = vmul.f32 %v1015, 1.442695
    %v1025 = vpow.pop %v1024
    %v1026 = vmul.f32 %v1016, 1.442695
    %v1027 = vpow.pop %v1026
    %v1028 = vmul.f32 %v1017, 1.442695
    %v1029 = vpow.pop %v1028
    %v1030 = vmul.f32 %v1018, 1.442695
    %v1031 = vpow.pop %v1030
    %v1032 = vmul.f32 %v1019, 1.442695
    %v1033 = vpow.pop %v1032
    %v1034 = vmul.f32 %v1020, 1.442695
    %v1035 = vpow.pop %v1034
    %v1036 = vmul.f32 %v1021, 1.442695
    %v1037 = vpow.pop %v1036
    %v1038 = vsel %vm279, %v1023, 0.0
    %1039 = vadd.xlane.f32.xlu0 %v1038
    %v1040 = vpop.xlane.xlu0 %1039
    %v1041 = vsel %vm279, %v1025, 0.0
    %1042 = vadd.xlane.f32.xlu0 %v1041
    %v1043 = vpop.xlane.xlu0 %1042
    %v1044 = vsel %vm279, %v1027, 0.0
    %1045 = vadd.xlane.f32.xlu0 %v1044
    %v1046 = vpop.xlane.xlu0 %1045
    %v1047 = vsel %vm279, %v1029, 0.0
    %1048 = vadd.xlane.f32.xlu0 %v1047
    %v1049 = vpop.xlane.xlu0 %1048
    %v1050 = vsel %vm279, %v1031, 0.0
    %1051 = vadd.xlane.f32.xlu0 %v1050
    %v1052 = vpop.xlane.xlu0 %1051
    %v1053 = vsel %vm279, %v1033, 0.0
    %1054 = vadd.xlane.f32.xlu0 %v1053
    %v1055 = vpop.xlane.xlu0 %1054
    %v1056 = vsel %vm279, %v1035, 0.0
    %1057 = vadd.xlane.f32.xlu0 %v1056
    %v1058 = vpop.xlane.xlu0 %1057
    %v1059 = vsel %vm279, %v1037, 0.0
    %1060 = vadd.xlane.f32.xlu0 %v1059
    %v1061 = vpop.xlane.xlu0 %1060
    %v1062 = vrcp.pop %v1040
    %v1063 = vrcp.pop %v1043
    %v1064 = vrcp.pop %v1046
    %v1065 = vrcp.pop %v1049
    %v1066 = vrcp.pop %v1052
    %v1067 = vrcp.pop %v1055
    %v1068 = vrcp.pop %v1058
    %v1069 = vrcp.pop %v1061
    %v1070 = vmul.f32 %v1023, %v1062
    %v1071 = vmul.f32 %v1025, %v1063
    %v1072 = vmul.f32 %v1027, %v1064
    %v1073 = vmul.f32 %v1029, %v1065
    %v1074 = vmul.f32 %v1031, %v1066
    %v1075 = vmul.f32 %v1033, %v1067
    %v1076 = vmul.f32 %v1035, %v1068
    %v1077 = vmul.f32 %v1037, %v1069
    %1086 = vrot.lane.b32.xlu0 %v101, 32
    %v1087 = vpop.permute.xlu0 %1086
    %1088 = vrot.lane.b32.xlu0 %v102, 32
    %v1089 = vpop.permute.xlu0 %1088
    %1090 = vrot.lane.b32.xlu0 %v103, 32
    %v1091 = vpop.permute.xlu0 %1090
    %1092 = vrot.lane.b32.xlu0 %v104, 32
    %v1093 = vpop.permute.xlu0 %1092
    %1094 = vrot.lane.b32.xlu0 %v105, 32
    %v1095 = vpop.permute.xlu0 %1094
    %1096 = vrot.lane.b32.xlu0 %v106, 32
    %v1097 = vpop.permute.xlu0 %1096
    %1098 = vrot.lane.b32.xlu0 %v107, 32
    %v1099 = vpop.permute.xlu0 %1098
    %1100 = vrot.lane.b32.xlu0 %v108, 32
    %v1101 = vpop.permute.xlu0 %1100
    %v1110 = vmul.f32 %v818, %v1087
    %v1111 = vmul.f32 %v821, %v1089
    %v1112 = vmul.f32 %v818, %v1091
    %v1113 = vmul.f32 %v821, %v1093
    %v1114 = vmul.f32 %v818, %v1095
    %v1115 = vmul.f32 %v821, %v1097
    %v1116 = vmul.f32 %v818, %v1099
    %v1117 = vmul.f32 %v821, %v1101
    %v1118 = vpack.c.bf16 %v1111, %v1110
    %v1119 = vpack.c.bf16 %v1113, %v1112
    %v1120 = vpack.c.bf16 %v1115, %v1114
    %v1121 = vpack.c.bf16 %v1117, %v1116
    %1126 = vrot.lane.b32.xlu0 %v1118, 96
    %v1127 = vpop.permute.xlu0 %1126
    %1128 = vrot.lane.b32.xlu0 %v1119, 96
    %v1129 = vpop.permute.xlu0 %1128
    %1130 = vrot.lane.b32.xlu0 %v1120, 96
    %v1131 = vpop.permute.xlu0 %1130
    %1132 = vrot.lane.b32.xlu0 %v1121, 96
    %v1133 = vpop.permute.xlu0 %1132
    %v1138 = vunpack.c.l.b16 %v892
    %v1139 = vunpack.c.l.b16 %v893
    %v1140 = vunpack.c.l.b16 %v894
    %v1141 = vunpack.c.l.b16 %v895
    %v1142 = vpack.c.b16 %v1139, %v1138
    %v1143 = vpack.c.b16 %v1141, %v1140
    %v1147 = vsel %vm133, %v1127, 0
    %v1150 = vsel %vm133, %v1129, 0
    %v1153 = vsel %vm133, %v1131, 0
    %v1156 = vsel %vm133, %v1133, 0
    %1158 = vmatprep.subr.bf16.mxu0 0
    %1159 = vmatpush1.bf16.msra.mxu0 0
    %1160 = vmatprep.subr.bf16.mxu0 0
    %1161 = vmatpush1.bf16.msra.mxu0 0
    %1162 = vmatprep.subr.bf16.mxu0 0
    %1163 = vmatpush1.bf16.msra.mxu0 0
    %1164 = vmatprep.subr.bf16.mxu0 0
    %1165 = vmatpush1.bf16.msra.mxu0 0
    %1166 = vmatprep.subr.bf16.mxu0 0
    %1167 = vmatpush1.bf16.msra.mxu0 0
    %1168 = vmatprep.subr.bf16.mxu0 0
    %1169 = vmatpush1.bf16.msra.mxu0 0
    %1170 = vmatprep.subr.bf16.mxu0 0
    %1171 = vmatpush1.bf16.msra.mxu0 %v1143
    %1172 = vmatprep.subr.bf16.mxu0 0
    %1173 = vmatpush1.bf16.msra.mxu0 %v1142
    %1174 = vmatprep.subr.bf16.mxu0 0
    %1175 = vmatpush2.bf16.msra.mxu0 0
    %1176 = vmatprep.subr.bf16.mxu0 0
    %1177 = vmatpush2.bf16.msra.mxu0 0
    %1178 = vmatprep.subr.bf16.mxu0 0
    %1179 = vmatpush2.bf16.msra.mxu0 0
    %1180 = vmatprep.subr.bf16.mxu0 0
    %1181 = vmatpush2.bf16.msra.mxu0 0
    %1182 = vmatprep.subr.bf16.mxu0 0
    %1183 = vmatpush2.bf16.msra.mxu0 0
    %1184 = vmatprep.subr.bf16.mxu0 0
    %1185 = vmatpush2.bf16.msra.mxu0 0
    %1186 = vmatprep.subr.bf16.mxu0 0
    %1187 = vmatpush2.bf16.msra.mxu0 0
    %1188 = vmatprep.subr.bf16.mxu0 0
    %1189 = vmatpush2.bf16.msra.mxu0 0
    %1190 = vmatprep.mubr.bf16.mxu0 0
    %1191 = vmatmul.mubr.bf16.gmra.mxu0 %v1147
    %v1192 = vpop.f32.mrf.mxu0
    %v1193 = vadd.f32 0.0, %v1192
    %v1194 = vpop.f32.mrf.mxu0
    %v1195 = vpop.f32.mrf.mxu0
    %v1196 = vadd.f32 0.0, %v1195
    %v1197 = vpop.f32.mrf.mxu0
    %1198 = vmatprep.mubr.bf16.mxu0 0
    %1199 = vmatmul.mubr.bf16.gmra.mxu0 %v1150
    %v1200 = vpop.f32.mrf.mxu0
    %v1201 = vadd.f32 0.0, %v1200
    %v1202 = vpop.f32.mrf.mxu0
    %v1203 = vpop.f32.mrf.mxu0
    %v1204 = vadd.f32 0.0, %v1203
    %v1205 = vpop.f32.mrf.mxu0
    %1206 = vmatprep.mubr.bf16.mxu0 0
    %1207 = vmatmul.mubr.bf16.gmra.mxu0 %v1153
    %v1208 = vpop.f32.mrf.mxu0
    %v1209 = vadd.f32 0.0, %v1208
    %v1210 = vpop.f32.mrf.mxu0
    %v1211 = vpop.f32.mrf.mxu0
    %v1212 = vadd.f32 0.0, %v1211
    %v1213 = vpop.f32.mrf.mxu0
    %1214 = vmatprep.mubr.bf16.mxu0 0
    %1215 = vmatmul.mubr.bf16.gmra.mxu0 %v1156
    %v1216 = vpop.f32.mrf.mxu0
    %v1217 = vadd.f32 0.0, %v1216
    %v1218 = vpop.f32.mrf.mxu0
    %v1219 = vpop.f32.mrf.mxu0
    %v1220 = vadd.f32 0.0, %v1219
    %v1221 = vpop.f32.mrf.mxu0
    %1222 = vdwg.mxu0
    %v1223 = vpack.c.bf16 %v1071, %v1070
    %v1224 = vpack.c.bf16 %v1073, %v1072
    %v1225 = vpack.c.bf16 %v1075, %v1074
    %v1226 = vpack.c.bf16 %v1077, %v1076
    %v1227 = vpack.c.bf16 %v1196, %v1193
    %v1228 = vpack.c.bf16 %v1204, %v1201
    %v1229 = vpack.c.bf16 %v1212, %v1209
    %v1230 = vpack.c.bf16 %v1220, %v1217
    %v1232 = vsel %vm279, %v1224, 0
    %1234 = vmatprep.subr.bf16.mxu0 0
    %1235 = vmatpush1.bf16.msra.mxu0 0
    %1236 = vmatprep.subr.bf16.mxu0 0
    %1237 = vmatpush1.bf16.msra.mxu0 0
    %1238 = vmatprep.subr.bf16.mxu0 0
    %1239 = vmatpush1.bf16.msra.mxu0 0
    %1240 = vmatprep.subr.bf16.mxu0 0
    %1241 = vmatpush1.bf16.msra.mxu0 0
    %1242 = vmatprep.subr.bf16.mxu0 0
    %1243 = vmatpush1.bf16.msra.mxu0 0
    %1244 = vmatprep.subr.bf16.mxu0 0
    %1245 = vmatpush1.bf16.msra.mxu0 0
    %1246 = vmatprep.subr.bf16.mxu0 0
    %1247 = vmatpush1.bf16.msra.mxu0 0
    %1248 = vmatprep.subr.bf16.mxu0 0
    %1249 = vmatpush1.bf16.msra.mxu0 %v1228
    %1250 = vmatprep.subr.bf16.mxu0 0
    %1251 = vmatpush2.bf16.msra.mxu0 0
    %1252 = vmatprep.subr.bf16.mxu0 0
    %1253 = vmatpush2.bf16.msra.mxu0 0
    %1254 = vmatprep.subr.bf16.mxu0 0
    %1255 = vmatpush2.bf16.msra.mxu0 0
    %1256 = vmatprep.subr.bf16.mxu0 0
    %1257 = vmatpush2.bf16.msra.mxu0 0
    %1258 = vmatprep.subr.bf16.mxu0 0
    %1259 = vmatpush2.bf16.msra.mxu0 0
    %1260 = vmatprep.subr.bf16.mxu0 0
    %1261 = vmatpush2.bf16.msra.mxu0 0
    %1262 = vmatprep.subr.bf16.mxu0 0
    %1263 = vmatpush2.bf16.msra.mxu0 0
    %1264 = vmatprep.subr.bf16.mxu0 0
    %1265 = vmatpush2.bf16.msra.mxu0 0
    %1266 = vmatprep.mubr.bf16.mxu0 0
    %1267 = vmatmul.mubr.bf16.gmra.mxu0 %v1232
    %v1268 = vpop.f32.mrf.mxu0
    %v1269 = vadd.f32 0.0, %v1268
    %v1270 = vpop.f32.mrf.mxu0
    %v1271 = vpop.f32.mrf.mxu0
    %v1272 = vadd.f32 0.0, %v1271
    %v1273 = vpop.f32.mrf.mxu0
    %1274 = vdwg.mxu0
    %v1276 = vsel %vm279, %v1225, 0
    %1278 = vmatprep.subr.bf16.mxu0 0
    %1279 = vmatpush1.bf16.msra.mxu0 0
    %1280 = vmatprep.subr.bf16.mxu0 0
    %1281 = vmatpush1.bf16.msra.mxu0 0
    %1282 = vmatprep.subr.bf16.mxu0 0
    %1283 = vmatpush1.bf16.msra.mxu0 0
    %1284 = vmatprep.subr.bf16.mxu0 0
    %1285 = vmatpush1.bf16.msra.mxu0 0
    %1286 = vmatprep.subr.bf16.mxu0 0
    %1287 = vmatpush1.bf16.msra.mxu0 0
    %1288 = vmatprep.subr.bf16.mxu0 0
    %1289 = vmatpush1.bf16.msra.mxu0 0
    %1290 = vmatprep.subr.bf16.mxu0 0
    %1291 = vmatpush1.bf16.msra.mxu0 0
    %1292 = vmatprep.subr.bf16.mxu0 0
    %1293 = vmatpush1.bf16.msra.mxu0 %v1229
    %1294 = vmatprep.subr.bf16.mxu0 0
    %1295 = vmatpush2.bf16.msra.mxu0 0
    %1296 = vmatprep.subr.bf16.mxu0 0
    %1297 = vmatpush2.bf16.msra.mxu0 0
    %1298 = vmatprep.subr.bf16.mxu0 0
    %1299 = vmatpush2.bf16.msra.mxu0 0
    %1300 = vmatprep.subr.bf16.mxu0 0
    %1301 = vmatpush2.bf16.msra.mxu0 0
    %1302 = vmatprep.subr.bf16.mxu0 0
    %1303 = vmatpush2.bf16.msra.mxu0 0
    %1304 = vmatprep.subr.bf16.mxu0 0
    %1305 = vmatpush2.bf16.msra.mxu0 0
    %1306 = vmatprep.subr.bf16.mxu0 0
    %1307 = vmatpush2.bf16.msra.mxu0 0
    %1308 = vmatprep.subr.bf16.mxu0 0
    %1309 = vmatpush2.bf16.msra.mxu0 0
    %1310 = vmatprep.mubr.bf16.mxu0 0
    %1311 = vmatmul.mubr.bf16.gmra.mxu0 %v1276
    %v1312 = vpop.f32.mrf.mxu0
    %v1313 = vadd.f32 0.0, %v1312
    %v1314 = vpop.f32.mrf.mxu0
    %v1315 = vpop.f32.mrf.mxu0
    %v1316 = vadd.f32 0.0, %v1315
    %v1317 = vpop.f32.mrf.mxu0
    %1318 = vdwg.mxu0
    %v1320 = vsel %vm279, %v1226, 0
    %1322 = vmatprep.subr.bf16.mxu0 0
    %1323 = vmatpush1.bf16.msra.mxu0 0
    %1324 = vmatprep.subr.bf16.mxu0 0
    %1325 = vmatpush1.bf16.msra.mxu0 0
    %1326 = vmatprep.subr.bf16.mxu0 0
    %1327 = vmatpush1.bf16.msra.mxu0 0
    %1328 = vmatprep.subr.bf16.mxu0 0
    %1329 = vmatpush1.bf16.msra.mxu0 0
    %1330 = vmatprep.subr.bf16.mxu0 0
    %1331 = vmatpush1.bf16.msra.mxu0 0
    %1332 = vmatprep.subr.bf16.mxu0 0
    %1333 = vmatpush1.bf16.msra.mxu0 0
    %1334 = vmatprep.subr.bf16.mxu0 0
    %1335 = vmatpush1.bf16.msra.mxu0 0
    %1336 = vmatprep.subr.bf16.mxu0 0
    %1337 = vmatpush1.bf16.msra.mxu0 %v1230
    %1338 = vmatprep.subr.bf16.mxu0 0
    %1339 = vmatpush2.bf16.msra.mxu0 0
    %1340 = vmatprep.subr.bf16.mxu0 0
    %1341 = vmatpush2.bf16.msra.mxu0 0
    %1342 = vmatprep.subr.bf16.mxu0 0
    %1343 = vmatpush2.bf16.msra.mxu0 0
    %1344 = vmatprep.subr.bf16.mxu0 0
    %1345 = vmatpush2.bf16.msra.mxu0 0
    %1346 = vmatprep.subr.bf16.mxu0 0
    %1347 = vmatpush2.bf16.msra.mxu0 0
    %1348 = vmatprep.subr.bf16.mxu0 0
    %1349 = vmatpush2.bf16.msra.mxu0 0
    %1350 = vmatprep.subr.bf16.mxu0 0
    %1351 = vmatpush2.bf16.msra.mxu0 0
    %1352 = vmatprep.subr.bf16.mxu0 0
    %1353 = vmatpush2.bf16.msra.mxu0 0
    %1354 = vmatprep.mubr.bf16.mxu0 0
    %1355 = vmatmul.mubr.bf16.gmra.mxu0 %v1320
    %v1356 = vpop.f32.mrf.mxu0
    %v1357 = vadd.f32 0.0, %v1356
    %v1358 = vpop.f32.mrf.mxu0
    %v1359 = vpop.f32.mrf.mxu0
    %v1360 = vadd.f32 0.0, %v1359
    %v1361 = vpop.f32.mrf.mxu0
    %1362 = vdwg.mxu0
    %v1364 = vsel %vm279, %v1223, 0
    %1366 = vmatprep.subr.bf16.mxu0 0
    %1367 = vmatpush1.bf16.msra.mxu0 0
    %1368 = vmatprep.subr.bf16.mxu0 0
    %1369 = vmatpush1.bf16.msra.mxu0 0
    %1370 = vmatprep.subr.bf16.mxu0 0
    %1371 = vmatpush1.bf16.msra.mxu0 0
    %1372 = vmatprep.subr.bf16.mxu0 0
    %1373 = vmatpush1.bf16.msra.mxu0 0
    %1374 = vmatprep.subr.bf16.mxu0 0
    %1375 = vmatpush1.bf16.msra.mxu0 0
    %1376 = vmatprep.subr.bf16.mxu0 0
    %1377 = vmatpush1.bf16.msra.mxu0 0
    %1378 = vmatprep.subr.bf16.mxu0 0
    %1379 = vmatpush1.bf16.msra.mxu0 0
    %1380 = vmatprep.subr.bf16.mxu0 0
    %1381 = vmatpush1.bf16.msra.mxu0 %v1227
    %1382 = vmatprep.subr.bf16.mxu0 0
    %1383 = vmatpush2.bf16.msra.mxu0 0
    %1384 = vmatprep.subr.bf16.mxu0 0
    %1385 = vmatpush2.bf16.msra.mxu0 0
    %1386 = vmatprep.subr.bf16.mxu0 0
    %1387 = vmatpush2.bf16.msra.mxu0 0
    %1388 = vmatprep.subr.bf16.mxu0 0
    %1389 = vmatpush2.bf16.msra.mxu0 0
    %1390 = vmatprep.subr.bf16.mxu0 0
    %1391 = vmatpush2.bf16.msra.mxu0 0
    %1392 = vmatprep.subr.bf16.mxu0 0
    %1393 = vmatpush2.bf16.msra.mxu0 0
    %1394 = vmatprep.subr.bf16.mxu0 0
    %1395 = vmatpush2.bf16.msra.mxu0 0
    %1396 = vmatprep.subr.bf16.mxu0 0
    %1397 = vmatpush2.bf16.msra.mxu0 0
    %1398 = vmatprep.mubr.bf16.mxu0 0
    %1399 = vmatmul.mubr.bf16.gmra.mxu0 %v1364
    %v1400 = vpop.f32.mrf.mxu0
    %v1401 = vadd.f32 %v1269, %v1400
    %v1402 = vpop.f32.mrf.mxu0
    %v1403 = vpop.f32.mrf.mxu0
    %v1404 = vadd.f32 %v1272, %v1403
    %v1405 = vpop.f32.mrf.mxu0
    %1406 = vdwg.mxu0
    %v1407 = vadd.f32 %v1401, %v1313
    %v1408 = vadd.f32 %v1404, %v1316
    %v1409 = vadd.f32 %v1407, %v1357
    %v1410 = vadd.f32 %v1408, %v1360
    %v1412 = vlaneseq
    %v1413 = vshrl.u32 %v1412, 7
    %v1414 = vsub.s32 0, %v1413
    %v1415 = vrot.slane %v896, %v1414
    %v1417 = vadd.f32 %v1409, %v1415
    %v1418 = vadd.f32 %v1410, %v1415
    %v1419 = vadd.f32 %v1417, %v754
    %v1420 = vadd.f32 %v1418, %v755
    %v1421 = vsel %vm133, %v1419, 0.0
    %1422 = vadd.xlane.f32.xlu0 %v1421
    %v1423 = vpop.xlane.xlu0 %1422
    %v1424 = vsel %vm133, %v1420, 0.0
    %1425 = vadd.xlane.f32.xlu0 %v1424
    %v1426 = vpop.xlane.xlu0 %1425
    %v1427 = vmul.f32 %v1423, %v719
    %v1428 = vmul.f32 %v1426, %v719
    %v1429 = vsub.f32 %v1419, %v1427
    %v1430 = vsub.f32 %v1420, %v1428
    %v1431 = vmul.f32 %v1429, %v1429
    %v1432 = vmul.f32 %v1430, %v1430
    %v1433 = vsel %vm133, %v1431, 0.0
    %1434 = vadd.xlane.f32.xlu0 %v1433
    %v1435 = vpop.xlane.xlu0 %1434
    %v1436 = vsel %vm133, %v1432, 0.0
    %1437 = vadd.xlane.f32.xlu0 %v1436
    %v1438 = vpop.xlane.xlu0 %1437
    %v1439 = vmul.f32 %v1435, %v719
    %v1440 = vmul.f32 %v1438, %v719
    %v1441 = vadd.f32 %v1439, 1e-05
    %v1442 = vadd.f32 %v1440, 1e-05
    %v1443 = vrsqrt.pop %v1441
    %v1444 = vrsqrt.pop %v1442
    %v1445 = vmul.f32 %v1429, %v1443
    %v1446 = vmul.f32 %v1430, %v1444
    %v1447 = vmul.f32 %v1445, %v744
    %v1448 = vmul.f32 %v1446, %v744
    %v1449 = vadd.f32 %v1447, %v752
    %v1450 = vadd.f32 %v1448, %v752
    %v1451 = vld [vmem:[%s16] sm:$0xf]
    %v1452 = vld [vmem:[%s16 + $0x4] sm:$0xf]
    %v1453 = vld [vmem:[%s16 + $0x8] sm:$0xf]
    %v1454 = vld [vmem:[%s16 + $0xc] sm:$0xf]
    %v1455 = vpack.c.bf16 %v1450, %v1449
    %v1456 = vld [vmem:[%s17] sm:$0x1]
    %v1458 = vlaneseq
    %v1459 = vshrl.u32 %v1458, 7
    %v1460 = vsub.s32 0, %v1459
    %v1461 = vrot.slane %v1456, %v1460
    %v1467 = vunpack.c.l.b16 %v1451
    %v1468 = vunpack.c.l.b16 %v1452
    %v1469 = vunpack.c.l.b16 %v1453
    %v1470 = vunpack.c.l.b16 %v1454
    %v1471 = vpack.c.b16 %v1468, %v1467
    %v1472 = vpack.c.b16 %v1470, %v1469
    %v1476 = vsel %vm133, %v1455, 0
    %1478 = vmatprep.subr.bf16.mxu0 0
    %1479 = vmatpush1.bf16.msra.mxu0 0
    %1480 = vmatprep.subr.bf16.mxu0 0
    %1481 = vmatpush1.bf16.msra.mxu0 0
    %1482 = vmatprep.subr.bf16.mxu0 0
    %1483 = vmatpush1.bf16.msra.mxu0 0
    %1484 = vmatprep.subr.bf16.mxu0 0
    %1485 = vmatpush1.bf16.msra.mxu0 0
    %1486 = vmatprep.subr.bf16.mxu0 0
    %1487 = vmatpush1.bf16.msra.mxu0 0
    %1488 = vmatprep.subr.bf16.mxu0 0
    %1489 = vmatpush1.bf16.msra.mxu0 0
    %1490 = vmatprep.subr.bf16.mxu0 0
    %1491 = vmatpush1.bf16.msra.mxu0 %v1472
    %1492 = vmatprep.subr.bf16.mxu0 0
    %1493 = vmatpush1.bf16.msra.mxu0 %v1471
    %1494 = vmatprep.subr.bf16.mxu0 0
    %1495 = vmatpush2.bf16.msra.mxu0 0
    %1496 = vmatprep.subr.bf16.mxu0 0
    %1497 = vmatpush2.bf16.msra.mxu0 0
    %1498 = vmatprep.subr.bf16.mxu0 0
    %1499 = vmatpush2.bf16.msra.mxu0 0
    %1500 = vmatprep.subr.bf16.mxu0 0
    %1501 = vmatpush2.bf16.msra.mxu0 0
    %1502 = vmatprep.subr.bf16.mxu0 0
    %1503 = vmatpush2.bf16.msra.mxu0 0
    %1504 = vmatprep.subr.bf16.mxu0 0
    %1505 = vmatpush2.bf16.msra.mxu0 0
    %1506 = vmatprep.subr.bf16.mxu0 0
    %1507 = vmatpush2.bf16.msra.mxu0 0
    %1508 = vmatprep.subr.bf16.mxu0 0
    %1509 = vmatpush2.bf16.msra.mxu0 0
    %1510 = vmatprep.mubr.bf16.mxu0 0
    %1511 = vmatmul.mubr.bf16.gmra.mxu0 %v1476
    %v1512 = vpop.f32.mrf.mxu0
    %v1513 = vadd.f32 %v1461, %v1512
    %v1514 = vpop.f32.mrf.mxu0
    %v1515 = vpop.f32.mrf.mxu0
    %v1516 = vadd.f32 %v1461, %v1515
    %v1517 = vpop.f32.mrf.mxu0
    %1518 = vdwg.mxu0
    %v1519 = vmax.f32 %v1513, 0.0
    %v1520 = vmax.f32 %v1516, 0.0
    %v1521 = vld [vmem:[%s18] sm:$0xf]
    %v1522 = vld [vmem:[%s18 + $0x4] sm:$0xf]
    %v1523 = vld [vmem:[%s18 + $0x8] sm:$0xf]
    %v1524 = vld [vmem:[%s18 + $0xc] sm:$0xf]
    %v1525 = vld [vmem:[%s18 + $0x10] sm:$0xf]
    %v1526 = vld [vmem:[%s18 + $0x14] sm:$0xf]
    %v1527 = vld [vmem:[%s18 + $0x18] sm:$0xf]
    %v1528 = vld [vmem:[%s18 + $0x1c] sm:$0xf]
    %v1529 = vpack.c.bf16 %v1520, %v1519
    %v1530 = vld [vmem:[%s19] sm:$0x1]
    %v1532 = vlaneseq
    %v1533 = vshrl.u32 %v1532, 7
    %v1534 = vsub.s32 0, %v1533
    %v1535 = vrot.slane %v1530, %v1534
    %v1545 = vunpack.c.l.b16 %v1521
    %v1546 = vunpack.c.l.b16 %v1522
    %v1547 = vunpack.c.l.b16 %v1523
    %v1548 = vunpack.c.l.b16 %v1524
    %v1549 = vunpack.c.l.b16 %v1525
    %v1550 = vunpack.c.l.b16 %v1526
    %v1551 = vunpack.c.l.b16 %v1527
    %v1552 = vunpack.c.l.b16 %v1528
    %v1553 = vpack.c.b16 %v1546, %v1545
    %v1554 = vpack.c.b16 %v1548, %v1547
    %v1555 = vpack.c.b16 %v1550, %v1549
    %v1556 = vpack.c.b16 %v1552, %v1551
    %vm1561 = vcmask 523264
    %v1563 = vsel %vm1561, %v1529, 0
    %1565 = vmatprep.subr.bf16.mxu0 0
    %1566 = vmatpush1.bf16.msra.mxu0 0
    %1567 = vmatprep.subr.bf16.mxu0 0
    %1568 = vmatpush1.bf16.msra.mxu0 0
    %1569 = vmatprep.subr.bf16.mxu0 0
    %1570 = vmatpush1.bf16.msra.mxu0 0
    %1571 = vmatprep.subr.bf16.mxu0 0
    %1572 = vmatpush1.bf16.msra.mxu0 0
    %1573 = vmatprep.subr.bf16.mxu0 0
    %1574 = vmatpush1.bf16.msra.mxu0 %v1556
    %1575 = vmatprep.subr.bf16.mxu0 0
    %1576 = vmatpush1.bf16.msra.mxu0 %v1555
    %1577 = vmatprep.subr.bf16.mxu0 0
    %1578 = vmatpush1.bf16.msra.mxu0 %v1554
    %1579 = vmatprep.subr.bf16.mxu0 0
    %1580 = vmatpush1.bf16.msra.mxu0 %v1553
    %1581 = vmatprep.subr.bf16.mxu0 0
    %1582 = vmatpush2.bf16.msra.mxu0 0
    %1583 = vmatprep.subr.bf16.mxu0 0
    %1584 = vmatpush2.bf16.msra.mxu0 0
    %1585 = vmatprep.subr.bf16.mxu0 0
    %1586 = vmatpush2.bf16.msra.mxu0 0
    %1587 = vmatprep.subr.bf16.mxu0 0
    %1588 = vmatpush2.bf16.msra.mxu0 0
    %1589 = vmatprep.subr.bf16.mxu0 0
    %1590 = vmatpush2.bf16.msra.mxu0 0
    %1591 = vmatprep.subr.bf16.mxu0 0
    %1592 = vmatpush2.bf16.msra.mxu0 0
    %1593 = vmatprep.subr.bf16.mxu0 0
    %1594 = vmatpush2.bf16.msra.mxu0 0
    %1595 = vmatprep.subr.bf16.mxu0 0
    %1596 = vmatpush2.bf16.msra.mxu0 0
    %1597 = vmatprep.mubr.bf16.mxu0 0
    %1598 = vmatmul.mubr.bf16.gmra.mxu0 %v1563
    %v1599 = vpop.f32.mrf.mxu0
    %v1600 = vadd.f32 %v1535, %v1599
    %v1601 = vpop.f32.mrf.mxu0
    %v1602 = vpop.f32.mrf.mxu0
    %v1603 = vadd.f32 %v1535, %v1602
    %v1604 = vpop.f32.mrf.mxu0
    %1605 = vdwg.mxu0
    %v1606 = vadd.f32 %v1600, %v1449
    %v1607 = vadd.f32 %v1603, %v1450
    %v1608 = vsel %vm133, %v1606, 0.0
    %1609 = vadd.xlane.f32.xlu0 %v1608
    %v1610 = vpop.xlane.xlu0 %1609
    %v1611 = vsel %vm133, %v1607, 0.0
    %1612 = vadd.xlane.f32.xlu0 %v1611
    %v1613 = vpop.xlane.xlu0 %1612
    %v1614 = vmul.f32 %v1610, %v719
    %v1615 = vmul.f32 %v1613, %v719
    %v1616 = vsub.f32 %v1606, %v1614
    %v1617 = vsub.f32 %v1607, %v1615
    %v1618 = vmul.f32 %v1616, %v1616
    %v1619 = vmul.f32 %v1617, %v1617
    %v1620 = vsel %vm133, %v1618, 0.0
    %1621 = vadd.xlane.f32.xlu0 %v1620
    %v1622 = vpop.xlane.xlu0 %1621
    %v1623 = vsel %vm133, %v1619, 0.0
    %1624 = vadd.xlane.f32.xlu0 %v1623
    %v1625 = vpop.xlane.xlu0 %1624
    %v1626 = vmul.f32 %v1622, %v719
    %v1627 = vmul.f32 %v1625, %v719
    %v1628 = vadd.f32 %v1626, 1e-05
    %v1629 = vadd.f32 %v1627, 1e-05
    %v1630 = vrsqrt.pop %v1628
    %v1631 = vrsqrt.pop %v1629
    %v1632 = vmul.f32 %v1616, %v1630
    %v1633 = vmul.f32 %v1617, %v1631
    %v1634 = vmul.f32 %v1632, %v744
    %v1635 = vmul.f32 %v1633, %v744
    %v1636 = vadd.f32 %v1634, %v752
    %v1637 = vadd.f32 %v1635, %v752
    %s1638 = scalar_lea.vmem %s6, 16
    %v1639 = vld [vmem:[%s1638] sm:$0xf]
    %v1640 = vld [vmem:[%s1638 + $0x4] sm:$0xf]
    %v1641 = vld [vmem:[%s1638 + $0x8] sm:$0xf]
    %v1642 = vld [vmem:[%s1638 + $0xc] sm:$0xf]
    %v1643 = vpack.c.bf16 %v1637, %v1636
    %s1644 = scalar_lea.vmem %s7, 1
    %v1645 = vld [vmem:[%s1644] sm:$0x1]
    %v1647 = vlaneseq
    %v1648 = vshrl.u32 %v1647, 7
    %v1649 = vsub.s32 0, %v1648
    %v1650 = vrot.slane %v1645, %v1649
    %v1656 = vunpack.c.l.b16 %v1639
    %v1657 = vunpack.c.l.b16 %v1640
    %v1658 = vunpack.c.l.b16 %v1641
    %v1659 = vunpack.c.l.b16 %v1642
    %v1660 = vpack.c.b16 %v1657, %v1656
    %v1661 = vpack.c.b16 %v1659, %v1658
    %v1665 = vsel %vm133, %v1643, 0
    %1667 = vmatprep.subr.bf16.mxu0 0
    %1668 = vmatpush1.bf16.msra.mxu0 0
    %1669 = vmatprep.subr.bf16.mxu0 0
    %1670 = vmatpush1.bf16.msra.mxu0 0
    %1671 = vmatprep.subr.bf16.mxu0 0
    %1672 = vmatpush1.bf16.msra.mxu0 0
    %1673 = vmatprep.subr.bf16.mxu0 0
    %1674 = vmatpush1.bf16.msra.mxu0 0
    %1675 = vmatprep.subr.bf16.mxu0 0
    %1676 = vmatpush1.bf16.msra.mxu0 0
    %1677 = vmatprep.subr.bf16.mxu0 0
    %1678 = vmatpush1.bf16.msra.mxu0 0
    %1679 = vmatprep.subr.bf16.mxu0 0
    %1680 = vmatpush1.bf16.msra.mxu0 %v1661
    %1681 = vmatprep.subr.bf16.mxu0 0
    %1682 = vmatpush1.bf16.msra.mxu0 %v1660
    %1683 = vmatprep.subr.bf16.mxu0 0
    %1684 = vmatpush2.bf16.msra.mxu0 0
    %1685 = vmatprep.subr.bf16.mxu0 0
    %1686 = vmatpush2.bf16.msra.mxu0 0
    %1687 = vmatprep.subr.bf16.mxu0 0
    %1688 = vmatpush2.bf16.msra.mxu0 0
    %1689 = vmatprep.subr.bf16.mxu0 0
    %1690 = vmatpush2.bf16.msra.mxu0 0
    %1691 = vmatprep.subr.bf16.mxu0 0
    %1692 = vmatpush2.bf16.msra.mxu0 0
    %1693 = vmatprep.subr.bf16.mxu0 0
    %1694 = vmatpush2.bf16.msra.mxu0 0
    %1695 = vmatprep.subr.bf16.mxu0 0
    %1696 = vmatpush2.bf16.msra.mxu0 0
    %1697 = vmatprep.subr.bf16.mxu0 0
    %1698 = vmatpush2.bf16.msra.mxu0 0
    %1699 = vmatprep.mubr.bf16.mxu0 0
    %1700 = vmatmul.mubr.bf16.gmra.mxu0 %v1665
    %v1701 = vpop.f32.mrf.mxu0
    %v1702 = vadd.f32 %v1650, %v1701
    %v1703 = vpop.f32.mrf.mxu0
    %v1704 = vpop.f32.mrf.mxu0
    %v1705 = vadd.f32 %v1650, %v1704
    %v1706 = vpop.f32.mrf.mxu0
    %1707 = vdwg.mxu0
    %s1708 = scalar_lea.vmem %s8, 16
    %v1709 = vld [vmem:[%s1708] sm:$0xf]
    %v1710 = vld [vmem:[%s1708 + $0x4] sm:$0xf]
    %v1711 = vld [vmem:[%s1708 + $0x8] sm:$0xf]
    %v1712 = vld [vmem:[%s1708 + $0xc] sm:$0xf]
    %s1713 = scalar_lea.vmem %s9, 1
    %v1714 = vld [vmem:[%s1713] sm:$0x1]
    %v1715 = vmul.f32 %v1702, %v93
    %v1716 = vmul.f32 %v1705, %v94
    %v1717 = vmul.f32 %v1702, %v95
    %v1718 = vmul.f32 %v1705, %v96
    %v1719 = vmul.f32 %v1702, %v97
    %v1720 = vmul.f32 %v1705, %v98
    %v1721 = vmul.f32 %v1702, %v99
    %v1722 = vmul.f32 %v1705, %v100
    %v1723 = vpack.c.bf16 %v1716, %v1715
    %v1724 = vpack.c.bf16 %v1718, %v1717
    %v1725 = vpack.c.bf16 %v1720, %v1719
    %v1726 = vpack.c.bf16 %v1722, %v1721
    %v1727 = vpack.c.bf16 %v1705, %v1702
    %1729 = vrot.lane.b32.xlu0 %v1727, 96
    %v1730 = vpop.permute.xlu0 %1729
    %v1732 = vsel %vm133, %v1723, 0
    %v1735 = vsel %vm133, %v1724, 0
    %v1738 = vsel %vm133, %v1725, 0
    %v1741 = vsel %vm133, %v1726, 0
    %v1744 = vsel %vm133, %v1730, 0
    %1746 = vmatprep.subr.bf16.mxu0 0
    %1747 = vmatpush1.bf16.xpose.msra.mxu0 0
    %1748 = vmatprep.subr.bf16.mxu0 0
    %1749 = vmatpush1.bf16.xpose.msra.mxu0 0
    %1750 = vmatprep.subr.bf16.mxu0 0
    %1751 = vmatpush1.bf16.xpose.msra.mxu0 0
    %1752 = vmatprep.subr.bf16.mxu0 0
    %1753 = vmatpush1.bf16.xpose.msra.mxu0 0
    %1754 = vmatprep.subr.bf16.mxu0 0
    %1755 = vmatpush1.bf16.xpose.msra.mxu0 0
    %1756 = vmatprep.subr.bf16.mxu0 0
    %1757 = vmatpush1.bf16.xpose.msra.mxu0 0
    %1758 = vmatprep.subr.bf16.mxu0 0
    %1759 = vmatpush1.bf16.xpose.msra.mxu0 0
    %1760 = vmatprep.subr.bf16.mxu0 0
    %1761 = vmatpush1.bf16.xpose.msra.mxu0 %v1744
    %1762 = vmatprep.subr.bf16.mxu0 0
    %1763 = vmatpush2.bf16.xpose.msra.mxu0 0
    %1764 = vmatprep.subr.bf16.mxu0 0
    %1765 = vmatpush2.bf16.xpose.msra.mxu0 0
    %1766 = vmatprep.subr.bf16.mxu0 0
    %1767 = vmatpush2.bf16.xpose.msra.mxu0 0
    %1768 = vmatprep.subr.bf16.mxu0 0
    %1769 = vmatpush2.bf16.xpose.msra.mxu0 0
    %1770 = vmatprep.subr.bf16.mxu0 0
    %1771 = vmatpush2.bf16.xpose.msra.mxu0 0
    %1772 = vmatprep.subr.bf16.mxu0 0
    %1773 = vmatpush2.bf16.xpose.msra.mxu0 0
    %1774 = vmatprep.subr.bf16.mxu0 0
    %1775 = vmatpush2.bf16.xpose.msra.mxu0 0
    %1776 = vmatprep.subr.bf16.mxu0 0
    %1777 = vmatpush2.bf16.xpose.msra.mxu0 0
    %1778 = vmatprep.mubr.bf16.mxu0 0
    %1779 = vmatmul.mubr.bf16.gmra.mxu0 %v1732
    %v1780 = vpop.f32.mrf.mxu0
    %v1781 = vadd.f32 %v77, %v1780
    %v1782 = vpop.f32.mrf.mxu0
    %v1783 = vpop.f32.mrf.mxu0
    %v1784 = vadd.f32 %v78, %v1783
    %v1785 = vpop.f32.mrf.mxu0
    %1786 = vmatprep.mubr.bf16.mxu0 0
    %1787 = vmatmul.mubr.bf16.gmra.mxu0 %v1735
    %v1788 = vpop.f32.mrf.mxu0
    %v1789 = vadd.f32 %v79, %v1788
    %v1790 = vpop.f32.mrf.mxu0
    %v1791 = vpop.f32.mrf.mxu0
    %v1792 = vadd.f32 %v80, %v1791
    %v1793 = vpop.f32.mrf.mxu0
    %1794 = vmatprep.mubr.bf16.mxu0 0
    %1795 = vmatmul.mubr.bf16.gmra.mxu0 %v1738
    %v1796 = vpop.f32.mrf.mxu0
    %v1797 = vadd.f32 %v81, %v1796
    %v1798 = vpop.f32.mrf.mxu0
    %v1799 = vpop.f32.mrf.mxu0
    %v1800 = vadd.f32 %v82, %v1799
    %v1801 = vpop.f32.mrf.mxu0
    %1802 = vmatprep.mubr.bf16.mxu0 0
    %1803 = vmatmul.mubr.bf16.gmra.mxu0 %v1741
    %v1804 = vpop.f32.mrf.mxu0
    %v1805 = vadd.f32 %v83, %v1804
    %v1806 = vpop.f32.mrf.mxu0
    %v1807 = vpop.f32.mrf.mxu0
    %v1808 = vadd.f32 %v84, %v1807
    %v1809 = vpop.f32.mrf.mxu0
    %1810 = vdwg.mxu0
    %v1811 = vsel %vm279, %v1781, -inf
    %1812 = vmax.xlane.f32.xlu0 %v1811
    %v1813 = vpop.xlane.xlu0 %1812
    %v1814 = vsel %vm279, %v1784, -inf
    %1815 = vmax.xlane.f32.xlu0 %v1814
    %v1816 = vpop.xlane.xlu0 %1815
    %v1817 = vsel %vm279, %v1789, -inf
    %1818 = vmax.xlane.f32.xlu0 %v1817
    %v1819 = vpop.xlane.xlu0 %1818
    %v1820 = vsel %vm279, %v1792, -inf
    %1821 = vmax.xlane.f32.xlu0 %v1820
    %v1822 = vpop.xlane.xlu0 %1821
    %v1823 = vsel %vm279, %v1797, -inf
    %1824 = vmax.xlane.f32.xlu0 %v1823
    %v1825 = vpop.xlane.xlu0 %1824
    %v1826 = vsel %vm279, %v1800, -inf
    %1827 = vmax.xlane.f32.xlu0 %v1826
    %v1828 = vpop.xlane.xlu0 %1827
    %v1829 = vsel %vm279, %v1805, -inf
    %1830 = vmax.xlane.f32.xlu0 %v1829
    %v1831 = vpop.xlane.xlu0 %1830
    %v1832 = vsel %vm279, %v1808, -inf
    %1833 = vmax.xlane.f32.xlu0 %v1832
    %v1834 = vpop.xlane.xlu0 %1833
    %v1835 = vsub.f32 %v1781, %v1813
    %v1836 = vsub.f32 %v1784, %v1816
    %v1837 = vsub.f32 %v1789, %v1819
    %v1838 = vsub.f32 %v1792, %v1822
    %v1839 = vsub.f32 %v1797, %v1825
    %v1840 = vsub.f32 %v1800, %v1828
    %v1841 = vsub.f32 %v1805, %v1831
    %v1842 = vsub.f32 %v1808, %v1834
    %v1843 = vmul.f32 %v1835, 1.442695
    %v1844 = vpow.pop %v1843
    %v1845 = vmul.f32 %v1836, 1.442695
    %v1846 = vpow.pop %v1845
    %v1847 = vmul.f32 %v1837, 1.442695
    %v1848 = vpow.pop %v1847
    %v1849 = vmul.f32 %v1838, 1.442695
    %v1850 = vpow.pop %v1849
    %v1851 = vmul.f32 %v1839, 1.442695
    %v1852 = vpow.pop %v1851
    %v1853 = vmul.f32 %v1840, 1.442695
    %v1854 = vpow.pop %v1853
    %v1855 = vmul.f32 %v1841, 1.442695
    %v1856 = vpow.pop %v1855
    %v1857 = vmul.f32 %v1842, 1.442695
    %v1858 = vpow.pop %v1857
    %v1859 = vsel %vm279, %v1844, 0.0
    %1860 = vadd.xlane.f32.xlu0 %v1859
    %v1861 = vpop.xlane.xlu0 %1860
    %v1862 = vsel %vm279, %v1846, 0.0
    %1863 = vadd.xlane.f32.xlu0 %v1862
    %v1864 = vpop.xlane.xlu0 %1863
    %v1865 = vsel %vm279, %v1848, 0.0
    %1866 = vadd.xlane.f32.xlu0 %v1865
    %v1867 = vpop.xlane.xlu0 %1866
    %v1868 = vsel %vm279, %v1850, 0.0
    %1869 = vadd.xlane.f32.xlu0 %v1868
    %v1870 = vpop.xlane.xlu0 %1869
    %v1871 = vsel %vm279, %v1852, 0.0
    %1872 = vadd.xlane.f32.xlu0 %v1871
    %v1873 = vpop.xlane.xlu0 %1872
    %v1874 = vsel %vm279, %v1854, 0.0
    %1875 = vadd.xlane.f32.xlu0 %v1874
    %v1876 = vpop.xlane.xlu0 %1875
    %v1877 = vsel %vm279, %v1856, 0.0
    %1878 = vadd.xlane.f32.xlu0 %v1877
    %v1879 = vpop.xlane.xlu0 %1878
    %v1880 = vsel %vm279, %v1858, 0.0
    %1881 = vadd.xlane.f32.xlu0 %v1880
    %v1882 = vpop.xlane.xlu0 %1881
    %v1883 = vrcp.pop %v1861
    %v1884 = vrcp.pop %v1864
    %v1885 = vrcp.pop %v1867
    %v1886 = vrcp.pop %v1870
    %v1887 = vrcp.pop %v1873
    %v1888 = vrcp.pop %v1876
    %v1889 = vrcp.pop %v1879
    %v1890 = vrcp.pop %v1882
    %v1891 = vmul.f32 %v1844, %v1883
    %v1892 = vmul.f32 %v1846, %v1884
    %v1893 = vmul.f32 %v1848, %v1885
    %v1894 = vmul.f32 %v1850, %v1886
    %v1895 = vmul.f32 %v1852, %v1887
    %v1896 = vmul.f32 %v1854, %v1888
    %v1897 = vmul.f32 %v1856, %v1889
    %v1898 = vmul.f32 %v1858, %v1890
    %v1899 = vmul.f32 %v1702, %v377
    %v1900 = vmul.f32 %v1705, %v379
    %v1901 = vmul.f32 %v1702, %v381
    %v1902 = vmul.f32 %v1705, %v383
    %v1903 = vmul.f32 %v1702, %v385
    %v1904 = vmul.f32 %v1705, %v387
    %v1905 = vmul.f32 %v1702, %v389
    %v1906 = vmul.f32 %v1705, %v391
    %v1907 = vpack.c.bf16 %v1900, %v1899
    %v1908 = vpack.c.bf16 %v1902, %v1901
    %v1909 = vpack.c.bf16 %v1904, %v1903
    %v1910 = vpack.c.bf16 %v1906, %v1905
    %1915 = vrot.lane.b32.xlu0 %v1907, 64
    %v1916 = vpop.permute.xlu0 %1915
    %1917 = vrot.lane.b32.xlu0 %v1908, 64
    %v1918 = vpop.permute.xlu0 %1917
    %1919 = vrot.lane.b32.xlu0 %v1909, 64
    %v1920 = vpop.permute.xlu0 %1919
    %1921 = vrot.lane.b32.xlu0 %v1910, 64
    %v1922 = vpop.permute.xlu0 %1921
    %v1927 = vunpack.c.l.b16 %v1709
    %v1928 = vunpack.c.l.b16 %v1710
    %v1929 = vunpack.c.l.b16 %v1711
    %v1930 = vunpack.c.l.b16 %v1712
    %v1931 = vpack.c.b16 %v1928, %v1927
    %v1932 = vpack.c.b16 %v1930, %v1929
    %v1936 = vsel %vm133, %v1916, 0
    %v1939 = vsel %vm133, %v1918, 0
    %v1942 = vsel %vm133, %v1920, 0
    %v1945 = vsel %vm133, %v1922, 0
    %1947 = vmatprep.subr.bf16.mxu0 0
    %1948 = vmatpush1.bf16.msra.mxu0 0
    %1949 = vmatprep.subr.bf16.mxu0 0
    %1950 = vmatpush1.bf16.msra.mxu0 0
    %1951 = vmatprep.subr.bf16.mxu0 0
    %1952 = vmatpush1.bf16.msra.mxu0 0
    %1953 = vmatprep.subr.bf16.mxu0 0
    %1954 = vmatpush1.bf16.msra.mxu0 0
    %1955 = vmatprep.subr.bf16.mxu0 0
    %1956 = vmatpush1.bf16.msra.mxu0 0
    %1957 = vmatprep.subr.bf16.mxu0 0
    %1958 = vmatpush1.bf16.msra.mxu0 0
    %1959 = vmatprep.subr.bf16.mxu0 0
    %1960 = vmatpush1.bf16.msra.mxu0 %v1932
    %1961 = vmatprep.subr.bf16.mxu0 0
    %1962 = vmatpush1.bf16.msra.mxu0 %v1931
    %1963 = vmatprep.subr.bf16.mxu0 0
    %1964 = vmatpush2.bf16.msra.mxu0 0
    %1965 = vmatprep.subr.bf16.mxu0 0
    %1966 = vmatpush2.bf16.msra.mxu0 0
    %1967 = vmatprep.subr.bf16.mxu0 0
    %1968 = vmatpush2.bf16.msra.mxu0 0
    %1969 = vmatprep.subr.bf16.mxu0 0
    %1970 = vmatpush2.bf16.msra.mxu0 0
    %1971 = vmatprep.subr.bf16.mxu0 0
    %1972 = vmatpush2.bf16.msra.mxu0 0
    %1973 = vmatprep.subr.bf16.mxu0 0
    %1974 = vmatpush2.bf16.msra.mxu0 0
    %1975 = vmatprep.subr.bf16.mxu0 0
    %1976 = vmatpush2.bf16.msra.mxu0 0
    %1977 = vmatprep.subr.bf16.mxu0 0
    %1978 = vmatpush2.bf16.msra.mxu0 0
    %1979 = vmatprep.mubr.bf16.mxu0 0
    %1980 = vmatmul.mubr.bf16.gmra.mxu0 %v1936
    %v1981 = vpop.f32.mrf.mxu0
    %v1982 = vadd.f32 0.0, %v1981
    %v1983 = vpop.f32.mrf.mxu0
    %v1984 = vpop.f32.mrf.mxu0
    %v1985 = vadd.f32 0.0, %v1984
    %v1986 = vpop.f32.mrf.mxu0
    %1987 = vmatprep.mubr.bf16.mxu0 0
    %1988 = vmatmul.mubr.bf16.gmra.mxu0 %v1939
    %v1989 = vpop.f32.mrf.mxu0
    %v1990 = vadd.f32 0.0, %v1989
    %v1991 = vpop.f32.mrf.mxu0
    %v1992 = vpop.f32.mrf.mxu0
    %v1993 = vadd.f32 0.0, %v1992
    %v1994 = vpop.f32.mrf.mxu0
    %1995 = vmatprep.mubr.bf16.mxu0 0
    %1996 = vmatmul.mubr.bf16.gmra.mxu0 %v1942
    %v1997 = vpop.f32.mrf.mxu0
    %v1998 = vadd.f32 0.0, %v1997
    %v1999 = vpop.f32.mrf.mxu0
    %v2000 = vpop.f32.mrf.mxu0
    %v2001 = vadd.f32 0.0, %v2000
    %v2002 = vpop.f32.mrf.mxu0
    %2003 = vmatprep.mubr.bf16.mxu0 0
    %2004 = vmatmul.mubr.bf16.gmra.mxu0 %v1945
    %v2005 = vpop.f32.mrf.mxu0
    %v2006 = vadd.f32 0.0, %v2005
    %v2007 = vpop.f32.mrf.mxu0
    %v2008 = vpop.f32.mrf.mxu0
    %v2009 = vadd.f32 0.0, %v2008
    %v2010 = vpop.f32.mrf.mxu0
    %2011 = vdwg.mxu0
    %v2012 = vpack.c.bf16 %v1892, %v1891
    %v2013 = vpack.c.bf16 %v1894, %v1893
    %v2014 = vpack.c.bf16 %v1896, %v1895
    %v2015 = vpack.c.bf16 %v1898, %v1897
    %v2016 = vpack.c.bf16 %v1985, %v1982
    %v2017 = vpack.c.bf16 %v1993, %v1990
    %v2018 = vpack.c.bf16 %v2001, %v1998
    %v2019 = vpack.c.bf16 %v2009, %v2006
    %v2021 = vsel %vm279, %v2013, 0
    %2023 = vmatprep.subr.bf16.mxu0 0
    %2024 = vmatpush1.bf16.msra.mxu0 0
    %2025 = vmatprep.subr.bf16.mxu0 0
    %2026 = vmatpush1.bf16.msra.mxu0 0
    %2027 = vmatprep.subr.bf16.mxu0 0
    %2028 = vmatpush1.bf16.msra.mxu0 0
    %2029 = vmatprep.subr.bf16.mxu0 0
    %2030 = vmatpush1.bf16.msra.mxu0 0
    %2031 = vmatprep.subr.bf16.mxu0 0
    %2032 = vmatpush1.bf16.msra.mxu0 0
    %2033 = vmatprep.subr.bf16.mxu0 0
    %2034 = vmatpush1.bf16.msra.mxu0 0
    %2035 = vmatprep.subr.bf16.mxu0 0
    %2036 = vmatpush1.bf16.msra.mxu0 0
    %2037 = vmatprep.subr.bf16.mxu0 0
    %2038 = vmatpush1.bf16.msra.mxu0 %v2017
    %2039 = vmatprep.subr.bf16.mxu0 0
    %2040 = vmatpush2.bf16.msra.mxu0 0
    %2041 = vmatprep.subr.bf16.mxu0 0
    %2042 = vmatpush2.bf16.msra.mxu0 0
    %2043 = vmatprep.subr.bf16.mxu0 0
    %2044 = vmatpush2.bf16.msra.mxu0 0
    %2045 = vmatprep.subr.bf16.mxu0 0
    %2046 = vmatpush2.bf16.msra.mxu0 0
    %2047 = vmatprep.subr.bf16.mxu0 0
    %2048 = vmatpush2.bf16.msra.mxu0 0
    %2049 = vmatprep.subr.bf16.mxu0 0
    %2050 = vmatpush2.bf16.msra.mxu0 0
    %2051 = vmatprep.subr.bf16.mxu0 0
    %2052 = vmatpush2.bf16.msra.mxu0 0
    %2053 = vmatprep.subr.bf16.mxu0 0
    %2054 = vmatpush2.bf16.msra.mxu0 0
    %2055 = vmatprep.mubr.bf16.mxu0 0
    %2056 = vmatmul.mubr.bf16.gmra.mxu0 %v2021
    %v2057 = vpop.f32.mrf.mxu0
    %v2058 = vadd.f32 0.0, %v2057
    %v2059 = vpop.f32.mrf.mxu0
    %v2060 = vpop.f32.mrf.mxu0
    %v2061 = vadd.f32 0.0, %v2060
    %v2062 = vpop.f32.mrf.mxu0
    %2063 = vdwg.mxu0
    %v2065 = vsel %vm279, %v2014, 0
    %2067 = vmatprep.subr.bf16.mxu0 0
    %2068 = vmatpush1.bf16.msra.mxu0 0
    %2069 = vmatprep.subr.bf16.mxu0 0
    %2070 = vmatpush1.bf16.msra.mxu0 0
    %2071 = vmatprep.subr.bf16.mxu0 0
    %2072 = vmatpush1.bf16.msra.mxu0 0
    %2073 = vmatprep.subr.bf16.mxu0 0
    %2074 = vmatpush1.bf16.msra.mxu0 0
    %2075 = vmatprep.subr.bf16.mxu0 0
    %2076 = vmatpush1.bf16.msra.mxu0 0
    %2077 = vmatprep.subr.bf16.mxu0 0
    %2078 = vmatpush1.bf16.msra.mxu0 0
    %2079 = vmatprep.subr.bf16.mxu0 0
    %2080 = vmatpush1.bf16.msra.mxu0 0
    %2081 = vmatprep.subr.bf16.mxu0 0
    %2082 = vmatpush1.bf16.msra.mxu0 %v2018
    %2083 = vmatprep.subr.bf16.mxu0 0
    %2084 = vmatpush2.bf16.msra.mxu0 0
    %2085 = vmatprep.subr.bf16.mxu0 0
    %2086 = vmatpush2.bf16.msra.mxu0 0
    %2087 = vmatprep.subr.bf16.mxu0 0
    %2088 = vmatpush2.bf16.msra.mxu0 0
    %2089 = vmatprep.subr.bf16.mxu0 0
    %2090 = vmatpush2.bf16.msra.mxu0 0
    %2091 = vmatprep.subr.bf16.mxu0 0
    %2092 = vmatpush2.bf16.msra.mxu0 0
    %2093 = vmatprep.subr.bf16.mxu0 0
    %2094 = vmatpush2.bf16.msra.mxu0 0
    %2095 = vmatprep.subr.bf16.mxu0 0
    %2096 = vmatpush2.bf16.msra.mxu0 0
    %2097 = vmatprep.subr.bf16.mxu0 0
    %2098 = vmatpush2.bf16.msra.mxu0 0
    %2099 = vmatprep.mubr.bf16.mxu0 0
    %2100 = vmatmul.mubr.bf16.gmra.mxu0 %v2065
    %v2101 = vpop.f32.mrf.mxu0
    %v2102 = vadd.f32 0.0, %v2101
    %v2103 = vpop.f32.mrf.mxu0
    %v2104 = vpop.f32.mrf.mxu0
    %v2105 = vadd.f32 0.0, %v2104
    %v2106 = vpop.f32.mrf.mxu0
    %2107 = vdwg.mxu0
    %v2109 = vsel %vm279, %v2015, 0
    %2111 = vmatprep.subr.bf16.mxu0 0
    %2112 = vmatpush1.bf16.msra.mxu0 0
    %2113 = vmatprep.subr.bf16.mxu0 0
    %2114 = vmatpush1.bf16.msra.mxu0 0
    %2115 = vmatprep.subr.bf16.mxu0 0
    %2116 = vmatpush1.bf16.msra.mxu0 0
    %2117 = vmatprep.subr.bf16.mxu0 0
    %2118 = vmatpush1.bf16.msra.mxu0 0
    %2119 = vmatprep.subr.bf16.mxu0 0
    %2120 = vmatpush1.bf16.msra.mxu0 0
    %2121 = vmatprep.subr.bf16.mxu0 0
    %2122 = vmatpush1.bf16.msra.mxu0 0
    %2123 = vmatprep.subr.bf16.mxu0 0
    %2124 = vmatpush1.bf16.msra.mxu0 0
    %2125 = vmatprep.subr.bf16.mxu0 0
    %2126 = vmatpush1.bf16.msra.mxu0 %v2019
    %2127 = vmatprep.subr.bf16.mxu0 0
    %2128 = vmatpush2.bf16.msra.mxu0 0
    %2129 = vmatprep.subr.bf16.mxu0 0
    %2130 = vmatpush2.bf16.msra.mxu0 0
    %2131 = vmatprep.subr.bf16.mxu0 0
    %2132 = vmatpush2.bf16.msra.mxu0 0
    %2133 = vmatprep.subr.bf16.mxu0 0
    %2134 = vmatpush2.bf16.msra.mxu0 0
    %2135 = vmatprep.subr.bf16.mxu0 0
    %2136 = vmatpush2.bf16.msra.mxu0 0
    %2137 = vmatprep.subr.bf16.mxu0 0
    %2138 = vmatpush2.bf16.msra.mxu0 0
    %2139 = vmatprep.subr.bf16.mxu0 0
    %2140 = vmatpush2.bf16.msra.mxu0 0
    %2141 = vmatprep.subr.bf16.mxu0 0
    %2142 = vmatpush2.bf16.msra.mxu0 0
    %2143 = vmatprep.mubr.bf16.mxu0 0
    %2144 = vmatmul.mubr.bf16.gmra.mxu0 %v2109
    %v2145 = vpop.f32.mrf.mxu0
    %v2146 = vadd.f32 0.0, %v2145
    %v2147 = vpop.f32.mrf.mxu0
    %v2148 = vpop.f32.mrf.mxu0
    %v2149 = vadd.f32 0.0, %v2148
    %v2150 = vpop.f32.mrf.mxu0
    %2151 = vdwg.mxu0
    %v2153 = vsel %vm279, %v2012, 0
    %2155 = vmatprep.subr.bf16.mxu0 0
    %2156 = vmatpush1.bf16.msra.mxu0 0
    %2157 = vmatprep.subr.bf16.mxu0 0
    %2158 = vmatpush1.bf16.msra.mxu0 0
    %2159 = vmatprep.subr.bf16.mxu0 0
    %2160 = vmatpush1.bf16.msra.mxu0 0
    %2161 = vmatprep.subr.bf16.mxu0 0
    %2162 = vmatpush1.bf16.msra.mxu0 0
    %2163 = vmatprep.subr.bf16.mxu0 0
    %2164 = vmatpush1.bf16.msra.mxu0 0
    %2165 = vmatprep.subr.bf16.mxu0 0
    %2166 = vmatpush1.bf16.msra.mxu0 0
    %2167 = vmatprep.subr.bf16.mxu0 0
    %2168 = vmatpush1.bf16.msra.mxu0 0
    %2169 = vmatprep.subr.bf16.mxu0 0
    %2170 = vmatpush1.bf16.msra.mxu0 %v2016
    %2171 = vmatprep.subr.bf16.mxu0 0
    %2172 = vmatpush2.bf16.msra.mxu0 0
    %2173 = vmatprep.subr.bf16.mxu0 0
    %2174 = vmatpush2.bf16.msra.mxu0 0
    %2175 = vmatprep.subr.bf16.mxu0 0
    %2176 = vmatpush2.bf16.msra.mxu0 0
    %2177 = vmatprep.subr.bf16.mxu0 0
    %2178 = vmatpush2.bf16.msra.mxu0 0
    %2179 = vmatprep.subr.bf16.mxu0 0
    %2180 = vmatpush2.bf16.msra.mxu0 0
    %2181 = vmatprep.subr.bf16.mxu0 0
    %2182 = vmatpush2.bf16.msra.mxu0 0
    %2183 = vmatprep.subr.bf16.mxu0 0
    %2184 = vmatpush2.bf16.msra.mxu0 0
    %2185 = vmatprep.subr.bf16.mxu0 0
    %2186 = vmatpush2.bf16.msra.mxu0 0
    %2187 = vmatprep.mubr.bf16.mxu0 0
    %2188 = vmatmul.mubr.bf16.gmra.mxu0 %v2153
    %v2189 = vpop.f32.mrf.mxu0
    %v2190 = vadd.f32 %v2058, %v2189
    %v2191 = vpop.f32.mrf.mxu0
    %v2192 = vpop.f32.mrf.mxu0
    %v2193 = vadd.f32 %v2061, %v2192
    %v2194 = vpop.f32.mrf.mxu0
    %2195 = vdwg.mxu0
    %v2196 = vadd.f32 %v2190, %v2102
    %v2197 = vadd.f32 %v2193, %v2105
    %v2198 = vadd.f32 %v2196, %v2146
    %v2199 = vadd.f32 %v2197, %v2149
    %v2201 = vlaneseq
    %v2202 = vshrl.u32 %v2201, 7
    %v2203 = vsub.s32 0, %v2202
    %v2204 = vrot.slane %v1714, %v2203
    %v2206 = vadd.f32 %v2198, %v2204
    %v2207 = vadd.f32 %v2199, %v2204
    %v2208 = vadd.f32 %v2206, %v1636
    %v2209 = vadd.f32 %v2207, %v1637
    %s2210 = scalar_lea.vmem %s20, 1
    %v2211 = vld [vmem:[%s2210] sm:$0x1]
    %s2212 = scalar_lea.vmem %s21, 1
    %v2213 = vld [vmem:[%s2212] sm:$0x1]
    %v2214 = vsel %vm133, %v2208, 0.0
    %2215 = vadd.xlane.f32.xlu0 %v2214
    %v2216 = vpop.xlane.xlu0 %2215
    %v2217 = vsel %vm133, %v2209, 0.0
    %2218 = vadd.xlane.f32.xlu0 %v2217
    %v2219 = vpop.xlane.xlu0 %2218
    %v2220 = vmul.f32 %v2216, %v719
    %v2221 = vmul.f32 %v2219, %v719
    %v2222 = vsub.f32 %v2208, %v2220
    %v2223 = vsub.f32 %v2209, %v2221
    %v2224 = vmul.f32 %v2222, %v2222
    %v2225 = vmul.f32 %v2223, %v2223
    %v2226 = vsel %vm133, %v2224, 0.0
    %2227 = vadd.xlane.f32.xlu0 %v2226
    %v2228 = vpop.xlane.xlu0 %2227
    %v2229 = vsel %vm133, %v2225, 0.0
    %2230 = vadd.xlane.f32.xlu0 %v2229
    %v2231 = vpop.xlane.xlu0 %2230
    %v2232 = vmul.f32 %v2228, %v719
    %v2233 = vmul.f32 %v2231, %v719
    %v2234 = vadd.f32 %v2232, 1e-05
    %v2235 = vadd.f32 %v2233, 1e-05
    %v2236 = vrsqrt.pop %v2234
    %v2237 = vrsqrt.pop %v2235
    %v2238 = vmul.f32 %v2222, %v2236
    %v2239 = vmul.f32 %v2223, %v2237
    %v2241 = vlaneseq
    %v2242 = vshrl.u32 %v2241, 7
    %v2243 = vsub.s32 0, %v2242
    %v2244 = vrot.slane %v2211, %v2243
    %v2246 = vmul.f32 %v2238, %v2244
    %v2247 = vmul.f32 %v2239, %v2244
    %v2249 = vlaneseq
    %v2250 = vshrl.u32 %v2249, 7
    %v2251 = vsub.s32 0, %v2250
    %v2252 = vrot.slane %v2213, %v2251
    %v2254 = vadd.f32 %v2246, %v2252
    %v2255 = vadd.f32 %v2247, %v2252
    %s2256 = scalar_lea.vmem %s12, 16
    %v2257 = vld [vmem:[%s2256] sm:$0xf]
    %v2258 = vld [vmem:[%s2256 + $0x4] sm:$0xf]
    %v2259 = vld [vmem:[%s2256 + $0x8] sm:$0xf]
    %v2260 = vld [vmem:[%s2256 + $0xc] sm:$0xf]
    %s2261 = scalar_lea.vmem %s13, 1
    %v2262 = vld [vmem:[%s2261] sm:$0x1]
    %v2264 = vlaneseq
    %v2265 = vshrl.u32 %v2264, 7
    %v2266 = vsub.s32 0, %v2265
    %v2267 = vrot.slane %v2262, %v2266
    %v2273 = vunpack.c.l.b16 %v2257
    %v2274 = vunpack.c.l.b16 %v2258
    %v2275 = vunpack.c.l.b16 %v2259
    %v2276 = vunpack.c.l.b16 %v2260
    %v2277 = vpack.c.b16 %v2274, %v2273
    %v2278 = vpack.c.b16 %v2276, %v2275
    %2281 = vmatprep.subr.bf16.mxu0 0
    %2282 = vmatpush1.bf16.msra.mxu0 0
    %2283 = vmatprep.subr.bf16.mxu0 0
    %2284 = vmatpush1.bf16.msra.mxu0 0
    %2285 = vmatprep.subr.bf16.mxu0 0
    %2286 = vmatpush1.bf16.msra.mxu0 0
    %2287 = vmatprep.subr.bf16.mxu0 0
    %2288 = vmatpush1.bf16.msra.mxu0 0
    %2289 = vmatprep.subr.bf16.mxu0 0
    %2290 = vmatpush1.bf16.msra.mxu0 0
    %2291 = vmatprep.subr.bf16.mxu0 0
    %2292 = vmatpush1.bf16.msra.mxu0 0
    %2293 = vmatprep.subr.bf16.mxu0 0
    %2294 = vmatpush1.bf16.msra.mxu0 %v2278
    %2295 = vmatprep.subr.bf16.mxu0 0
    %2296 = vmatpush1.bf16.msra.mxu0 %v2277
    %2297 = vmatprep.subr.bf16.mxu0 0
    %2298 = vmatpush2.bf16.msra.mxu0 0
    %2299 = vmatprep.subr.bf16.mxu0 0
    %2300 = vmatpush2.bf16.msra.mxu0 0
    %2301 = vmatprep.subr.bf16.mxu0 0
    %2302 = vmatpush2.bf16.msra.mxu0 0
    %2303 = vmatprep.subr.bf16.mxu0 0
    %2304 = vmatpush2.bf16.msra.mxu0 0
    %2305 = vmatprep.subr.bf16.mxu0 0
    %2306 = vmatpush2.bf16.msra.mxu0 0
    %2307 = vmatprep.subr.bf16.mxu0 0
    %2308 = vmatpush2.bf16.msra.mxu0 0
    %2309 = vmatprep.subr.bf16.mxu0 0
    %2310 = vmatpush2.bf16.msra.mxu0 0
    %2311 = vmatprep.subr.bf16.mxu0 0
    %2312 = vmatpush2.bf16.msra.mxu0 0
    %2313 = vmatprep.mubr.bf16.mxu0 0
    %2314 = vmatmul.mubr.bf16.gmra.mxu0 %v781
    %v2315 = vpop.f32.mrf.mxu0
    %v2316 = vadd.f32 %v2267, %v2315
    %v2317 = vpop.f32.mrf.mxu0
    %v2318 = vpop.f32.mrf.mxu0
    %v2319 = vadd.f32 %v2267, %v2318
    %v2320 = vpop.f32.mrf.mxu0
    %2321 = vdwg.mxu0
    %s2322 = scalar_lea.vmem %s10, 16
    %v2323 = vld [vmem:[%s2322] sm:$0xf]
    %v2324 = vld [vmem:[%s2322 + $0x4] sm:$0xf]
    %v2325 = vld [vmem:[%s2322 + $0x8] sm:$0xf]
    %v2326 = vld [vmem:[%s2322 + $0xc] sm:$0xf]
    %v2327 = vpack.c.bf16 %v2255, %v2254
    %s2328 = scalar_lea.vmem %s11, 1
    %v2329 = vld [vmem:[%s2328] sm:$0x1]
    %v2331 = vlaneseq
    %v2332 = vshrl.u32 %v2331, 7
    %v2333 = vsub.s32 0, %v2332
    %v2334 = vrot.slane %v2329, %v2333
    %v2340 = vunpack.c.l.b16 %v2323
    %v2341 = vunpack.c.l.b16 %v2324
    %v2342 = vunpack.c.l.b16 %v2325
    %v2343 = vunpack.c.l.b16 %v2326
    %v2344 = vpack.c.b16 %v2341, %v2340
    %v2345 = vpack.c.b16 %v2343, %v2342
    %v2349 = vsel %vm133, %v2327, 0
    %2351 = vmatprep.subr.bf16.mxu0 0
    %2352 = vmatpush1.bf16.msra.mxu0 0
    %2353 = vmatprep.subr.bf16.mxu0 0
    %2354 = vmatpush1.bf16.msra.mxu0 0
    %2355 = vmatprep.subr.bf16.mxu0 0
    %2356 = vmatpush1.bf16.msra.mxu0 0
    %2357 = vmatprep.subr.bf16.mxu0 0
    %2358 = vmatpush1.bf16.msra.mxu0 0
    %2359 = vmatprep.subr.bf16.mxu0 0
    %2360 = vmatpush1.bf16.msra.mxu0 0
    %2361 = vmatprep.subr.bf16.mxu0 0
    %2362 = vmatpush1.bf16.msra.mxu0 0
    %2363 = vmatprep.subr.bf16.mxu0 0
    %2364 = vmatpush1.bf16.msra.mxu0 %v2345
    %2365 = vmatprep.subr.bf16.mxu0 0
    %2366 = vmatpush1.bf16.msra.mxu0 %v2344
    %2367 = vmatprep.subr.bf16.mxu0 0
    %2368 = vmatpush2.bf16.msra.mxu0 0
    %2369 = vmatprep.subr.bf16.mxu0 0
    %2370 = vmatpush2.bf16.msra.mxu0 0
    %2371 = vmatprep.subr.bf16.mxu0 0
    %2372 = vmatpush2.bf16.msra.mxu0 0
    %2373 = vmatprep.subr.bf16.mxu0 0
    %2374 = vmatpush2.bf16.msra.mxu0 0
    %2375 = vmatprep.subr.bf16.mxu0 0
    %2376 = vmatpush2.bf16.msra.mxu0 0
    %2377 = vmatprep.subr.bf16.mxu0 0
    %2378 = vmatpush2.bf16.msra.mxu0 0
    %2379 = vmatprep.subr.bf16.mxu0 0
    %2380 = vmatpush2.bf16.msra.mxu0 0
    %2381 = vmatprep.subr.bf16.mxu0 0
    %2382 = vmatpush2.bf16.msra.mxu0 0
    %2383 = vmatprep.mubr.bf16.mxu0 0
    %2384 = vmatmul.mubr.bf16.gmra.mxu0 %v2349
    %v2385 = vpop.f32.mrf.mxu0
    %v2386 = vadd.f32 %v2334, %v2385
    %v2387 = vpop.f32.mrf.mxu0
    %v2388 = vpop.f32.mrf.mxu0
    %v2389 = vadd.f32 %v2334, %v2388
    %v2390 = vpop.f32.mrf.mxu0
    %2391 = vdwg.mxu0
    %s2392 = scalar_lea.vmem %s14, 16
    %v2393 = vld [vmem:[%s2392] sm:$0xf]
    %v2394 = vld [vmem:[%s2392 + $0x4] sm:$0xf]
    %v2395 = vld [vmem:[%s2392 + $0x8] sm:$0xf]
    %v2396 = vld [vmem:[%s2392 + $0xc] sm:$0xf]
    %s2397 = scalar_lea.vmem %s15, 1
    %v2398 = vld [vmem:[%s2397] sm:$0x1]
    %v2399 = vmul.f32 %v2386, %v93
    %v2400 = vmul.f32 %v2389, %v94
    %v2401 = vmul.f32 %v2386, %v95
    %v2402 = vmul.f32 %v2389, %v96
    %v2403 = vmul.f32 %v2386, %v97
    %v2404 = vmul.f32 %v2389, %v98
    %v2405 = vmul.f32 %v2386, %v99
    %v2406 = vmul.f32 %v2389, %v100
    %v2407 = vpack.c.bf16 %v2400, %v2399
    %v2408 = vpack.c.bf16 %v2402, %v2401
    %v2409 = vpack.c.bf16 %v2404, %v2403
    %v2410 = vpack.c.bf16 %v2406, %v2405
    %v2411 = vpack.c.bf16 %v2319, %v2316
    %v2413 = vsel %vm133, %v2407, 0
    %v2416 = vsel %vm133, %v2408, 0
    %v2419 = vsel %vm133, %v2409, 0
    %v2422 = vsel %vm133, %v2410, 0
    %v2425 = vsel %vm133, %v2411, 0
    %2427 = vmatprep.subr.bf16.mxu0 0
    %2428 = vmatpush1.bf16.xpose.msra.mxu0 0
    %2429 = vmatprep.subr.bf16.mxu0 0
    %2430 = vmatpush1.bf16.xpose.msra.mxu0 0
    %2431 = vmatprep.subr.bf16.mxu0 0
    %2432 = vmatpush1.bf16.xpose.msra.mxu0 0
    %2433 = vmatprep.subr.bf16.mxu0 0
    %2434 = vmatpush1.bf16.xpose.msra.mxu0 0
    %2435 = vmatprep.subr.bf16.mxu0 0
    %2436 = vmatpush1.bf16.xpose.msra.mxu0 0
    %2437 = vmatprep.subr.bf16.mxu0 0
    %2438 = vmatpush1.bf16.xpose.msra.mxu0 0
    %2439 = vmatprep.subr.bf16.mxu0 0
    %2440 = vmatpush1.bf16.xpose.msra.mxu0 0
    %2441 = vmatprep.subr.bf16.mxu0 0
    %2442 = vmatpush1.bf16.xpose.msra.mxu0 %v2425
    %2443 = vmatprep.subr.bf16.mxu0 0
    %2444 = vmatpush2.bf16.xpose.msra.mxu0 0
    %2445 = vmatprep.subr.bf16.mxu0 0
    %2446 = vmatpush2.bf16.xpose.msra.mxu0 0
    %2447 = vmatprep.subr.bf16.mxu0 0
    %2448 = vmatpush2.bf16.xpose.msra.mxu0 0
    %2449 = vmatprep.subr.bf16.mxu0 0
    %2450 = vmatpush2.bf16.xpose.msra.mxu0 0
    %2451 = vmatprep.subr.bf16.mxu0 0
    %2452 = vmatpush2.bf16.xpose.msra.mxu0 0
    %2453 = vmatprep.subr.bf16.mxu0 0
    %2454 = vmatpush2.bf16.xpose.msra.mxu0 0
    %2455 = vmatprep.subr.bf16.mxu0 0
    %2456 = vmatpush2.bf16.xpose.msra.mxu0 0
    %2457 = vmatprep.subr.bf16.mxu0 0
    %2458 = vmatpush2.bf16.xpose.msra.mxu0 0
    %2459 = vmatprep.mubr.bf16.mxu0 0
    %2460 = vmatmul.mubr.bf16.gmra.mxu0 %v2413
    %v2461 = vpop.f32.mrf.mxu0
    %v2462 = vadd.f32 %v85, %v2461
    %v2463 = vpop.f32.mrf.mxu0
    %v2464 = vpop.f32.mrf.mxu0
    %v2465 = vadd.f32 %v86, %v2464
    %v2466 = vpop.f32.mrf.mxu0
    %2467 = vmatprep.mubr.bf16.mxu0 0
    %2468 = vmatmul.mubr.bf16.gmra.mxu0 %v2416
    %v2469 = vpop.f32.mrf.mxu0
    %v2470 = vadd.f32 %v87, %v2469
    %v2471 = vpop.f32.mrf.mxu0
    %v2472 = vpop.f32.mrf.mxu0
    %v2473 = vadd.f32 %v88, %v2472
    %v2474 = vpop.f32.mrf.mxu0
    %2475 = vmatprep.mubr.bf16.mxu0 0
    %2476 = vmatmul.mubr.bf16.gmra.mxu0 %v2419
    %v2477 = vpop.f32.mrf.mxu0
    %v2478 = vadd.f32 %v89, %v2477
    %v2479 = vpop.f32.mrf.mxu0
    %v2480 = vpop.f32.mrf.mxu0
    %v2481 = vadd.f32 %v90, %v2480
    %v2482 = vpop.f32.mrf.mxu0
    %2483 = vmatprep.mubr.bf16.mxu0 0
    %2484 = vmatmul.mubr.bf16.gmra.mxu0 %v2422
    %v2485 = vpop.f32.mrf.mxu0
    %v2486 = vadd.f32 %v91, %v2485
    %v2487 = vpop.f32.mrf.mxu0
    %v2488 = vpop.f32.mrf.mxu0
    %v2489 = vadd.f32 %v92, %v2488
    %v2490 = vpop.f32.mrf.mxu0
    %2491 = vdwg.mxu0
    %v2492 = vsel %vm279, %v2462, -inf
    %2493 = vmax.xlane.f32.xlu0 %v2492
    %v2494 = vpop.xlane.xlu0 %2493
    %v2495 = vsel %vm279, %v2465, -inf
    %2496 = vmax.xlane.f32.xlu0 %v2495
    %v2497 = vpop.xlane.xlu0 %2496
    %v2498 = vsel %vm279, %v2470, -inf
    %2499 = vmax.xlane.f32.xlu0 %v2498
    %v2500 = vpop.xlane.xlu0 %2499
    %v2501 = vsel %vm279, %v2473, -inf
    %2502 = vmax.xlane.f32.xlu0 %v2501
    %v2503 = vpop.xlane.xlu0 %2502
    %v2504 = vsel %vm279, %v2478, -inf
    %2505 = vmax.xlane.f32.xlu0 %v2504
    %v2506 = vpop.xlane.xlu0 %2505
    %v2507 = vsel %vm279, %v2481, -inf
    %2508 = vmax.xlane.f32.xlu0 %v2507
    %v2509 = vpop.xlane.xlu0 %2508
    %v2510 = vsel %vm279, %v2486, -inf
    %2511 = vmax.xlane.f32.xlu0 %v2510
    %v2512 = vpop.xlane.xlu0 %2511
    %v2513 = vsel %vm279, %v2489, -inf
    %2514 = vmax.xlane.f32.xlu0 %v2513
    %v2515 = vpop.xlane.xlu0 %2514
    %v2516 = vsub.f32 %v2462, %v2494
    %v2517 = vsub.f32 %v2465, %v2497
    %v2518 = vsub.f32 %v2470, %v2500
    %v2519 = vsub.f32 %v2473, %v2503
    %v2520 = vsub.f32 %v2478, %v2506
    %v2521 = vsub.f32 %v2481, %v2509
    %v2522 = vsub.f32 %v2486, %v2512
    %v2523 = vsub.f32 %v2489, %v2515
    %v2524 = vmul.f32 %v2516, 1.442695
    %v2525 = vpow.pop %v2524
    %v2526 = vmul.f32 %v2517, 1.442695
    %v2527 = vpow.pop %v2526
    %v2528 = vmul.f32 %v2518, 1.442695
    %v2529 = vpow.pop %v2528
    %v2530 = vmul.f32 %v2519, 1.442695
    %v2531 = vpow.pop %v2530
    %v2532 = vmul.f32 %v2520, 1.442695
    %v2533 = vpow.pop %v2532
    %v2534 = vmul.f32 %v2521, 1.442695
    %v2535 = vpow.pop %v2534
    %v2536 = vmul.f32 %v2522, 1.442695
    %v2537 = vpow.pop %v2536
    %v2538 = vmul.f32 %v2523, 1.442695
    %v2539 = vpow.pop %v2538
    %v2540 = vsel %vm279, %v2525, 0.0
    %2541 = vadd.xlane.f32.xlu0 %v2540
    %v2542 = vpop.xlane.xlu0 %2541
    %v2543 = vsel %vm279, %v2527, 0.0
    %2544 = vadd.xlane.f32.xlu0 %v2543
    %v2545 = vpop.xlane.xlu0 %2544
    %v2546 = vsel %vm279, %v2529, 0.0
    %2547 = vadd.xlane.f32.xlu0 %v2546
    %v2548 = vpop.xlane.xlu0 %2547
    %v2549 = vsel %vm279, %v2531, 0.0
    %2550 = vadd.xlane.f32.xlu0 %v2549
    %v2551 = vpop.xlane.xlu0 %2550
    %v2552 = vsel %vm279, %v2533, 0.0
    %2553 = vadd.xlane.f32.xlu0 %v2552
    %v2554 = vpop.xlane.xlu0 %2553
    %v2555 = vsel %vm279, %v2535, 0.0
    %2556 = vadd.xlane.f32.xlu0 %v2555
    %v2557 = vpop.xlane.xlu0 %2556
    %v2558 = vsel %vm279, %v2537, 0.0
    %2559 = vadd.xlane.f32.xlu0 %v2558
    %v2560 = vpop.xlane.xlu0 %2559
    %v2561 = vsel %vm279, %v2539, 0.0
    %2562 = vadd.xlane.f32.xlu0 %v2561
    %v2563 = vpop.xlane.xlu0 %2562
    %v2564 = vrcp.pop %v2542
    %v2565 = vrcp.pop %v2545
    %v2566 = vrcp.pop %v2548
    %v2567 = vrcp.pop %v2551
    %v2568 = vrcp.pop %v2554
    %v2569 = vrcp.pop %v2557
    %v2570 = vrcp.pop %v2560
    %v2571 = vrcp.pop %v2563
    %v2572 = vmul.f32 %v2525, %v2564
    %v2573 = vmul.f32 %v2527, %v2565
    %v2574 = vmul.f32 %v2529, %v2566
    %v2575 = vmul.f32 %v2531, %v2567
    %v2576 = vmul.f32 %v2533, %v2568
    %v2577 = vmul.f32 %v2535, %v2569
    %v2578 = vmul.f32 %v2537, %v2570
    %v2579 = vmul.f32 %v2539, %v2571
    %v2580 = vmul.f32 %v2316, %v1087
    %v2581 = vmul.f32 %v2319, %v1089
    %v2582 = vmul.f32 %v2316, %v1091
    %v2583 = vmul.f32 %v2319, %v1093
    %v2584 = vmul.f32 %v2316, %v1095
    %v2585 = vmul.f32 %v2319, %v1097
    %v2586 = vmul.f32 %v2316, %v1099
    %v2587 = vmul.f32 %v2319, %v1101
    %v2588 = vpack.c.bf16 %v2581, %v2580
    %v2589 = vpack.c.bf16 %v2583, %v2582
    %v2590 = vpack.c.bf16 %v2585, %v2584
    %v2591 = vpack.c.bf16 %v2587, %v2586
    %2596 = vrot.lane.b32.xlu0 %v2588, 96
    %v2597 = vpop.permute.xlu0 %2596
    %2598 = vrot.lane.b32.xlu0 %v2589, 96
    %v2599 = vpop.permute.xlu0 %2598
    %2600 = vrot.lane.b32.xlu0 %v2590, 96
    %v2601 = vpop.permute.xlu0 %2600
    %2602 = vrot.lane.b32.xlu0 %v2591, 96
    %v2603 = vpop.permute.xlu0 %2602
    %v2608 = vunpack.c.l.b16 %v2393
    %v2609 = vunpack.c.l.b16 %v2394
    %v2610 = vunpack.c.l.b16 %v2395
    %v2611 = vunpack.c.l.b16 %v2396
    %v2612 = vpack.c.b16 %v2609, %v2608
    %v2613 = vpack.c.b16 %v2611, %v2610
    %v2617 = vsel %vm133, %v2597, 0
    %v2620 = vsel %vm133, %v2599, 0
    %v2623 = vsel %vm133, %v2601, 0
    %v2626 = vsel %vm133, %v2603, 0
    %2628 = vmatprep.subr.bf16.mxu0 0
    %2629 = vmatpush1.bf16.msra.mxu0 0
    %2630 = vmatprep.subr.bf16.mxu0 0
    %2631 = vmatpush1.bf16.msra.mxu0 0
    %2632 = vmatprep.subr.bf16.mxu0 0
    %2633 = vmatpush1.bf16.msra.mxu0 0
    %2634 = vmatprep.subr.bf16.mxu0 0
    %2635 = vmatpush1.bf16.msra.mxu0 0
    %2636 = vmatprep.subr.bf16.mxu0 0
    %2637 = vmatpush1.bf16.msra.mxu0 0
    %2638 = vmatprep.subr.bf16.mxu0 0
    %2639 = vmatpush1.bf16.msra.mxu0 0
    %2640 = vmatprep.subr.bf16.mxu0 0
    %2641 = vmatpush1.bf16.msra.mxu0 %v2613
    %2642 = vmatprep.subr.bf16.mxu0 0
    %2643 = vmatpush1.bf16.msra.mxu0 %v2612
    %2644 = vmatprep.subr.bf16.mxu0 0
    %2645 = vmatpush2.bf16.msra.mxu0 0
    %2646 = vmatprep.subr.bf16.mxu0 0
    %2647 = vmatpush2.bf16.msra.mxu0 0
    %2648 = vmatprep.subr.bf16.mxu0 0
    %2649 = vmatpush2.bf16.msra.mxu0 0
    %2650 = vmatprep.subr.bf16.mxu0 0
    %2651 = vmatpush2.bf16.msra.mxu0 0
    %2652 = vmatprep.subr.bf16.mxu0 0
    %2653 = vmatpush2.bf16.msra.mxu0 0
    %2654 = vmatprep.subr.bf16.mxu0 0
    %2655 = vmatpush2.bf16.msra.mxu0 0
    %2656 = vmatprep.subr.bf16.mxu0 0
    %2657 = vmatpush2.bf16.msra.mxu0 0
    %2658 = vmatprep.subr.bf16.mxu0 0
    %2659 = vmatpush2.bf16.msra.mxu0 0
    %2660 = vmatprep.mubr.bf16.mxu0 0
    %2661 = vmatmul.mubr.bf16.gmra.mxu0 %v2617
    %v2662 = vpop.f32.mrf.mxu0
    %v2663 = vadd.f32 0.0, %v2662
    %v2664 = vpop.f32.mrf.mxu0
    %v2665 = vpop.f32.mrf.mxu0
    %v2666 = vadd.f32 0.0, %v2665
    %v2667 = vpop.f32.mrf.mxu0
    %2668 = vmatprep.mubr.bf16.mxu0 0
    %2669 = vmatmul.mubr.bf16.gmra.mxu0 %v2620
    %v2670 = vpop.f32.mrf.mxu0
    %v2671 = vadd.f32 0.0, %v2670
    %v2672 = vpop.f32.mrf.mxu0
    %v2673 = vpop.f32.mrf.mxu0
    %v2674 = vadd.f32 0.0, %v2673
    %v2675 = vpop.f32.mrf.mxu0
    %2676 = vmatprep.mubr.bf16.mxu0 0
    %2677 = vmatmul.mubr.bf16.gmra.mxu0 %v2623
    %v2678 = vpop.f32.mrf.mxu0
    %v2679 = vadd.f32 0.0, %v2678
    %v2680 = vpop.f32.mrf.mxu0
    %v2681 = vpop.f32.mrf.mxu0
    %v2682 = vadd.f32 0.0, %v2681
    %v2683 = vpop.f32.mrf.mxu0
    %2684 = vmatprep.mubr.bf16.mxu0 0
    %2685 = vmatmul.mubr.bf16.gmra.mxu0 %v2626
    %v2686 = vpop.f32.mrf.mxu0
    %v2687 = vadd.f32 0.0, %v2686
    %v2688 = vpop.f32.mrf.mxu0
    %v2689 = vpop.f32.mrf.mxu0
    %v2690 = vadd.f32 0.0, %v2689
    %v2691 = vpop.f32.mrf.mxu0
    %2692 = vdwg.mxu0
    %v2693 = vpack.c.bf16 %v2573, %v2572
    %v2694 = vpack.c.bf16 %v2575, %v2574
    %v2695 = vpack.c.bf16 %v2577, %v2576
    %v2696 = vpack.c.bf16 %v2579, %v2578
    %v2697 = vpack.c.bf16 %v2666, %v2663
    %v2698 = vpack.c.bf16 %v2674, %v2671
    %v2699 = vpack.c.bf16 %v2682, %v2679
    %v2700 = vpack.c.bf16 %v2690, %v2687
    %v2702 = vsel %vm279, %v2694, 0
    %2704 = vmatprep.subr.bf16.mxu0 0
    %2705 = vmatpush1.bf16.msra.mxu0 0
    %2706 = vmatprep.subr.bf16.mxu0 0
    %2707 = vmatpush1.bf16.msra.mxu0 0
    %2708 = vmatprep.subr.bf16.mxu0 0
    %2709 = vmatpush1.bf16.msra.mxu0 0
    %2710 = vmatprep.subr.bf16.mxu0 0
    %2711 = vmatpush1.bf16.msra.mxu0 0
    %2712 = vmatprep.subr.bf16.mxu0 0
    %2713 = vmatpush1.bf16.msra.mxu0 0
    %2714 = vmatprep.subr.bf16.mxu0 0
    %2715 = vmatpush1.bf16.msra.mxu0 0
    %2716 = vmatprep.subr.bf16.mxu0 0
    %2717 = vmatpush1.bf16.msra.mxu0 0
    %2718 = vmatprep.subr.bf16.mxu0 0
    %2719 = vmatpush1.bf16.msra.mxu0 %v2698
    %2720 = vmatprep.subr.bf16.mxu0 0
    %2721 = vmatpush2.bf16.msra.mxu0 0
    %2722 = vmatprep.subr.bf16.mxu0 0
    %2723 = vmatpush2.bf16.msra.mxu0 0
    %2724 = vmatprep.subr.bf16.mxu0 0
    %2725 = vmatpush2.bf16.msra.mxu0 0
    %2726 = vmatprep.subr.bf16.mxu0 0
    %2727 = vmatpush2.bf16.msra.mxu0 0
    %2728 = vmatprep.subr.bf16.mxu0 0
    %2729 = vmatpush2.bf16.msra.mxu0 0
    %2730 = vmatprep.subr.bf16.mxu0 0
    %2731 = vmatpush2.bf16.msra.mxu0 0
    %2732 = vmatprep.subr.bf16.mxu0 0
    %2733 = vmatpush2.bf16.msra.mxu0 0
    %2734 = vmatprep.subr.bf16.mxu0 0
    %2735 = vmatpush2.bf16.msra.mxu0 0
    %2736 = vmatprep.mubr.bf16.mxu0 0
    %2737 = vmatmul.mubr.bf16.gmra.mxu0 %v2702
    %v2738 = vpop.f32.mrf.mxu0
    %v2739 = vadd.f32 0.0, %v2738
    %v2740 = vpop.f32.mrf.mxu0
    %v2741 = vpop.f32.mrf.mxu0
    %v2742 = vadd.f32 0.0, %v2741
    %v2743 = vpop.f32.mrf.mxu0
    %2744 = vdwg.mxu0
    %v2746 = vsel %vm279, %v2695, 0
    %2748 = vmatprep.subr.bf16.mxu0 0
    %2749 = vmatpush1.bf16.msra.mxu0 0
    %2750 = vmatprep.subr.bf16.mxu0 0
    %2751 = vmatpush1.bf16.msra.mxu0 0
    %2752 = vmatprep.subr.bf16.mxu0 0
    %2753 = vmatpush1.bf16.msra.mxu0 0
    %2754 = vmatprep.subr.bf16.mxu0 0
    %2755 = vmatpush1.bf16.msra.mxu0 0
    %2756 = vmatprep.subr.bf16.mxu0 0
    %2757 = vmatpush1.bf16.msra.mxu0 0
    %2758 = vmatprep.subr.bf16.mxu0 0
    %2759 = vmatpush1.bf16.msra.mxu0 0
    %2760 = vmatprep.subr.bf16.mxu0 0
    %2761 = vmatpush1.bf16.msra.mxu0 0
    %2762 = vmatprep.subr.bf16.mxu0 0
    %2763 = vmatpush1.bf16.msra.mxu0 %v2699
    %2764 = vmatprep.subr.bf16.mxu0 0
    %2765 = vmatpush2.bf16.msra.mxu0 0
    %2766 = vmatprep.subr.bf16.mxu0 0
    %2767 = vmatpush2.bf16.msra.mxu0 0
    %2768 = vmatprep.subr.bf16.mxu0 0
    %2769 = vmatpush2.bf16.msra.mxu0 0
    %2770 = vmatprep.subr.bf16.mxu0 0
    %2771 = vmatpush2.bf16.msra.mxu0 0
    %2772 = vmatprep.subr.bf16.mxu0 0
    %2773 = vmatpush2.bf16.msra.mxu0 0
    %2774 = vmatprep.subr.bf16.mxu0 0
    %2775 = vmatpush2.bf16.msra.mxu0 0
    %2776 = vmatprep.subr.bf16.mxu0 0
    %2777 = vmatpush2.bf16.msra.mxu0 0
    %2778 = vmatprep.subr.bf16.mxu0 0
    %2779 = vmatpush2.bf16.msra.mxu0 0
    %2780 = vmatprep.mubr.bf16.mxu0 0
    %2781 = vmatmul.mubr.bf16.gmra.mxu0 %v2746
    %v2782 = vpop.f32.mrf.mxu0
    %v2783 = vadd.f32 0.0, %v2782
    %v2784 = vpop.f32.mrf.mxu0
    %v2785 = vpop.f32.mrf.mxu0
    %v2786 = vadd.f32 0.0, %v2785
    %v2787 = vpop.f32.mrf.mxu0
    %2788 = vdwg.mxu0
    %v2790 = vsel %vm279, %v2696, 0
    %2792 = vmatprep.subr.bf16.mxu0 0
    %2793 = vmatpush1.bf16.msra.mxu0 0
    %2794 = vmatprep.subr.bf16.mxu0 0
    %2795 = vmatpush1.bf16.msra.mxu0 0
    %2796 = vmatprep.subr.bf16.mxu0 0
    %2797 = vmatpush1.bf16.msra.mxu0 0
    %2798 = vmatprep.subr.bf16.mxu0 0
    %2799 = vmatpush1.bf16.msra.mxu0 0
    %2800 = vmatprep.subr.bf16.mxu0 0
    %2801 = vmatpush1.bf16.msra.mxu0 0
    %2802 = vmatprep.subr.bf16.mxu0 0
    %2803 = vmatpush1.bf16.msra.mxu0 0
    %2804 = vmatprep.subr.bf16.mxu0 0
    %2805 = vmatpush1.bf16.msra.mxu0 0
    %2806 = vmatprep.subr.bf16.mxu0 0
    %2807 = vmatpush1.bf16.msra.mxu0 %v2700
    %2808 = vmatprep.subr.bf16.mxu0 0
    %2809 = vmatpush2.bf16.msra.mxu0 0
    %2810 = vmatprep.subr.bf16.mxu0 0
    %2811 = vmatpush2.bf16.msra.mxu0 0
    %2812 = vmatprep.subr.bf16.mxu0 0
    %2813 = vmatpush2.bf16.msra.mxu0 0
    %2814 = vmatprep.subr.bf16.mxu0 0
    %2815 = vmatpush2.bf16.msra.mxu0 0
    %2816 = vmatprep.subr.bf16.mxu0 0
    %2817 = vmatpush2.bf16.msra.mxu0 0
    %2818 = vmatprep.subr.bf16.mxu0 0
    %2819 = vmatpush2.bf16.msra.mxu0 0
    %2820 = vmatprep.subr.bf16.mxu0 0
    %2821 = vmatpush2.bf16.msra.mxu0 0
    %2822 = vmatprep.subr.bf16.mxu0 0
    %2823 = vmatpush2.bf16.msra.mxu0 0
    %2824 = vmatprep.mubr.bf16.mxu0 0
    %2825 = vmatmul.mubr.bf16.gmra.mxu0 %v2790
    %v2826 = vpop.f32.mrf.mxu0
    %v2827 = vadd.f32 0.0, %v2826
    %v2828 = vpop.f32.mrf.mxu0
    %v2829 = vpop.f32.mrf.mxu0
    %v2830 = vadd.f32 0.0, %v2829
    %v2831 = vpop.f32.mrf.mxu0
    %2832 = vdwg.mxu0
    %v2834 = vsel %vm279, %v2693, 0
    %2836 = vmatprep.subr.bf16.mxu0 0
    %2837 = vmatpush1.bf16.msra.mxu0 0
    %2838 = vmatprep.subr.bf16.mxu0 0
    %2839 = vmatpush1.bf16.msra.mxu0 0
    %2840 = vmatprep.subr.bf16.mxu0 0
    %2841 = vmatpush1.bf16.msra.mxu0 0
    %2842 = vmatprep.subr.bf16.mxu0 0
    %2843 = vmatpush1.bf16.msra.mxu0 0
    %2844 = vmatprep.subr.bf16.mxu0 0
    %2845 = vmatpush1.bf16.msra.mxu0 0
    %2846 = vmatprep.subr.bf16.mxu0 0
    %2847 = vmatpush1.bf16.msra.mxu0 0
    %2848 = vmatprep.subr.bf16.mxu0 0
    %2849 = vmatpush1.bf16.msra.mxu0 0
    %2850 = vmatprep.subr.bf16.mxu0 0
    %2851 = vmatpush1.bf16.msra.mxu0 %v2697
    %2852 = vmatprep.subr.bf16.mxu0 0
    %2853 = vmatpush2.bf16.msra.mxu0 0
    %2854 = vmatprep.subr.bf16.mxu0 0
    %2855 = vmatpush2.bf16.msra.mxu0 0
    %2856 = vmatprep.subr.bf16.mxu0 0
    %2857 = vmatpush2.bf16.msra.mxu0 0
    %2858 = vmatprep.subr.bf16.mxu0 0
    %2859 = vmatpush2.bf16.msra.mxu0 0
    %2860 = vmatprep.subr.bf16.mxu0 0
    %2861 = vmatpush2.bf16.msra.mxu0 0
    %2862 = vmatprep.subr.bf16.mxu0 0
    %2863 = vmatpush2.bf16.msra.mxu0 0
    %2864 = vmatprep.subr.bf16.mxu0 0
    %2865 = vmatpush2.bf16.msra.mxu0 0
    %2866 = vmatprep.subr.bf16.mxu0 0
    %2867 = vmatpush2.bf16.msra.mxu0 0
    %2868 = vmatprep.mubr.bf16.mxu0 0
    %2869 = vmatmul.mubr.bf16.gmra.mxu0 %v2834
    %v2870 = vpop.f32.mrf.mxu0
    %v2871 = vadd.f32 %v2739, %v2870
    %v2872 = vpop.f32.mrf.mxu0
    %v2873 = vpop.f32.mrf.mxu0
    %v2874 = vadd.f32 %v2742, %v2873
    %v2875 = vpop.f32.mrf.mxu0
    %2876 = vdwg.mxu0
    %v2877 = vadd.f32 %v2871, %v2783
    %v2878 = vadd.f32 %v2874, %v2786
    %v2879 = vadd.f32 %v2877, %v2827
    %v2880 = vadd.f32 %v2878, %v2830
    %v2882 = vlaneseq
    %v2883 = vshrl.u32 %v2882, 7
    %v2884 = vsub.s32 0, %v2883
    %v2885 = vrot.slane %v2398, %v2884
    %v2887 = vadd.f32 %v2879, %v2885
    %v2888 = vadd.f32 %v2880, %v2885
    %v2889 = vadd.f32 %v2887, %v2254
    %v2890 = vadd.f32 %v2888, %v2255
    %v2891 = vsel %vm133, %v2889, 0.0
    %2892 = vadd.xlane.f32.xlu0 %v2891
    %v2893 = vpop.xlane.xlu0 %2892
    %v2894 = vsel %vm133, %v2890, 0.0
    %2895 = vadd.xlane.f32.xlu0 %v2894
    %v2896 = vpop.xlane.xlu0 %2895
    %v2897 = vmul.f32 %v2893, %v719
    %v2898 = vmul.f32 %v2896, %v719
    %v2899 = vsub.f32 %v2889, %v2897
    %v2900 = vsub.f32 %v2890, %v2898
    %v2901 = vmul.f32 %v2899, %v2899
    %v2902 = vmul.f32 %v2900, %v2900
    %v2903 = vsel %vm133, %v2901, 0.0
    %2904 = vadd.xlane.f32.xlu0 %v2903
    %v2905 = vpop.xlane.xlu0 %2904
    %v2906 = vsel %vm133, %v2902, 0.0
    %2907 = vadd.xlane.f32.xlu0 %v2906
    %v2908 = vpop.xlane.xlu0 %2907
    %v2909 = vmul.f32 %v2905, %v719
    %v2910 = vmul.f32 %v2908, %v719
    %v2911 = vadd.f32 %v2909, 1e-05
    %v2912 = vadd.f32 %v2910, 1e-05
    %v2913 = vrsqrt.pop %v2911
    %v2914 = vrsqrt.pop %v2912
    %v2915 = vmul.f32 %v2899, %v2913
    %v2916 = vmul.f32 %v2900, %v2914
    %v2917 = vmul.f32 %v2915, %v2244
    %v2918 = vmul.f32 %v2916, %v2244
    %v2919 = vadd.f32 %v2917, %v2252
    %v2920 = vadd.f32 %v2918, %v2252
    %s2921 = scalar_lea.vmem %s16, 16
    %v2922 = vld [vmem:[%s2921] sm:$0xf]
    %v2923 = vld [vmem:[%s2921 + $0x4] sm:$0xf]
    %v2924 = vld [vmem:[%s2921 + $0x8] sm:$0xf]
    %v2925 = vld [vmem:[%s2921 + $0xc] sm:$0xf]
    %v2926 = vpack.c.bf16 %v2920, %v2919
    %s2927 = scalar_lea.vmem %s17, 1
    %v2928 = vld [vmem:[%s2927] sm:$0x1]
    %v2930 = vlaneseq
    %v2931 = vshrl.u32 %v2930, 7
    %v2932 = vsub.s32 0, %v2931
    %v2933 = vrot.slane %v2928, %v2932
    %v2939 = vunpack.c.l.b16 %v2922
    %v2940 = vunpack.c.l.b16 %v2923
    %v2941 = vunpack.c.l.b16 %v2924
    %v2942 = vunpack.c.l.b16 %v2925
    %v2943 = vpack.c.b16 %v2940, %v2939
    %v2944 = vpack.c.b16 %v2942, %v2941
    %v2948 = vsel %vm133, %v2926, 0
    %2950 = vmatprep.subr.bf16.mxu0 0
    %2951 = vmatpush1.bf16.msra.mxu0 0
    %2952 = vmatprep.subr.bf16.mxu0 0
    %2953 = vmatpush1.bf16.msra.mxu0 0
    %2954 = vmatprep.subr.bf16.mxu0 0
    %2955 = vmatpush1.bf16.msra.mxu0 0
    %2956 = vmatprep.subr.bf16.mxu0 0
    %2957 = vmatpush1.bf16.msra.mxu0 0
    %2958 = vmatprep.subr.bf16.mxu0 0
    %2959 = vmatpush1.bf16.msra.mxu0 0
    %2960 = vmatprep.subr.bf16.mxu0 0
    %2961 = vmatpush1.bf16.msra.mxu0 0
    %2962 = vmatprep.subr.bf16.mxu0 0
    %2963 = vmatpush1.bf16.msra.mxu0 %v2944
    %2964 = vmatprep.subr.bf16.mxu0 0
    %2965 = vmatpush1.bf16.msra.mxu0 %v2943
    %2966 = vmatprep.subr.bf16.mxu0 0
    %2967 = vmatpush2.bf16.msra.mxu0 0
    %2968 = vmatprep.subr.bf16.mxu0 0
    %2969 = vmatpush2.bf16.msra.mxu0 0
    %2970 = vmatprep.subr.bf16.mxu0 0
    %2971 = vmatpush2.bf16.msra.mxu0 0
    %2972 = vmatprep.subr.bf16.mxu0 0
    %2973 = vmatpush2.bf16.msra.mxu0 0
    %2974 = vmatprep.subr.bf16.mxu0 0
    %2975 = vmatpush2.bf16.msra.mxu0 0
    %2976 = vmatprep.subr.bf16.mxu0 0
    %2977 = vmatpush2.bf16.msra.mxu0 0
    %2978 = vmatprep.subr.bf16.mxu0 0
    %2979 = vmatpush2.bf16.msra.mxu0 0
    %2980 = vmatprep.subr.bf16.mxu0 0
    %2981 = vmatpush2.bf16.msra.mxu0 0
    %2982 = vmatprep.mubr.bf16.mxu0 0
    %2983 = vmatmul.mubr.bf16.gmra.mxu0 %v2948
    %v2984 = vpop.f32.mrf.mxu0
    %v2985 = vadd.f32 %v2933, %v2984
    %v2986 = vpop.f32.mrf.mxu0
    %v2987 = vpop.f32.mrf.mxu0
    %v2988 = vadd.f32 %v2933, %v2987
    %v2989 = vpop.f32.mrf.mxu0
    %2990 = vdwg.mxu0
    %v2991 = vmax.f32 %v2985, 0.0
    %v2992 = vmax.f32 %v2988, 0.0
    %s2993 = scalar_lea.vmem %s18, 32
    %v2994 = vld [vmem:[%s2993] sm:$0xf]
    %v2995 = vld [vmem:[%s2993 + $0x4] sm:$0xf]
    %v2996 = vld [vmem:[%s2993 + $0x8] sm:$0xf]
    %v2997 = vld [vmem:[%s2993 + $0xc] sm:$0xf]
    %v2998 = vld [vmem:[%s2993 + $0x10] sm:$0xf]
    %v2999 = vld [vmem:[%s2993 + $0x14] sm:$0xf]
    %v3000 = vld [vmem:[%s2993 + $0x18] sm:$0xf]
    %v3001 = vld [vmem:[%s2993 + $0x1c] sm:$0xf]
    %v3002 = vpack.c.bf16 %v2992, %v2991
    %s3003 = scalar_lea.vmem %s19, 1
    %v3004 = vld [vmem:[%s3003] sm:$0x1]
    %v3006 = vlaneseq
    %v3007 = vshrl.u32 %v3006, 7
    %v3008 = vsub.s32 0, %v3007
    %v3009 = vrot.slane %v3004, %v3008
    %v3019 = vunpack.c.l.b16 %v2994
    %v3020 = vunpack.c.l.b16 %v2995
    %v3021 = vunpack.c.l.b16 %v2996
    %v3022 = vunpack.c.l.b16 %v2997
    %v3023 = vunpack.c.l.b16 %v2998
    %v3024 = vunpack.c.l.b16 %v2999
    %v3025 = vunpack.c.l.b16 %v3000
    %v3026 = vunpack.c.l.b16 %v3001
    %v3027 = vpack.c.b16 %v3020, %v3019
    %v3028 = vpack.c.b16 %v3022, %v3021
    %v3029 = vpack.c.b16 %v3024, %v3023
    %v3030 = vpack.c.b16 %v3026, %v3025
    %v3036 = vsel %vm1561, %v3002, 0
    %3038 = vmatprep.subr.bf16.mxu0 0
    %3039 = vmatpush1.bf16.msra.mxu0 0
    %3040 = vmatprep.subr.bf16.mxu0 0
    %3041 = vmatpush1.bf16.msra.mxu0 0
    %3042 = vmatprep.subr.bf16.mxu0 0
    %3043 = vmatpush1.bf16.msra.mxu0 0
    %3044 = vmatprep.subr.bf16.mxu0 0
    %3045 = vmatpush1.bf16.msra.mxu0 0
    %3046 = vmatprep.subr.bf16.mxu0 0
    %3047 = vmatpush1.bf16.msra.mxu0 %v3030
    %3048 = vmatprep.subr.bf16.mxu0 0
    %3049 = vmatpush1.bf16.msra.mxu0 %v3029
    %3050 = vmatprep.subr.bf16.mxu0 0
    %3051 = vmatpush1.bf16.msra.mxu0 %v3028
    %3052 = vmatprep.subr.bf16.mxu0 0
    %3053 = vmatpush1.bf16.msra.mxu0 %v3027
    %3054 = vmatprep.subr.bf16.mxu0 0
    %3055 = vmatpush2.bf16.msra.mxu0 0
    %3056 = vmatprep.subr.bf16.mxu0 0
    %3057 = vmatpush2.bf16.msra.mxu0 0
    %3058 = vmatprep.subr.bf16.mxu0 0
    %3059 = vmatpush2.bf16.msra.mxu0 0
    %3060 = vmatprep.subr.bf16.mxu0 0
    %3061 = vmatpush2.bf16.msra.mxu0 0
    %3062 = vmatprep.subr.bf16.mxu0 0
    %3063 = vmatpush2.bf16.msra.mxu0 0
    %3064 = vmatprep.subr.bf16.mxu0 0
    %3065 = vmatpush2.bf16.msra.mxu0 0
    %3066 = vmatprep.subr.bf16.mxu0 0
    %3067 = vmatpush2.bf16.msra.mxu0 0
    %3068 = vmatprep.subr.bf16.mxu0 0
    %3069 = vmatpush2.bf16.msra.mxu0 0
    %3070 = vmatprep.mubr.bf16.mxu0 0
    %3071 = vmatmul.mubr.bf16.gmra.mxu0 %v3036
    %v3072 = vpop.f32.mrf.mxu0
    %v3073 = vadd.f32 %v3009, %v3072
    %v3074 = vpop.f32.mrf.mxu0
    %v3075 = vpop.f32.mrf.mxu0
    %v3076 = vadd.f32 %v3009, %v3075
    %v3077 = vpop.f32.mrf.mxu0
    %3078 = vdwg.mxu0
    %v3079 = vadd.f32 %v3073, %v2919
    %v3080 = vadd.f32 %v3076, %v2920
    %v3081 = vsel %vm133, %v3079, 0.0
    %3082 = vadd.xlane.f32.xlu0 %v3081
    %v3083 = vpop.xlane.xlu0 %3082
    %v3084 = vsel %vm133, %v3080, 0.0
    %3085 = vadd.xlane.f32.xlu0 %v3084
    %v3086 = vpop.xlane.xlu0 %3085
    %v3087 = vmul.f32 %v3083, %v719
    %v3088 = vmul.f32 %v3086, %v719
    %v3089 = vsub.f32 %v3079, %v3087
    %v3090 = vsub.f32 %v3080, %v3088
    %v3091 = vmul.f32 %v3089, %v3089
    %v3092 = vmul.f32 %v3090, %v3090
    %v3093 = vsel %vm133, %v3091, 0.0
    %3094 = vadd.xlane.f32.xlu0 %v3093
    %v3095 = vpop.xlane.xlu0 %3094
    %v3096 = vsel %vm133, %v3092, 0.0
    %3097 = vadd.xlane.f32.xlu0 %v3096
    %v3098 = vpop.xlane.xlu0 %3097
    %v3099 = vmul.f32 %v3095, %v719
    %v3100 = vmul.f32 %v3098, %v719
    %v3101 = vadd.f32 %v3099, 1e-05
    %v3102 = vadd.f32 %v3100, 1e-05
    %v3103 = vrsqrt.pop %v3101
    %v3104 = vrsqrt.pop %v3102
    %v3105 = vmul.f32 %v3089, %v3103
    %v3106 = vmul.f32 %v3090, %v3104
    %v3107 = vmul.f32 %v3105, %v2244
    %v3108 = vmul.f32 %v3106, %v2244
    %v3109 = vadd.f32 %v3107, %v2252
    %v3110 = vadd.f32 %v3108, %v2252
    %3111 = vst.msk [vmem:[#allocation2] sm:$0xff] %vm133, %v3109
    %3112 = vst.msk [vmem:[#allocation2 + $0x8] sm:$0xff] %vm133, %v3110
    // Predicated region
    $region90: #{decoder_forward.1} parent=1 // pred_check
      _
    $region91: #{decoder_forward.1} parent=1 // pred_check_branch
      %3114 = sbr.rel (0) target = $region93
    $region92: #{decoder_forward.1} parent=1 // pred_region
      %s3116 = ssub.s32 256, 256
      %3117 = vsyncadd [#allocation3], %s3116
      %s3118 = sshll.u32 [#allocation2], 4
      %s3119 = int_to_ptr.vmem [resolvable:$true] %s3118
      %3124 = dma.vmem_to_hbm [thread:$0]  %s3119, 256, %s22, [#allocation3], 128, 128, 8
    $region93: #{decoder_forward.1} parent=1 // pred_fallthru
      _
    // Predicated region
    $region94: #{decoder_forward.1} parent=1 // pred_check
      _
    $region95: #{decoder_forward.1} parent=1 // pred_check_branch
      %3126 = sbr.rel (0) target = $region97
    $region96: #{decoder_forward.1} parent=1 // pred_region
      %3127 = dma.done [#allocation3], 256
    $region97: #{decoder_forward.1} parent=1 // pred_fallthru
      _
    %3128 = vsyncpa [#allocation3], 1

</llo_original>
